<compile_context>
chip_gen: v7x
topology: tpu7x:2x2x1
jax: 0.10.0
libtpu: 0.0.40
codegen_flags: <defaults>
</compile_context>

<pallas_src>
import math

import jax
import jax.numpy as jnp
from jax.experimental import pallas as pl
from jax.experimental.pallas import tpu as pltpu

# ----- model hyper-parameters (small, synthetic) -----------------------------
B = 2            # batch
S = 8            # sequence length
H = 128          # hidden size (lane aligned)
NUM_HEADS = 4
HEAD_DIM = H // NUM_HEADS
FFN = 4 * H      # intermediate size
NUM_LAYERS = 2
VOCAB = 64
NUM_TARGETS = 9  # len(targets) for the (unused-in-forward) classifier
ROWS = B * S     # batch folded into the sublane axis: (16, 128) activations


# ----- helpers ---------------------------------------------------------------
def _layer_norm(x, gamma, beta, eps=1e-12):
    mu = jnp.mean(x, axis=-1, keepdims=True)
    var = jnp.mean((x - mu) ** 2, axis=-1, keepdims=True)
    return (x - mu) * jax.lax.rsqrt(var + eps) * gamma + beta


# ----- Pallas kernel: fused encoder stack + final Softmax(dim=1) -------------
def fused_encoder_kernel(x0_ref, mask_ref,
                         wqkv_ref, bqkv_ref, wo_ref, bo_ref,
                         ln1_g_ref, ln1_b_ref,
                         wi_ref, bi_ref, wp_ref, bp_ref,
                         ln2_g_ref, ln2_b_ref,
                         out_ref, x_scr):
    layer = pl.program_id(0)

    # Load the embedding output into the resident VMEM accumulator once.
    @pl.when(layer == 0)
    def _():
        x_scr[...] = x0_ref[...].astype(jnp.float32)

    x = x_scr[...]                               # (ROWS, H) f32, VMEM-resident
    xb = x.astype(jnp.bfloat16)

    # ---- fused QKV projection: one (ROWS,H)x(H,3H) MXU matmul, f32 accum ----
    qkv = jnp.dot(xb, wqkv_ref[0],
                  preferred_element_type=jnp.float32) + bqkv_ref[0]
    # 1/sqrt(HEAD_DIM) is pre-folded into the Q columns of wqkv at init.
    q = qkv[:, 0:H].reshape(B, S, H).astype(jnp.bfloat16)
    k = qkv[:, H:2 * H].reshape(B, S, H).astype(jnp.bfloat16)
    v = qkv[:, 2 * H:3 * H].reshape(B, S, H).astype(jnp.bfloat16)

    add_mask = mask_ref[...][:, None, :]         # (B, 1, S) additive key mask

    # ---- multi-head self-attention (static unroll over heads) ---------------
    ctx_heads = []
    for h in range(NUM_HEADS):
        lo = h * HEAD_DIM
        qh = q[:, :, lo:lo + HEAD_DIM]           # (B, S, dH) lane slices
        kh = k[:, :, lo:lo + HEAD_DIM]
        vh = v[:, :, lo:lo + HEAD_DIM]
        # Contract on the last dims of both operands: no explicit transpose.
        sc = jnp.einsum('bqd,bkd->bqk', qh, kh,
                        preferred_element_type=jnp.float32)
        sc = sc + add_mask
        m = jnp.max(sc, axis=-1, keepdims=True)
        p = jnp.exp(sc - m)
        p = p * pl.reciprocal(jnp.sum(p, axis=-1, keepdims=True), approx=True)
        ctx_heads.append(jnp.einsum('bqk,bkd->bqd',
                                    p.astype(jnp.bfloat16), vh,
                                    preferred_element_type=jnp.float32))
    ctx = jnp.concatenate(ctx_heads, axis=-1).reshape(ROWS, H)

    attn_out = jnp.dot(ctx.astype(jnp.bfloat16), wo_ref[0],
                       preferred_element_type=jnp.float32) + bo_ref[0]
    h1 = _layer_norm(x + attn_out, ln1_g_ref[0], ln1_b_ref[0])

    # ---- feed-forward --------------------------------------------------------
    inter = jnp.dot(h1.astype(jnp.bfloat16), wi_ref[0],
                    preferred_element_type=jnp.float32) + bi_ref[0]
    # TODO(synk): PyTorch/BERT GELU is erf-based; tanh approximation kept here.
    inter = jax.nn.gelu(inter)
    ffn_out = jnp.dot(inter.astype(jnp.bfloat16), wp_ref[0],
                      preferred_element_type=jnp.float32) + bp_ref[0]
    h2 = _layer_norm(h1 + ffn_out, ln2_g_ref[0], ln2_b_ref[0])

    x_scr[...] = h2                              # carry to next layer (VMEM)

    # ---- last layer: dropout is identity at inference; Softmax over dim=1 ---
    @pl.when(layer == NUM_LAYERS - 1)
    def _():
        y = h2.reshape(B, S, H)
        m = jnp.max(y, axis=1, keepdims=True)    # reduce over the sequence axis
        e = jnp.exp(y - m)
        sm = e / jnp.sum(e, axis=1, keepdims=True)
        out_ref[...] = sm.reshape(ROWS, H).astype(out_ref.dtype)


# ----- wrapper ----------------------------------------------------------------
def fused_encoder(x0, add_mask, stacked):
    weights = [stacked['wqkv'], stacked['bqkv'], stacked['wo'], stacked['bo'],
               stacked['ln1_g'], stacked['ln1_b'],
               stacked['wi'], stacked['bi'], stacked['wp'], stacked['bp'],
               stacked['ln2_g'], stacked['ln2_b']]

    def layer_block(w):
        # one layer's slice per grid step; auto double-buffered prefetch
        return pl.BlockSpec((1,) + w.shape[1:], lambda l: (l, 0, 0))

    in_specs = ([pl.BlockSpec((ROWS, H), lambda l: (0, 0)),   # embeddings
                 pl.BlockSpec((B, S), lambda l: (0, 0))]      # additive mask
                + [layer_block(w) for w in weights])

    return pl.pallas_call(
        fused_encoder_kernel,
        out_shape=jax.ShapeDtypeStruct((ROWS, H), jnp.float32),
        grid_spec=pltpu.PrefetchScalarGridSpec(
            num_scalar_prefetch=0,
            grid=(NUM_LAYERS,),
            in_specs=in_specs,
            out_specs=pl.BlockSpec((ROWS, H), lambda l: (0, 0)),
            scratch_shapes=[pltpu.VMEM((ROWS, H), jnp.float32)]),
        compiler_params=pltpu.CompilerParams(
            dimension_semantics=("arbitrary",)),   # layers are sequential
    )(x0, add_mask, *weights)


def ner_model_forward(params, input_ids, attention_mask):
    # --- BERT embeddings (gather + LayerNorm): plain-JAX glue ---
    tok = params['tok_emb'][input_ids]                        # (B, S, H)
    pos = params['pos_emb'][jnp.arange(S)][None]              # (1, S, H)
    typ = params['type_emb'][0][None, None]                   # (1, 1, H)
    x = _layer_norm(tok + pos + typ, params['emb_ln_g'], params['emb_ln_b'])
    x0 = x.reshape(ROWS, H)

    # BERT-style additive attention mask: 0 where attended, -1e4 where masked.
    add_mask = (1.0 - attention_mask.astype(jnp.float32)) * -10000.0  # (B, S)

    # --- fused hot path: encoder layers + dropout(identity) + Softmax(dim=1) ---
    out = fused_encoder(x0, add_mask, params['stacked'])
    return out.reshape(B, S, H)


# ----- deterministic parameter initialization --------------------------------
def init_params(key):
    keys = jax.random.split(key, 8 + NUM_LAYERS)

    def normal(k, shape):
        return jax.random.normal(k, shape, jnp.float32) * 0.02

    params = {
        'tok_emb': normal(keys[0], (VOCAB, H)),
        'pos_emb': normal(keys[1], (S, H)),
        'type_emb': normal(keys[2], (2, H)),
        'emb_ln_g': jnp.ones((H,), jnp.float32),
        'emb_ln_b': jnp.zeros((H,), jnp.float32),
        # classifier is created in __init__ but never used in forward():
        'cls_w': normal(keys[3], (H, NUM_TARGETS)),
        'cls_b': jnp.zeros((NUM_TARGETS,), jnp.float32),
    }

    scale = 1.0 / math.sqrt(HEAD_DIM)
    wqkv, bqkv, wo, bo, ln1_g, ln1_b = [], [], [], [], [], []
    wi, bi, wp, bp, ln2_g, ln2_b = [], [], [], [], [], []
    for i in range(NUM_LAYERS):
        lk = jax.random.split(keys[8 + i], 6)
        wq = normal(lk[0], (H, H)) * scale    # fold 1/sqrt(dH) into Q weights
        wk = normal(lk[1], (H, H))
        wv = normal(lk[2], (H, H))
        wqkv.append(jnp.concatenate([wq, wk, wv], axis=1))    # (H, 3H)
        bqkv.append(jnp.zeros((1, 3 * H), jnp.float32))
        wo.append(normal(lk[3], (H, H)))
        bo.append(jnp.zeros((1, H), jnp.float32))
        ln1_g.append(jnp.ones((1, H), jnp.float32))
        ln1_b.append(jnp.zeros((1, H), jnp.float32))
        wi.append(normal(lk[4], (H, FFN)))
        bi.append(jnp.zeros((1, FFN), jnp.float32))
        wp.append(normal(lk[5], (FFN, H)))
        bp.append(jnp.zeros((1, H), jnp.float32))
        ln2_g.append(jnp.ones((1, H), jnp.float32))
        ln2_b.append(jnp.zeros((1, H), jnp.float32))

    def stack(xs, dtype=jnp.float32):
        return jnp.stack(xs).astype(dtype)

    params['stacked'] = {
        # MXU operands in bf16 (halves weight DMA bytes); f32 accumulation in-kernel.
        'wqkv': stack(wqkv, jnp.bfloat16),
        'wo': stack(wo, jnp.bfloat16),
        'wi': stack(wi, jnp.bfloat16),
        'wp': stack(wp, jnp.bfloat16),
        # Biases / LayerNorm params stay f32 (elementwise math is f32 everywhere).
        'bqkv': stack(bqkv), 'bo': stack(bo),
        'ln1_g': stack(ln1_g), 'ln1_b': stack(ln1_b),
        'bi': stack(bi), 'bp': stack(bp),
        'ln2_g': stack(ln2_g), 'ln2_b': stack(ln2_b),
    }
    return params


if __name__ == "__main__":
    root = jax.random.PRNGKey(0)
    k_param, k_ids = jax.random.split(root)

    params = init_params(k_param)
    input_ids = jax.random.randint(k_ids, (B, S), 0, VOCAB, dtype=jnp.int32)
    attention_mask = jnp.ones((B, S), jnp.int32).at[1, -2:].set(0)  # pad last 2 of batch 1

    fwd = jax.jit(ner_model_forward)
    out = fwd(params, input_ids, attention_mask)
    out = jax.block_until_ready(out)

    assert out.shape == (B, S, H), out.shape
    assert bool(jnp.all(jnp.isfinite(out)))
    # Softmax over dim=1 (sequence) must sum to 1 along that axis.
    assert bool(jnp.allclose(jnp.sum(out, axis=1), 1.0, atol=1e-4))
    print("KERNEL_OK")
</pallas_src>

<mosaic_0001>
module attributes {stable_mosaic.version = 11 : i64} {
  func.func @fused_encoder_kernel(%arg0: i32, %arg1: memref<16x128xf32, #tpu.memory_space<vmem>>, %arg2: memref<2x8xf32, #tpu.memory_space<vmem>>, %arg3: memref<1x128x384xbf16, #tpu.memory_space<vmem>>, %arg4: memref<1x1x384xf32, #tpu.memory_space<vmem>>, %arg5: memref<1x128x128xbf16, #tpu.memory_space<vmem>>, %arg6: memref<1x1x128xf32, #tpu.memory_space<vmem>>, %arg7: memref<1x1x128xf32, #tpu.memory_space<vmem>>, %arg8: memref<1x1x128xf32, #tpu.memory_space<vmem>>, %arg9: memref<1x128x512xbf16, #tpu.memory_space<vmem>>, %arg10: memref<1x1x512xf32, #tpu.memory_space<vmem>>, %arg11: memref<1x512x128xbf16, #tpu.memory_space<vmem>>, %arg12: memref<1x1x128xf32, #tpu.memory_space<vmem>>, %arg13: memref<1x1x128xf32, #tpu.memory_space<vmem>>, %arg14: memref<1x1x128xf32, #tpu.memory_space<vmem>>, %arg15: memref<16x128xf32, #tpu.memory_space<vmem>>, %arg16: memref<16x128xf32, #tpu.memory_space<vmem>>) attributes {dimension_semantics = [#tpu.dimension_semantics<arbitrary>], iteration_bounds = array<i64: 2>, scalar_prefetch = 0 : i64, scratch_operands = 1 : i64, tpu.core_type = #tpu.core_type<tc>, window_params = [{pipeline_mode = #tpu.pipeline_mode<synchronous>, transform_indices = @transform_0, window_bounds = array<i64: 16, 128>}, {pipeline_mode = #tpu.pipeline_mode<synchronous>, transform_indices = @transform_1, window_bounds = array<i64: 2, 8>}, {transform_indices = @transform_2, window_bounds = array<i64: 1, 128, 384>}, {transform_indices = @transform_3, window_bounds = array<i64: 1, 1, 384>}, {transform_indices = @transform_4, window_bounds = array<i64: 1, 128, 128>}, {transform_indices = @transform_5, window_bounds = array<i64: 1, 1, 128>}, {transform_indices = @transform_6, window_bounds = array<i64: 1, 1, 128>}, {transform_indices = @transform_7, window_bounds = array<i64: 1, 1, 128>}, {transform_indices = @transform_8, window_bounds = array<i64: 1, 128, 512>}, {transform_indices = @transform_9, window_bounds = array<i64: 1, 1, 512>}, {transform_indices = @transform_10, window_bounds = array<i64: 1, 512, 128>}, {transform_indices = @transform_11, window_bounds = array<i64: 1, 1, 128>}, {transform_indices = @transform_12, window_bounds = array<i64: 1, 1, 128>}, {transform_indices = @transform_13, window_bounds = array<i64: 1, 1, 128>}, {pipeline_mode = #tpu.pipeline_mode<synchronous>, transform_indices = @transform_14, window_bounds = array<i64: 16, 128>}]} {
    %c0_i32 = arith.constant 0 : i32
    %0 = arith.cmpi eq, %arg0, %c0_i32 : i32
    %1 = arith.extui %0 : i1 to i32
    %c0_i32_0 = arith.constant 0 : i32
    %2 = arith.cmpi ne, %1, %c0_i32_0 : i32
    scf.if %2 {
      %c0_76 = arith.constant 0 : index
      %c0_77 = arith.constant 0 : index
      %192 = vector.load %arg1[%c0_76, %c0_77] : memref<16x128xf32, #tpu.memory_space<vmem>>, vector<16x128xf32>
      %c0_78 = arith.constant 0 : index
      %c0_79 = arith.constant 0 : index
      %193 = vector.load %arg16[%c0_78, %c0_79] : memref<16x128xf32, #tpu.memory_space<vmem>>, vector<16x128xf32>
      tpu.vector_store %arg16[%c0_78, %c0_79], %192 {strides = array<i32>} : memref<16x128xf32, #tpu.memory_space<vmem>>, vector<16x128xf32>,
    } else {
    }
    %c0 = arith.constant 0 : index
    %c0_1 = arith.constant 0 : index
    %3 = vector.load %arg16[%c0, %c0_1] : memref<16x128xf32, #tpu.memory_space<vmem>>, vector<16x128xf32>
    %4 = arith.truncf %3 : vector<16x128xf32> to vector<16x128xbf16>
    %c0_2 = arith.constant 0 : index
    %c0_3 = arith.constant 0 : index
    %c0_4 = arith.constant 0 : index
    %5 = vector.load %arg3[%c0_2, %c0_3, %c0_4] : memref<1x128x384xbf16, #tpu.memory_space<vmem>>, vector<1x128x384xbf16>
    %6 = vector.shape_cast %5 : vector<1x128x384xbf16> to vector<128x384xbf16>
    %cst = arith.constant dense<0.000000e+00> : vector<16x384xf32>
    %7 = tpu.matmul %4, %6, %cst {dimension_numbers = #tpu.dot_dimension_numbers<[1], [0], [0], [1], [0, 0, 1, 1], [], []>} : vector<16x128xbf16>, vector<128x384xbf16>, vector<16x384xf32> -> vector<16x384xf32>
    %c0_5 = arith.constant 0 : index
    %c0_6 = arith.constant 0 : index
    %c0_7 = arith.constant 0 : index
    %8 = vector.load %arg4[%c0_5, %c0_6, %c0_7] : memref<1x1x384xf32, #tpu.memory_space<vmem>>, vector<1x1x384xf32>
    %9 = vector.shape_cast %8 : vector<1x1x384xf32> to vector<1x384xf32>
    %10 = vector.broadcast %9 : vector<1x384xf32> to vector<16x384xf32>
    %11 = arith.addf %7, %10 : vector<16x384xf32>
    %12 = vector.extract_strided_slice %11 {offsets = [0, 0], sizes = [16, 128], strides = [1, 1]} : vector<16x384xf32> to vector<16x128xf32>
    %13 = vector.shape_cast %12 : vector<16x128xf32> to vector<2x8x128xf32>
    %14 = arith.truncf %13 : vector<2x8x128xf32> to vector<2x8x128xbf16>
    %15 = vector.extract_strided_slice %11 {offsets = [0, 128], sizes = [16, 128], strides = [1, 1]} : vector<16x384xf32> to vector<16x128xf32>
    %16 = vector.shape_cast %15 : vector<16x128xf32> to vector<2x8x128xf32>
    %17 = arith.truncf %16 : vector<2x8x128xf32> to vector<2x8x128xbf16>
    %18 = vector.extract_strided_slice %11 {offsets = [0, 256], sizes = [16, 128], strides = [1, 1]} : vector<16x384xf32> to vector<16x128xf32>
    %19 = vector.shape_cast %18 : vector<16x128xf32> to vector<2x8x128xf32>
    %20 = arith.truncf %19 : vector<2x8x128xf32> to vector<2x8x128xbf16>
    %c0_8 = arith.constant 0 : index
    %c0_9 = arith.constant 0 : index
    %21 = vector.load %arg2[%c0_8, %c0_9] : memref<2x8xf32, #tpu.memory_space<vmem>>, vector<2x8xf32>
    %22 = vector.shape_cast %21 : vector<2x8xf32> to vector<2x1x8xf32>
    %23 = vector.extract_strided_slice %14 {offsets = [0, 0, 0], sizes = [2, 8, 32], strides = [1, 1, 1]} : vector<2x8x128xbf16> to vector<2x8x32xbf16>
    %24 = vector.extract_strided_slice %17 {offsets = [0, 0, 0], sizes = [2, 8, 32], strides = [1, 1, 1]} : vector<2x8x128xbf16> to vector<2x8x32xbf16>
    %25 = vector.extract_strided_slice %20 {offsets = [0, 0, 0], sizes = [2, 8, 32], strides = [1, 1, 1]} : vector<2x8x128xbf16> to vector<2x8x32xbf16>
    "tpu.trace_start"() <{level = 10 : i32, message = "bqd,bkd->bqk"}> : () -> ()
    %cst_10 = arith.constant dense<0.000000e+00> : vector<2x8x8xf32>
    %26 = tpu.matmul %23, %24, %cst_10 {dimension_numbers = #tpu.dot_dimension_numbers<[2], [2], [1], [1], [0, 0, 0, 1, 1, 1], [0], [0]>} : vector<2x8x32xbf16>, vector<2x8x32xbf16>, vector<2x8x8xf32> -> vector<2x8x8xf32>
    "tpu.trace_stop"() : () -> ()
    %27 = vector.broadcast %22 : vector<2x1x8xf32> to vector<2x8x8xf32>
    %28 = arith.addf %26, %27 : vector<2x8x8xf32>
    %cst_11 = arith.constant dense<0xFF800000> : vector<2x8xf32>
    %29 = vector.multi_reduction <maximumf>, %28, %cst_11 [2] : vector<2x8x8xf32> to vector<2x8xf32>
    %30 = vector.shape_cast %29 : vector<2x8xf32> to vector<2x8x1xf32>
    %31 = vector.broadcast %30 : vector<2x8x1xf32> to vector<2x8x8xf32>
    %32 = arith.subf %28, %31 : vector<2x8x8xf32>
    %33 = math.exp %32 : vector<2x8x8xf32>
    %cst_12 = arith.constant dense<0.000000e+00> : vector<2x8xf32>
    %34 = vector.multi_reduction <add>, %33, %cst_12 [2] : vector<2x8x8xf32> to vector<2x8xf32>
    %35 = vector.shape_cast %34 : vector<2x8xf32> to vector<2x8x1xf32>
    %36 = tpu.reciprocal %35 {approx = true} : vector<2x8x1xf32> -> vector<2x8x1xf32>
    %37 = vector.broadcast %36 : vector<2x8x1xf32> to vector<2x8x8xf32>
    %38 = arith.mulf %33, %37 : vector<2x8x8xf32>
    %39 = arith.truncf %38 : vector<2x8x8xf32> to vector<2x8x8xbf16>
    "tpu.trace_start"() <{level = 10 : i32, message = "bqk,bkd->bqd"}> : () -> ()
    %cst_13 = arith.constant dense<0.000000e+00> : vector<2x8x32xf32>
    %40 = tpu.matmul %39, %25, %cst_13 {dimension_numbers = #tpu.dot_dimension_numbers<[2], [1], [1], [2], [0, 0, 0, 1, 1, 2], [0], [0]>} : vector<2x8x8xbf16>, vector<2x8x32xbf16>, vector<2x8x32xf32> -> vector<2x8x32xf32>
    "tpu.trace_stop"() : () -> ()
    %41 = vector.extract_strided_slice %14 {offsets = [0, 0, 32], sizes = [2, 8, 32], strides = [1, 1, 1]} : vector<2x8x128xbf16> to vector<2x8x32xbf16>
    %42 = vector.extract_strided_slice %17 {offsets = [0, 0, 32], sizes = [2, 8, 32], strides = [1, 1, 1]} : vector<2x8x128xbf16> to vector<2x8x32xbf16>
    %43 = vector.extract_strided_slice %20 {offsets = [0, 0, 32], sizes = [2, 8, 32], strides = [1, 1, 1]} : vector<2x8x128xbf16> to vector<2x8x32xbf16>
    "tpu.trace_start"() <{level = 10 : i32, message = "bqd,bkd->bqk"}> : () -> ()
    %cst_14 = arith.constant dense<0.000000e+00> : vector<2x8x8xf32>
    %44 = tpu.matmul %41, %42, %cst_14 {dimension_numbers = #tpu.dot_dimension_numbers<[2], [2], [1], [1], [0, 0, 0, 1, 1, 1], [0], [0]>} : vector<2x8x32xbf16>, vector<2x8x32xbf16>, vector<2x8x8xf32> -> vector<2x8x8xf32>
    "tpu.trace_stop"() : () -> ()
    %45 = vector.broadcast %22 : vector<2x1x8xf32> to vector<2x8x8xf32>
    %46 = arith.addf %44, %45 : vector<2x8x8xf32>
    %cst_15 = arith.constant dense<0xFF800000> : vector<2x8xf32>
    %47 = vector.multi_reduction <maximumf>, %46, %cst_15 [2] : vector<2x8x8xf32> to vector<2x8xf32>
    %48 = vector.shape_cast %47 : vector<2x8xf32> to vector<2x8x1xf32>
    %49 = vector.broadcast %48 : vector<2x8x1xf32> to vector<2x8x8xf32>
    %50 = arith.subf %46, %49 : vector<2x8x8xf32>
    %51 = math.exp %50 : vector<2x8x8xf32>
    %cst_16 = arith.constant dense<0.000000e+00> : vector<2x8xf32>
    %52 = vector.multi_reduction <add>, %51, %cst_16 [2] : vector<2x8x8xf32> to vector<2x8xf32>
    %53 = vector.shape_cast %52 : vector<2x8xf32> to vector<2x8x1xf32>
    %54 = tpu.reciprocal %53 {approx = true} : vector<2x8x1xf32> -> vector<2x8x1xf32>
    %55 = vector.broadcast %54 : vector<2x8x1xf32> to vector<2x8x8xf32>
    %56 = arith.mulf %51, %55 : vector<2x8x8xf32>
    %57 = arith.truncf %56 : vector<2x8x8xf32> to vector<2x8x8xbf16>
    "tpu.trace_start"() <{level = 10 : i32, message = "bqk,bkd->bqd"}> : () -> ()
    %cst_17 = arith.constant dense<0.000000e+00> : vector<2x8x32xf32>
    %58 = tpu.matmul %57, %43, %cst_17 {dimension_numbers = #tpu.dot_dimension_numbers<[2], [1], [1], [2], [0, 0, 0, 1, 1, 2], [0], [0]>} : vector<2x8x8xbf16>, vector<2x8x32xbf16>, vector<2x8x32xf32> -> vector<2x8x32xf32>
    "tpu.trace_stop"() : () -> ()
    %59 = vector.extract_strided_slice %14 {offsets = [0, 0, 64], sizes = [2, 8, 32], strides = [1, 1, 1]} : vector<2x8x128xbf16> to vector<2x8x32xbf16>
    %60 = vector.extract_strided_slice %17 {offsets = [0, 0, 64], sizes = [2, 8, 32], strides = [1, 1, 1]} : vector<2x8x128xbf16> to vector<2x8x32xbf16>
    %61 = vector.extract_strided_slice %20 {offsets = [0, 0, 64], sizes = [2, 8, 32], strides = [1, 1, 1]} : vector<2x8x128xbf16> to vector<2x8x32xbf16>
    "tpu.trace_start"() <{level = 10 : i32, message = "bqd,bkd->bqk"}> : () -> ()
    %cst_18 = arith.constant dense<0.000000e+00> : vector<2x8x8xf32>
    %62 = tpu.matmul %59, %60, %cst_18 {dimension_numbers = #tpu.dot_dimension_numbers<[2], [2], [1], [1], [0, 0, 0, 1, 1, 1], [0], [0]>} : vector<2x8x32xbf16>, vector<2x8x32xbf16>, vector<2x8x8xf32> -> vector<2x8x8xf32>
    "tpu.trace_stop"() : () -> ()
    %63 = vector.broadcast %22 : vector<2x1x8xf32> to vector<2x8x8xf32>
    %64 = arith.addf %62, %63 : vector<2x8x8xf32>
    %cst_19 = arith.constant dense<0xFF800000> : vector<2x8xf32>
    %65 = vector.multi_reduction <maximumf>, %64, %cst_19 [2] : vector<2x8x8xf32> to vector<2x8xf32>
    %66 = vector.shape_cast %65 : vector<2x8xf32> to vector<2x8x1xf32>
    %67 = vector.broadcast %66 : vector<2x8x1xf32> to vector<2x8x8xf32>
    %68 = arith.subf %64, %67 : vector<2x8x8xf32>
    %69 = math.exp %68 : vector<2x8x8xf32>
    %cst_20 = arith.constant dense<0.000000e+00> : vector<2x8xf32>
    %70 = vector.multi_reduction <add>, %69, %cst_20 [2] : vector<2x8x8xf32> to vector<2x8xf32>
    %71 = vector.shape_cast %70 : vector<2x8xf32> to vector<2x8x1xf32>
    %72 = tpu.reciprocal %71 {approx = true} : vector<2x8x1xf32> -> vector<2x8x1xf32>
    %73 = vector.broadcast %72 : vector<2x8x1xf32> to vector<2x8x8xf32>
    %74 = arith.mulf %69, %73 : vector<2x8x8xf32>
    %75 = arith.truncf %74 : vector<2x8x8xf32> to vector<2x8x8xbf16>
    "tpu.trace_start"() <{level = 10 : i32, message = "bqk,bkd->bqd"}> : () -> ()
    %cst_21 = arith.constant dense<0.000000e+00> : vector<2x8x32xf32>
    %76 = tpu.matmul %75, %61, %cst_21 {dimension_numbers = #tpu.dot_dimension_numbers<[2], [1], [1], [2], [0, 0, 0, 1, 1, 2], [0], [0]>} : vector<2x8x8xbf16>, vector<2x8x32xbf16>, vector<2x8x32xf32> -> vector<2x8x32xf32>
    "tpu.trace_stop"() : () -> ()
    %77 = vector.extract_strided_slice %14 {offsets = [0, 0, 96], sizes = [2, 8, 32], strides = [1, 1, 1]} : vector<2x8x128xbf16> to vector<2x8x32xbf16>
    %78 = vector.extract_strided_slice %17 {offsets = [0, 0, 96], sizes = [2, 8, 32], strides = [1, 1, 1]} : vector<2x8x128xbf16> to vector<2x8x32xbf16>
    %79 = vector.extract_strided_slice %20 {offsets = [0, 0, 96], sizes = [2, 8, 32], strides = [1, 1, 1]} : vector<2x8x128xbf16> to vector<2x8x32xbf16>
    "tpu.trace_start"() <{level = 10 : i32, message = "bqd,bkd->bqk"}> : () -> ()
    %cst_22 = arith.constant dense<0.000000e+00> : vector<2x8x8xf32>
    %80 = tpu.matmul %77, %78, %cst_22 {dimension_numbers = #tpu.dot_dimension_numbers<[2], [2], [1], [1], [0, 0, 0, 1, 1, 1], [0], [0]>} : vector<2x8x32xbf16>, vector<2x8x32xbf16>, vector<2x8x8xf32> -> vector<2x8x8xf32>
    "tpu.trace_stop"() : () -> ()
    %81 = vector.broadcast %22 : vector<2x1x8xf32> to vector<2x8x8xf32>
    %82 = arith.addf %80, %81 : vector<2x8x8xf32>
    %cst_23 = arith.constant dense<0xFF800000> : vector<2x8xf32>
    %83 = vector.multi_reduction <maximumf>, %82, %cst_23 [2] : vector<2x8x8xf32> to vector<2x8xf32>
    %84 = vector.shape_cast %83 : vector<2x8xf32> to vector<2x8x1xf32>
    %85 = vector.broadcast %84 : vector<2x8x1xf32> to vector<2x8x8xf32>
    %86 = arith.subf %82, %85 : vector<2x8x8xf32>
    %87 = math.exp %86 : vector<2x8x8xf32>
    %cst_24 = arith.constant dense<0.000000e+00> : vector<2x8xf32>
    %88 = vector.multi_reduction <add>, %87, %cst_24 [2] : vector<2x8x8xf32> to vector<2x8xf32>
    %89 = vector.shape_cast %88 : vector<2x8xf32> to vector<2x8x1xf32>
    %90 = tpu.reciprocal %89 {approx = true} : vector<2x8x1xf32> -> vector<2x8x1xf32>
    %91 = vector.broadcast %90 : vector<2x8x1xf32> to vector<2x8x8xf32>
    %92 = arith.mulf %87, %91 : vector<2x8x8xf32>
    %93 = arith.truncf %92 : vector<2x8x8xf32> to vector<2x8x8xbf16>
    "tpu.trace_start"() <{level = 10 : i32, message = "bqk,bkd->bqd"}> : () -> ()
    %cst_25 = arith.constant dense<0.000000e+00> : vector<2x8x32xf32>
    %94 = tpu.matmul %93, %79, %cst_25 {dimension_numbers = #tpu.dot_dimension_numbers<[2], [1], [1], [2], [0, 0, 0, 1, 1, 2], [0], [0]>} : vector<2x8x8xbf16>, vector<2x8x32xbf16>, vector<2x8x32xf32> -> vector<2x8x32xf32>
    "tpu.trace_stop"() : () -> ()
    %95 = tpu.concatenate %40, %58, %76, %94 in 2 : vector<2x8x32xf32>, vector<2x8x32xf32>, vector<2x8x32xf32>, vector<2x8x32xf32> -> vector<2x8x128xf32>
    %96 = vector.shape_cast %95 : vector<2x8x128xf32> to vector<16x128xf32>
    %97 = arith.truncf %96 : vector<16x128xf32> to vector<16x128xbf16>
    %c0_26 = arith.constant 0 : index
    %c0_27 = arith.constant 0 : index
    %c0_28 = arith.constant 0 : index
    %98 = vector.load %arg5[%c0_26, %c0_27, %c0_28] : memref<1x128x128xbf16, #tpu.memory_space<vmem>>, vector<1x128x128xbf16>
    %99 = vector.shape_cast %98 : vector<1x128x128xbf16> to vector<128x128xbf16>
    %cst_29 = arith.constant dense<0.000000e+00> : vector<16x128xf32>
    %100 = tpu.matmul %97, %99, %cst_29 {dimension_numbers = #tpu.dot_dimension_numbers<[1], [0], [0], [1], [0, 0, 1, 1], [], []>} : vector<16x128xbf16>, vector<128x128xbf16>, vector<16x128xf32> -> vector<16x128xf32>
    %c0_30 = arith.constant 0 : index
    %c0_31 = arith.constant 0 : index
    %c0_32 = arith.constant 0 : index
    %101 = vector.load %arg6[%c0_30, %c0_31, %c0_32] : memref<1x1x128xf32, #tpu.memory_space<vmem>>, vector<1x1x128xf32>
    %102 = vector.shape_cast %101 : vector<1x1x128xf32> to vector<1x128xf32>
    %103 = vector.broadcast %102 : vector<1x128xf32> to vector<16x128xf32>
    %104 = arith.addf %100, %103 : vector<16x128xf32>
    %105 = arith.addf %3, %104 : vector<16x128xf32>
    %c0_33 = arith.constant 0 : index
    %c0_34 = arith.constant 0 : index
    %c0_35 = arith.constant 0 : index
    %106 = vector.load %arg7[%c0_33, %c0_34, %c0_35] : memref<1x1x128xf32, #tpu.memory_space<vmem>>, vector<1x1x128xf32>
    %107 = vector.shape_cast %106 : vector<1x1x128xf32> to vector<1x128xf32>
    %c0_36 = arith.constant 0 : index
    %c0_37 = arith.constant 0 : index
    %c0_38 = arith.constant 0 : index
    %108 = vector.load %arg8[%c0_36, %c0_37, %c0_38] : memref<1x1x128xf32, #tpu.memory_space<vmem>>, vector<1x1x128xf32>
    %109 = vector.shape_cast %108 : vector<1x1x128xf32> to vector<1x128xf32>
    %cst_39 = arith.constant dense<0.000000e+00> : vector<16xf32>
    %110 = vector.multi_reduction <add>, %105, %cst_39 [1] : vector<16x128xf32> to vector<16xf32>
    %111 = vector.shape_cast %110 : vector<16xf32> to vector<16x1xf32>
    %cst_40 = arith.constant 1.280000e+02 : f32
    %112 = vector.broadcast %cst_40 : f32 to vector<16x1xf32>
    %113 = arith.divf %111, %112 : vector<16x1xf32>
    %114 = vector.broadcast %113 : vector<16x1xf32> to vector<16x128xf32>
    %115 = arith.subf %105, %114 : vector<16x128xf32>
    %116 = arith.mulf %115, %115 : vector<16x128xf32>
    %cst_41 = arith.constant dense<0.000000e+00> : vector<16xf32>
    %117 = vector.multi_reduction <add>, %116, %cst_41 [1] : vector<16x128xf32> to vector<16xf32>
    %118 = vector.shape_cast %117 : vector<16xf32> to vector<16x1xf32>
    %cst_42 = arith.constant 1.280000e+02 : f32
    %119 = vector.broadcast %cst_42 : f32 to vector<16x1xf32>
    %120 = arith.divf %118, %119 : vector<16x1xf32>
    %121 = vector.broadcast %113 : vector<16x1xf32> to vector<16x128xf32>
    %122 = arith.subf %105, %121 : vector<16x128xf32>
    %cst_43 = arith.constant 9.99999996E-13 : f32
    %123 = vector.broadcast %cst_43 : f32 to vector<16x1xf32>
    %124 = arith.addf %120, %123 : vector<16x1xf32>
    %125 = math.rsqrt %124 : vector<16x1xf32>
    %126 = vector.broadcast %125 : vector<16x1xf32> to vector<16x128xf32>
    %127 = arith.mulf %122, %126 : vector<16x128xf32>
    %128 = vector.broadcast %107 : vector<1x128xf32> to vector<16x128xf32>
    %129 = arith.mulf %127, %128 : vector<16x128xf32>
    %130 = vector.broadcast %109 : vector<1x128xf32> to vector<16x128xf32>
    %131 = arith.addf %129, %130 : vector<16x128xf32>
    %132 = arith.truncf %131 : vector<16x128xf32> to vector<16x128xbf16>
    %c0_44 = arith.constant 0 : index
    %c0_45 = arith.constant 0 : index
    %c0_46 = arith.constant 0 : index
    %133 = vector.load %arg9[%c0_44, %c0_45, %c0_46] : memref<1x128x512xbf16, #tpu.memory_space<vmem>>, vector<1x128x512xbf16>
    %134 = vector.shape_cast %133 : vector<1x128x512xbf16> to vector<128x512xbf16>
    %cst_47 = arith.constant dense<0.000000e+00> : vector<16x512xf32>
    %135 = tpu.matmul %132, %134, %cst_47 {dimension_numbers = #tpu.dot_dimension_numbers<[1], [0], [0], [1], [0, 0, 1, 1], [], []>} : vector<16x128xbf16>, vector<128x512xbf16>, vector<16x512xf32> -> vector<16x512xf32>
    %c0_48 = arith.constant 0 : index
    %c0_49 = arith.constant 0 : index
    %c0_50 = arith.constant 0 : index
    %136 = vector.load %arg10[%c0_48, %c0_49, %c0_50] : memref<1x1x512xf32, #tpu.memory_space<vmem>>, vector<1x1x512xf32>
    %137 = vector.shape_cast %136 : vector<1x1x512xf32> to vector<1x512xf32>
    %138 = vector.broadcast %137 : vector<1x512xf32> to vector<16x512xf32>
    %139 = arith.addf %135, %138 : vector<16x512xf32>
    %140 = arith.mulf %139, %139 : vector<16x512xf32>
    %141 = arith.mulf %139, %140 : vector<16x512xf32>
    %cst_51 = arith.constant 4.471500e-02 : f32
    %142 = vector.broadcast %cst_51 : f32 to vector<16x512xf32>
    %143 = arith.mulf %142, %141 : vector<16x512xf32>
    %144 = arith.addf %139, %143 : vector<16x512xf32>
    %cst_52 = arith.constant 0.797884583 : f32
    %145 = vector.broadcast %cst_52 : f32 to vector<16x512xf32>
    %146 = arith.mulf %145, %144 : vector<16x512xf32>
    %147 = math.tanh %146 : vector<16x512xf32>
    %cst_53 = arith.constant 1.000000e+00 : f32
    %148 = vector.broadcast %cst_53 : f32 to vector<16x512xf32>
    %149 = arith.addf %148, %147 : vector<16x512xf32>
    %cst_54 = arith.constant 5.000000e-01 : f32
    %150 = vector.broadcast %cst_54 : f32 to vector<16x512xf32>
    %151 = arith.mulf %150, %149 : vector<16x512xf32>
    %152 = arith.mulf %139, %151 : vector<16x512xf32>
    %153 = arith.truncf %152 : vector<16x512xf32> to vector<16x512xbf16>
    %c0_55 = arith.constant 0 : index
    %c0_56 = arith.constant 0 : index
    %c0_57 = arith.constant 0 : index
    %154 = vector.load %arg11[%c0_55, %c0_56, %c0_57] : memref<1x512x128xbf16, #tpu.memory_space<vmem>>, vector<1x512x128xbf16>
    %155 = vector.shape_cast %154 : vector<1x512x128xbf16> to vector<512x128xbf16>
    %cst_58 = arith.constant dense<0.000000e+00> : vector<16x128xf32>
    %156 = tpu.matmul %153, %155, %cst_58 {dimension_numbers = #tpu.dot_dimension_numbers<[1], [0], [0], [1], [0, 0, 1, 1], [], []>} : vector<16x512xbf16>, vector<512x128xbf16>, vector<16x128xf32> -> vector<16x128xf32>
    %c0_59 = arith.constant 0 : index
    %c0_60 = arith.constant 0 : index
    %c0_61 = arith.constant 0 : index
    %157 = vector.load %arg12[%c0_59, %c0_60, %c0_61] : memref<1x1x128xf32, #tpu.memory_space<vmem>>, vector<1x1x128xf32>
    %158 = vector.shape_cast %157 : vector<1x1x128xf32> to vector<1x128xf32>
    %159 = vector.broadcast %158 : vector<1x128xf32> to vector<16x128xf32>
    %160 = arith.addf %156, %159 : vector<16x128xf32>
    %161 = arith.addf %131, %160 : vector<16x128xf32>
    %c0_62 = arith.constant 0 : index
    %c0_63 = arith.constant 0 : index
    %c0_64 = arith.constant 0 : index
    %162 = vector.load %arg13[%c0_62, %c0_63, %c0_64] : memref<1x1x128xf32, #tpu.memory_space<vmem>>, vector<1x1x128xf32>
    %163 = vector.shape_cast %162 : vector<1x1x128xf32> to vector<1x128xf32>
    %c0_65 = arith.constant 0 : index
    %c0_66 = arith.constant 0 : index
    %c0_67 = arith.constant 0 : index
    %164 = vector.load %arg14[%c0_65, %c0_66, %c0_67] : memref<1x1x128xf32, #tpu.memory_space<vmem>>, vector<1x1x128xf32>
    %165 = vector.shape_cast %164 : vector<1x1x128xf32> to vector<1x128xf32>
    %cst_68 = arith.constant dense<0.000000e+00> : vector<16xf32>
    %166 = vector.multi_reduction <add>, %161, %cst_68 [1] : vector<16x128xf32> to vector<16xf32>
    %167 = vector.shape_cast %166 : vector<16xf32> to vector<16x1xf32>
    %cst_69 = arith.constant 1.280000e+02 : f32
    %168 = vector.broadcast %cst_69 : f32 to vector<16x1xf32>
    %169 = arith.divf %167, %168 : vector<16x1xf32>
    %170 = vector.broadcast %169 : vector<16x1xf32> to vector<16x128xf32>
    %171 = arith.subf %161, %170 : vector<16x128xf32>
    %172 = arith.mulf %171, %171 : vector<16x128xf32>
    %cst_70 = arith.constant dense<0.000000e+00> : vector<16xf32>
    %173 = vector.multi_reduction <add>, %172, %cst_70 [1] : vector<16x128xf32> to vector<16xf32>
    %174 = vector.shape_cast %173 : vector<16xf32> to vector<16x1xf32>
    %cst_71 = arith.constant 1.280000e+02 : f32
    %175 = vector.broadcast %cst_71 : f32 to vector<16x1xf32>
    %176 = arith.divf %174, %175 : vector<16x1xf32>
    %177 = vector.broadcast %169 : vector<16x1xf32> to vector<16x128xf32>
    %178 = arith.subf %161, %177 : vector<16x128xf32>
    %cst_72 = arith.constant 9.99999996E-13 : f32
    %179 = vector.broadcast %cst_72 : f32 to vector<16x1xf32>
    %180 = arith.addf %176, %179 : vector<16x1xf32>
    %181 = math.rsqrt %180 : vector<16x1xf32>
    %182 = vector.broadcast %181 : vector<16x1xf32> to vector<16x128xf32>
    %183 = arith.mulf %178, %182 : vector<16x128xf32>
    %184 = vector.broadcast %163 : vector<1x128xf32> to vector<16x128xf32>
    %185 = arith.mulf %183, %184 : vector<16x128xf32>
    %186 = vector.broadcast %165 : vector<1x128xf32> to vector<16x128xf32>
    %187 = arith.addf %185, %186 : vector<16x128xf32>
    %c0_73 = arith.constant 0 : index
    %c0_74 = arith.constant 0 : index
    %188 = vector.load %arg16[%c0_73, %c0_74] : memref<16x128xf32, #tpu.memory_space<vmem>>, vector<16x128xf32>
    tpu.vector_store %arg16[%c0_73, %c0_74], %187 {strides = array<i32>} : memref<16x128xf32, #tpu.memory_space<vmem>>, vector<16x128xf32>,
    %c1_i32 = arith.constant 1 : i32
    %189 = arith.cmpi eq, %arg0, %c1_i32 : i32
    %190 = arith.extui %189 : i1 to i32
    %c0_i32_75 = arith.constant 0 : i32
    %191 = arith.cmpi ne, %190, %c0_i32_75 : i32
    scf.if %191 {
      %192 = vector.shape_cast %187 : vector<16x128xf32> to vector<2x8x128xf32>
      %cst_76 = arith.constant dense<0xFF800000> : vector<2x128xf32>
      %193 = vector.multi_reduction <maximumf>, %192, %cst_76 [1] : vector<2x8x128xf32> to vector<2x128xf32>
      %194 = vector.shape_cast %193 : vector<2x128xf32> to vector<2x1x128xf32>
      %195 = vector.broadcast %194 : vector<2x1x128xf32> to vector<2x8x128xf32>
      %196 = arith.subf %192, %195 : vector<2x8x128xf32>
      %197 = math.exp %196 : vector<2x8x128xf32>
      %cst_77 = arith.constant dense<0.000000e+00> : vector<2x128xf32>
      %198 = vector.multi_reduction <add>, %197, %cst_77 [1] : vector<2x8x128xf32> to vector<2x128xf32>
      %199 = vector.shape_cast %198 : vector<2x128xf32> to vector<2x1x128xf32>
      %200 = vector.broadcast %199 : vector<2x1x128xf32> to vector<2x8x128xf32>
      %201 = arith.divf %197, %200 : vector<2x8x128xf32>
      %202 = vector.shape_cast %201 : vector<2x8x128xf32> to vector<16x128xf32>
      %c0_78 = arith.constant 0 : index
      %c0_79 = arith.constant 0 : index
      %203 = vector.load %arg15[%c0_78, %c0_79] : memref<16x128xf32, #tpu.memory_space<vmem>>, vector<16x128xf32>
      tpu.vector_store %arg15[%c0_78, %c0_79], %202 {strides = array<i32>} : memref<16x128xf32, #tpu.memory_space<vmem>>, vector<16x128xf32>,
    } else {
    }
    return
  }
  func.func @transform_0(%arg0: i32) -> (i32, i32) {
    %c0_i32 = arith.constant 0 : i32
    %c0_i32_0 = arith.constant 0 : i32
    %c0_i32_1 = arith.constant 0 : i32
    return %c0_i32, %c0_i32_0 : i32, i32
  }
  func.func @transform_1(%arg0: i32) -> (i32, i32) {
    %c0_i32 = arith.constant 0 : i32
    %c0_i32_0 = arith.constant 0 : i32
    %c0_i32_1 = arith.constant 0 : i32
    return %c0_i32, %c0_i32_0 : i32, i32
  }
  func.func @transform_2(%arg0: i32) -> (i32, i32, i32) {
    %c0_i32 = arith.constant 0 : i32
    %c0_i32_0 = arith.constant 0 : i32
    %c0_i32_1 = arith.constant 0 : i32
    return %arg0, %c0_i32, %c0_i32_0 : i32, i32, i32
  }
  func.func @transform_3(%arg0: i32) -> (i32, i32, i32) {
    %c0_i32 = arith.constant 0 : i32
    %c0_i32_0 = arith.constant 0 : i32
    %c0_i32_1 = arith.constant 0 : i32
    return %arg0, %c0_i32, %c0_i32_0 : i32, i32, i32
  }
  func.func @transform_4(%arg0: i32) -> (i32, i32, i32) {
    %c0_i32 = arith.constant 0 : i32
    %c0_i32_0 = arith.constant 0 : i32
    %c0_i32_1 = arith.constant 0 : i32
    return %arg0, %c0_i32, %c0_i32_0 : i32, i32, i32
  }
  func.func @transform_5(%arg0: i32) -> (i32, i32, i32) {
    %c0_i32 = arith.constant 0 : i32
    %c0_i32_0 = arith.constant 0 : i32
    %c0_i32_1 = arith.constant 0 : i32
    return %arg0, %c0_i32, %c0_i32_0 : i32, i32, i32
  }
  func.func @transform_6(%arg0: i32) -> (i32, i32, i32) {
    %c0_i32 = arith.constant 0 : i32
    %c0_i32_0 = arith.constant 0 : i32
    %c0_i32_1 = arith.constant 0 : i32
    return %arg0, %c0_i32, %c0_i32_0 : i32, i32, i32
  }
  func.func @transform_7(%arg0: i32) -> (i32, i32, i32) {
    %c0_i32 = arith.constant 0 : i32
    %c0_i32_0 = arith.constant 0 : i32
    %c0_i32_1 = arith.constant 0 : i32
    return %arg0, %c0_i32, %c0_i32_0 : i32, i32, i32
  }
  func.func @transform_8(%arg0: i32) -> (i32, i32, i32) {
    %c0_i32 = arith.constant 0 : i32
    %c0_i32_0 = arith.constant 0 : i32
    %c0_i32_1 = arith.constant 0 : i32
    return %arg0, %c0_i32, %c0_i32_0 : i32, i32, i32
  }
  func.func @transform_9(%arg0: i32) -> (i32, i32, i32) {
    %c0_i32 = arith.constant 0 : i32
    %c0_i32_0 = arith.constant 0 : i32
    %c0_i32_1 = arith.constant 0 : i32
    return %arg0, %c0_i32, %c0_i32_0 : i32, i32, i32
  }
  func.func @transform_10(%arg0: i32) -> (i32, i32, i32) {
    %c0_i32 = arith.constant 0 : i32
    %c0_i32_0 = arith.constant 0 : i32
    %c0_i32_1 = arith.constant 0 : i32
    return %arg0, %c0_i32, %c0_i32_0 : i32, i32, i32
  }
  func.func @transform_11(%arg0: i32) -> (i32, i32, i32) {
    %c0_i32 = arith.constant 0 : i32
    %c0_i32_0 = arith.constant 0 : i32
    %c0_i32_1 = arith.constant 0 : i32
    return %arg0, %c0_i32, %c0_i32_0 : i32, i32, i32
  }
  func.func @transform_12(%arg0: i32) -> (i32, i32, i32) {
    %c0_i32 = arith.constant 0 : i32
    %c0_i32_0 = arith.constant 0 : i32
    %c0_i32_1 = arith.constant 0 : i32
    return %arg0, %c0_i32, %c0_i32_0 : i32, i32, i32
  }
  func.func @transform_13(%arg0: i32) -> (i32, i32, i32) {
    %c0_i32 = arith.constant 0 : i32
    %c0_i32_0 = arith.constant 0 : i32
    %c0_i32_1 = arith.constant 0 : i32
    return %arg0, %c0_i32, %c0_i32_0 : i32, i32, i32
  }
  func.func @transform_14(%arg0: i32) -> (i32, i32) {
    %c0_i32 = arith.constant 0 : i32
    %c0_i32_0 = arith.constant 0 : i32
    %c0_i32_1 = arith.constant 0 : i32
    return %c0_i32, %c0_i32_0 : i32, i32
  }
}

</mosaic_0001>

<llo_original>
// kernel: ner_model_forward.1
$region0: #{ner_model_forward.1}
  #allocation0 [shape = 'u32[]', space=smem, size = 0x4, offset = 0x4, fixed_abs, tag = 'smem constant byte address 0x4 - core index']
  #allocation1 [shape = 'u32[144,128]{1,0:T(1,128)}', space=vmem, size = 0x12000, scoped, tag = 'internal scratch']
  #allocation2 [shape = 'f32[16,128]{1,0:T(8,128)}', space=vmem, size = 0x2000, scoped, tag = 'scratch operand']
  %s0 = inlined_call_operand.vmem [shape: f32[16,128], index: 0, kind: input, shape index: {}]
  %s1 = inlined_call_operand.vmem [shape: f32[2,8], index: 1, kind: input, shape index: {}]
  %s2 = inlined_call_operand.hbm [shape: bf16[2,128,384], index: 2, kind: input, shape index: {}]
  %s3 = inlined_call_operand.vmem [shape: f32[2,1,384], index: 3, kind: input, shape index: {}]
  %s4 = inlined_call_operand.vmem [shape: bf16[2,128,128], index: 4, kind: input, shape index: {}]
  %s5 = inlined_call_operand.vmem [shape: f32[2,1,128], index: 5, kind: input, shape index: {}]
  %s6 = inlined_call_operand.vmem [shape: f32[2,1,128], index: 6, kind: input, shape index: {}]
  %s7 = inlined_call_operand.vmem [shape: f32[2,1,128], index: 7, kind: input, shape index: {}]
  %s8 = inlined_call_operand.hbm [shape: bf16[2,128,512], index: 8, kind: input, shape index: {}]
  %s9 = inlined_call_operand.vmem [shape: f32[2,1,512], index: 9, kind: input, shape index: {}]
  %s10 = inlined_call_operand.hbm [shape: bf16[2,512,128], index: 10, kind: input, shape index: {}]
  %s11 = inlined_call_operand.vmem [shape: f32[2,1,128], index: 11, kind: input, shape index: {}]
  %s12 = inlined_call_operand.vmem [shape: f32[2,1,128], index: 12, kind: input, shape index: {}]
  %s13 = inlined_call_operand.vmem [shape: f32[2,1,128], index: 13, kind: input, shape index: {}]
  %s14 = inlined_call_operand.hbm [shape: f32[16,128], index: 14, kind: output, shape index: {}]
  %s15 = sld [smem:[#allocation0]]
  $region109: #{ner_model_forward.1} parent=0
    _
  %s17 = ssub.s32 1, %s15
  %s18 = scalar_select 0, %s17, %s15
  $region1: #{ner_model_forward.1} parent=0
    #allocation3 [shape = 'u8[196608]{0}', space=vmem, size = 0x30000, scoped, tag = 'input window, operand 2']
    #allocation4 [shape = 's32[2]{0}', space=sflag, size = 0x8, scoped, tag = 'scoped memory for ner_model_forward.1']
    #allocation5 [shape = 's32[2]{0}', space=sflag, size = 0x8, scoped, tag = 'scoped memory for ner_model_forward.1']
    #allocation6 [shape = 'u8[262144]{0}', space=vmem, size = 0x40000, scoped, tag = 'input window, operand 8']
    #allocation7 [shape = 's32[2]{0}', space=sflag, size = 0x8, scoped, tag = 'scoped memory for ner_model_forward.1']
    #allocation8 [shape = 'u8[262144]{0}', space=vmem, size = 0x40000, scoped, tag = 'input window, operand 10']
    #allocation9 [shape = 'u8[8192]{0}', space=vmem, size = 0x2000, scoped, tag = 'output window, operand 0, single buffered']
    %19 = vsyncpa [#allocation4], 0
    %s20 = scalar_lea.sflag [#allocation4], 1
    %21 = vsyncpa %s20, 0
    %22 = vsyncpa [#allocation7], 0
    %s23 = scalar_lea.sflag [#allocation7], 1
    %24 = vsyncpa %s23, 0
    %25 = vsyncpa [#allocation5], 0
    loop: start=0, step=1, limit=4
    $region2: #{ner_model_forward.1} parent=1 // loop_pre_header
      _
    $region3: #{ner_model_forward.1} parent=1 // loop_header
      %s27 = sphi 0, %s31
      %p28 = scmp.ge.s32.totalorder %s27, 4
      %s35 = sphi 0, %s35
      %s37 = sphi 0, %s35
      %s38 = sphi 0, %s37
      %s52 = sphi 0, %s38
      %s56 = sphi 0, %s56
      %s58 = sphi 0, %s56
      %s59 = sphi 0, %s58
      %s73 = sphi 0, %s59
      %s79 = sphi 0, %s81
      %s82 = sphi 0, %s79
      %s83 = sphi 0, %s82
      %s99 = sphi 0, %s83
      %s105 = sphi 0, %s107
      %s108 = sphi 0, %s105
      %s109 = sphi 0, %s108
      %s125 = sphi 0, %s109
      %s131 = sphi 0, %s133
      %s134 = sphi 0, %s131
      %s135 = sphi 0, %s134
      %s151 = sphi 0, %s135
      %s157 = sphi 0, %s159
      %s160 = sphi 0, %s157
      %s161 = sphi 0, %s160
      %s177 = sphi 0, %s161
      %s183 = sphi 0, %s185
      %s186 = sphi 0, %s183
      %s187 = sphi 0, %s186
      %s203 = sphi 0, %s187
      %s209 = sphi 0, %s211
      %s212 = sphi 0, %s209
      %s213 = sphi 0, %s212
      %s229 = sphi 0, %s213
      %s235 = sphi 0, %s237
      %s238 = sphi 0, %s235
      %s239 = sphi 0, %s238
      %s255 = sphi 0, %s239
      %s261 = sphi 0, %s263
      %s264 = sphi 0, %s261
      %s265 = sphi 0, %s264
      %s281 = sphi 0, %s265
      %s287 = sphi 0, %s289
      %s290 = sphi 0, %s287
      %s291 = sphi 0, %s290
      %s307 = sphi 0, %s291
      %s313 = sphi 0, %s315
      %s316 = sphi 0, %s313
      %s317 = sphi 0, %s316
      %s333 = sphi 0, %s317
      %s339 = sphi 0, %s341
      %s342 = sphi 0, %s339
      %s343 = sphi 0, %s342
      %s359 = sphi 0, %s343
      %s365 = sphi 0, %s367
      %s368 = sphi 0, %s365
      %s369 = sphi 0, %s368
      %s385 = sphi 0, %s369
      %s389 = sphi 0, %s389
      %s391 = sphi 0, %s389
      %s392 = sphi 0, %s391
      %s406 = sphi 0, %s392
    $region4: #{ner_model_forward.1} parent=1 // loop_header_branch
      %30 = sbr.rel (%p28) target = $region8
    $region5: #{ner_model_forward.1} parent=1 // loop_body
      %s32 = ssub.s32 %s27, 1
      %s33 = ssub.s32 %s27, 2
      %s34 = sadd.s32 %s27, 1
      %s36 = sadd.s32 %s35, 1
      %p39 = scmp.eq.s32.totalorder %s27, 1
      %p40 = scmp.ne.s32.totalorder %s35, %s37
      %p41 = scmp.eq.s32.totalorder %s27, 0
      %p42 = por %p40, %p41
      %p43 = scmp.ne.s32.totalorder %s35, %s37
      %p44 = scmp.eq.s32.totalorder %s32, 1
      %p45 = por %p43, %p44
      %p46 = scmp.ne.s32.totalorder %s37, %s38
      %p47 = scmp.eq.s32.totalorder %s32, 0
      %p48 = por %p46, %p47
      %p49 = scmp.ne.s32.totalorder %s37, %s38
      %p50 = scmp.eq.s32.totalorder %s33, 1
      %p51 = por %p49, %p50
      %p53 = scmp.ne.s32.totalorder %s38, %s52
      %p54 = scmp.eq.s32.totalorder %s33, 0
      %p55 = por %p53, %p54
      %s57 = sadd.s32 %s56, 1
      %p60 = scmp.eq.s32.totalorder %s27, 1
      %p61 = scmp.ne.s32.totalorder %s56, %s58
      %p62 = scmp.eq.s32.totalorder %s27, 0
      %p63 = por %p61, %p62
      %p64 = scmp.ne.s32.totalorder %s56, %s58
      %p65 = scmp.eq.s32.totalorder %s32, 1
      %p66 = por %p64, %p65
      %p67 = scmp.ne.s32.totalorder %s58, %s59
      %p68 = scmp.eq.s32.totalorder %s32, 0
      %p69 = por %p67, %p68
      %p70 = scmp.ne.s32.totalorder %s58, %s59
      %p71 = scmp.eq.s32.totalorder %s33, 1
      %p72 = por %p70, %p71
      %p74 = scmp.ne.s32.totalorder %s59, %s73
      %p75 = scmp.eq.s32.totalorder %s33, 0
      %p76 = por %p74, %p75
      %s77 = ssub.s32 %s27, %s34
      %p78 = scmp.eq.s32.totalorder %s77, 0
      %s80 = sadd.s32 %s79, 1
      %s81 = scalar_select %p78, %s79, %s80
      %p84 = pneg %p78
      %p85 = scmp.eq.s32.totalorder %s27, 1
      %p86 = por %p84, %p85
      %p87 = scmp.ne.s32.totalorder %s79, %s82
      %p88 = scmp.eq.s32.totalorder %s27, 0
      %p89 = por %p87, %p88
      %p90 = scmp.ne.s32.totalorder %s79, %s82
      %p91 = scmp.eq.s32.totalorder %s32, 1
      %p92 = por %p90, %p91
      %p93 = scmp.ne.s32.totalorder %s82, %s83
      %p94 = scmp.eq.s32.totalorder %s32, 0
      %p95 = por %p93, %p94
      %p96 = scmp.ne.s32.totalorder %s82, %s83
      %p97 = scmp.eq.s32.totalorder %s33, 1
      %p98 = por %p96, %p97
      %p100 = scmp.ne.s32.totalorder %s83, %s99
      %p101 = scmp.eq.s32.totalorder %s33, 0
      %p102 = por %p100, %p101
      %s103 = ssub.s32 %s27, %s34
      %p104 = scmp.eq.s32.totalorder %s103, 0
      %s106 = sadd.s32 %s105, 1
      %s107 = scalar_select %p104, %s105, %s106
      %p110 = pneg %p104
      %p111 = scmp.eq.s32.totalorder %s27, 1
      %p112 = por %p110, %p111
      %p113 = scmp.ne.s32.totalorder %s105, %s108
      %p114 = scmp.eq.s32.totalorder %s27, 0
      %p115 = por %p113, %p114
      %p116 = scmp.ne.s32.totalorder %s105, %s108
      %p117 = scmp.eq.s32.totalorder %s32, 1
      %p118 = por %p116, %p117
      %p119 = scmp.ne.s32.totalorder %s108, %s109
      %p120 = scmp.eq.s32.totalorder %s32, 0
      %p121 = por %p119, %p120
      %p122 = scmp.ne.s32.totalorder %s108, %s109
      %p123 = scmp.eq.s32.totalorder %s33, 1
      %p124 = por %p122, %p123
      %p126 = scmp.ne.s32.totalorder %s109, %s125
      %p127 = scmp.eq.s32.totalorder %s33, 0
      %p128 = por %p126, %p127
      %s129 = ssub.s32 %s27, %s34
      %p130 = scmp.eq.s32.totalorder %s129, 0
      %s132 = sadd.s32 %s131, 1
      %s133 = scalar_select %p130, %s131, %s132
      %p136 = pneg %p130
      %p137 = scmp.eq.s32.totalorder %s27, 1
      %p138 = por %p136, %p137
      %p139 = scmp.ne.s32.totalorder %s131, %s134
      %p140 = scmp.eq.s32.totalorder %s27, 0
      %p141 = por %p139, %p140
      %p142 = scmp.ne.s32.totalorder %s131, %s134
      %p143 = scmp.eq.s32.totalorder %s32, 1
      %p144 = por %p142, %p143
      %p145 = scmp.ne.s32.totalorder %s134, %s135
      %p146 = scmp.eq.s32.totalorder %s32, 0
      %p147 = por %p145, %p146
      %p148 = scmp.ne.s32.totalorder %s134, %s135
      %p149 = scmp.eq.s32.totalorder %s33, 1
      %p150 = por %p148, %p149
      %p152 = scmp.ne.s32.totalorder %s135, %s151
      %p153 = scmp.eq.s32.totalorder %s33, 0
      %p154 = por %p152, %p153
      %s155 = ssub.s32 %s27, %s34
      %p156 = scmp.eq.s32.totalorder %s155, 0
      %s158 = sadd.s32 %s157, 1
      %s159 = scalar_select %p156, %s157, %s158
      %p162 = pneg %p156
      %p163 = scmp.eq.s32.totalorder %s27, 1
      %p164 = por %p162, %p163
      %p165 = scmp.ne.s32.totalorder %s157, %s160
      %p166 = scmp.eq.s32.totalorder %s27, 0
      %p167 = por %p165, %p166
      %p168 = scmp.ne.s32.totalorder %s157, %s160
      %p169 = scmp.eq.s32.totalorder %s32, 1
      %p170 = por %p168, %p169
      %p171 = scmp.ne.s32.totalorder %s160, %s161
      %p172 = scmp.eq.s32.totalorder %s32, 0
      %p173 = por %p171, %p172
      %p174 = scmp.ne.s32.totalorder %s160, %s161
      %p175 = scmp.eq.s32.totalorder %s33, 1
      %p176 = por %p174, %p175
      %p178 = scmp.ne.s32.totalorder %s161, %s177
      %p179 = scmp.eq.s32.totalorder %s33, 0
      %p180 = por %p178, %p179
      %s181 = ssub.s32 %s27, %s34
      %p182 = scmp.eq.s32.totalorder %s181, 0
      %s184 = sadd.s32 %s183, 1
      %s185 = scalar_select %p182, %s183, %s184
      %p188 = pneg %p182
      %p189 = scmp.eq.s32.totalorder %s27, 1
      %p190 = por %p188, %p189
      %p191 = scmp.ne.s32.totalorder %s183, %s186
      %p192 = scmp.eq.s32.totalorder %s27, 0
      %p193 = por %p191, %p192
      %p194 = scmp.ne.s32.totalorder %s183, %s186
      %p195 = scmp.eq.s32.totalorder %s32, 1
      %p196 = por %p194, %p195
      %p197 = scmp.ne.s32.totalorder %s186, %s187
      %p198 = scmp.eq.s32.totalorder %s32, 0
      %p199 = por %p197, %p198
      %p200 = scmp.ne.s32.totalorder %s186, %s187
      %p201 = scmp.eq.s32.totalorder %s33, 1
      %p202 = por %p200, %p201
      %p204 = scmp.ne.s32.totalorder %s187, %s203
      %p205 = scmp.eq.s32.totalorder %s33, 0
      %p206 = por %p204, %p205
      %s207 = ssub.s32 %s27, %s34
      %p208 = scmp.eq.s32.totalorder %s207, 0
      %s210 = sadd.s32 %s209, 1
      %s211 = scalar_select %p208, %s209, %s210
      %p214 = pneg %p208
      %p215 = scmp.eq.s32.totalorder %s27, 1
      %p216 = por %p214, %p215
      %p217 = scmp.ne.s32.totalorder %s209, %s212
      %p218 = scmp.eq.s32.totalorder %s27, 0
      %p219 = por %p217, %p218
      %p220 = scmp.ne.s32.totalorder %s209, %s212
      %p221 = scmp.eq.s32.totalorder %s32, 1
      %p222 = por %p220, %p221
      %p223 = scmp.ne.s32.totalorder %s212, %s213
      %p224 = scmp.eq.s32.totalorder %s32, 0
      %p225 = por %p223, %p224
      %p226 = scmp.ne.s32.totalorder %s212, %s213
      %p227 = scmp.eq.s32.totalorder %s33, 1
      %p228 = por %p226, %p227
      %p230 = scmp.ne.s32.totalorder %s213, %s229
      %p231 = scmp.eq.s32.totalorder %s33, 0
      %p232 = por %p230, %p231
      %s233 = ssub.s32 %s27, %s34
      %p234 = scmp.eq.s32.totalorder %s233, 0
      %s236 = sadd.s32 %s235, 1
      %s237 = scalar_select %p234, %s235, %s236
      %p240 = pneg %p234
      %p241 = scmp.eq.s32.totalorder %s27, 1
      %p242 = por %p240, %p241
      %p243 = scmp.ne.s32.totalorder %s235, %s238
      %p244 = scmp.eq.s32.totalorder %s27, 0
      %p245 = por %p243, %p244
      %p246 = scmp.ne.s32.totalorder %s235, %s238
      %p247 = scmp.eq.s32.totalorder %s32, 1
      %p248 = por %p246, %p247
      %p249 = scmp.ne.s32.totalorder %s238, %s239
      %p250 = scmp.eq.s32.totalorder %s32, 0
      %p251 = por %p249, %p250
      %p252 = scmp.ne.s32.totalorder %s238, %s239
      %p253 = scmp.eq.s32.totalorder %s33, 1
      %p254 = por %p252, %p253
      %p256 = scmp.ne.s32.totalorder %s239, %s255
      %p257 = scmp.eq.s32.totalorder %s33, 0
      %p258 = por %p256, %p257
      %s259 = ssub.s32 %s27, %s34
      %p260 = scmp.eq.s32.totalorder %s259, 0
      %s262 = sadd.s32 %s261, 1
      %s263 = scalar_select %p260, %s261, %s262
      %p266 = pneg %p260
      %p267 = scmp.eq.s32.totalorder %s27, 1
      %p268 = por %p266, %p267
      %p269 = scmp.ne.s32.totalorder %s261, %s264
      %p270 = scmp.eq.s32.totalorder %s27, 0
      %p271 = por %p269, %p270
      %p272 = scmp.ne.s32.totalorder %s261, %s264
      %p273 = scmp.eq.s32.totalorder %s32, 1
      %p274 = por %p272, %p273
      %p275 = scmp.ne.s32.totalorder %s264, %s265
      %p276 = scmp.eq.s32.totalorder %s32, 0
      %p277 = por %p275, %p276
      %p278 = scmp.ne.s32.totalorder %s264, %s265
      %p279 = scmp.eq.s32.totalorder %s33, 1
      %p280 = por %p278, %p279
      %p282 = scmp.ne.s32.totalorder %s265, %s281
      %p283 = scmp.eq.s32.totalorder %s33, 0
      %p284 = por %p282, %p283
      %s285 = ssub.s32 %s27, %s34
      %p286 = scmp.eq.s32.totalorder %s285, 0
      %s288 = sadd.s32 %s287, 1
      %s289 = scalar_select %p286, %s287, %s288
      %p292 = pneg %p286
      %p293 = scmp.eq.s32.totalorder %s27, 1
      %p294 = por %p292, %p293
      %p295 = scmp.ne.s32.totalorder %s287, %s290
      %p296 = scmp.eq.s32.totalorder %s27, 0
      %p297 = por %p295, %p296
      %p298 = scmp.ne.s32.totalorder %s287, %s290
      %p299 = scmp.eq.s32.totalorder %s32, 1
      %p300 = por %p298, %p299
      %p301 = scmp.ne.s32.totalorder %s290, %s291
      %p302 = scmp.eq.s32.totalorder %s32, 0
      %p303 = por %p301, %p302
      %p304 = scmp.ne.s32.totalorder %s290, %s291
      %p305 = scmp.eq.s32.totalorder %s33, 1
      %p306 = por %p304, %p305
      %p308 = scmp.ne.s32.totalorder %s291, %s307
      %p309 = scmp.eq.s32.totalorder %s33, 0
      %p310 = por %p308, %p309
      %s311 = ssub.s32 %s27, %s34
      %p312 = scmp.eq.s32.totalorder %s311, 0
      %s314 = sadd.s32 %s313, 1
      %s315 = scalar_select %p312, %s313, %s314
      %p318 = pneg %p312
      %p319 = scmp.eq.s32.totalorder %s27, 1
      %p320 = por %p318, %p319
      %p321 = scmp.ne.s32.totalorder %s313, %s316
      %p322 = scmp.eq.s32.totalorder %s27, 0
      %p323 = por %p321, %p322
      %p324 = scmp.ne.s32.totalorder %s313, %s316
      %p325 = scmp.eq.s32.totalorder %s32, 1
      %p326 = por %p324, %p325
      %p327 = scmp.ne.s32.totalorder %s316, %s317
      %p328 = scmp.eq.s32.totalorder %s32, 0
      %p329 = por %p327, %p328
      %p330 = scmp.ne.s32.totalorder %s316, %s317
      %p331 = scmp.eq.s32.totalorder %s33, 1
      %p332 = por %p330, %p331
      %p334 = scmp.ne.s32.totalorder %s317, %s333
      %p335 = scmp.eq.s32.totalorder %s33, 0
      %p336 = por %p334, %p335
      %s337 = ssub.s32 %s27, %s34
      %p338 = scmp.eq.s32.totalorder %s337, 0
      %s340 = sadd.s32 %s339, 1
      %s341 = scalar_select %p338, %s339, %s340
      %p344 = pneg %p338
      %p345 = scmp.eq.s32.totalorder %s27, 1
      %p346 = por %p344, %p345
      %p347 = scmp.ne.s32.totalorder %s339, %s342
      %p348 = scmp.eq.s32.totalorder %s27, 0
      %p349 = por %p347, %p348
      %p350 = scmp.ne.s32.totalorder %s339, %s342
      %p351 = scmp.eq.s32.totalorder %s32, 1
      %p352 = por %p350, %p351
      %p353 = scmp.ne.s32.totalorder %s342, %s343
      %p354 = scmp.eq.s32.totalorder %s32, 0
      %p355 = por %p353, %p354
      %p356 = scmp.ne.s32.totalorder %s342, %s343
      %p357 = scmp.eq.s32.totalorder %s33, 1
      %p358 = por %p356, %p357
      %p360 = scmp.ne.s32.totalorder %s343, %s359
      %p361 = scmp.eq.s32.totalorder %s33, 0
      %p362 = por %p360, %p361
      %s363 = ssub.s32 %s27, %s34
      %p364 = scmp.eq.s32.totalorder %s363, 0
      %s366 = sadd.s32 %s365, 1
      %s367 = scalar_select %p364, %s365, %s366
      %p370 = pneg %p364
      %p371 = scmp.eq.s32.totalorder %s27, 1
      %p372 = por %p370, %p371
      %p373 = scmp.ne.s32.totalorder %s365, %s368
      %p374 = scmp.eq.s32.totalorder %s27, 0
      %p375 = por %p373, %p374
      %p376 = scmp.ne.s32.totalorder %s365, %s368
      %p377 = scmp.eq.s32.totalorder %s32, 1
      %p378 = por %p376, %p377
      %p379 = scmp.ne.s32.totalorder %s368, %s369
      %p380 = scmp.eq.s32.totalorder %s32, 0
      %p381 = por %p379, %p380
      %p382 = scmp.ne.s32.totalorder %s368, %s369
      %p383 = scmp.eq.s32.totalorder %s33, 1
      %p384 = por %p382, %p383
      %p386 = scmp.ne.s32.totalorder %s369, %s385
      %p387 = scmp.eq.s32.totalorder %s33, 0
      %p388 = por %p386, %p387
      %s390 = sadd.s32 %s389, 1
      %p393 = scmp.eq.s32.totalorder %s27, 1
      %p394 = scmp.ne.s32.totalorder %s389, %s391
      %p395 = scmp.eq.s32.totalorder %s27, 0
      %p396 = por %p394, %p395
      %p397 = scmp.ne.s32.totalorder %s389, %s391
      %p398 = scmp.eq.s32.totalorder %s32, 1
      %p399 = por %p397, %p398
      %p400 = scmp.ne.s32.totalorder %s391, %s392
      %p401 = scmp.eq.s32.totalorder %s32, 0
      %p402 = por %p400, %p401
      %p403 = scmp.ne.s32.totalorder %s391, %s392
      %p404 = scmp.eq.s32.totalorder %s33, 1
      %p405 = por %p403, %p404
      %p407 = scmp.ne.s32.totalorder %s392, %s406
      %p408 = scmp.eq.s32.totalorder %s33, 0
      %p409 = por %p407, %p408
      %p410 = scmp.le.s32.totalorder 1, %s27
      %p411 = scmp.lt.s32.totalorder %s27, 3
      %p412 = pnand %p410, %p411
      %p413 = pneg %p412
      // Predicated region
      $region9: #{ner_model_forward.1} parent=5 // pred_check
        _
      $region10: #{ner_model_forward.1} parent=5 // pred_check_branch
        %415 = sbr.rel (%p412) target = $region12
      $region11: #{ner_model_forward.1} parent=5 // pred_region
        %s416 = ssub.s32 %s27, 1
        // Predicated region
        $region13: #{ner_model_forward.1} parent=11 // pred_check
          %p417 = pneg %p48
        $region14: #{ner_model_forward.1} parent=11 // pred_check_branch
          %419 = sbr.rel (%p417) target = $region16
        $region15: #{ner_model_forward.1} parent=11 // pred_region
          _
        $region16: #{ner_model_forward.1} parent=11 // pred_fallthru
          _
        // Predicated region
        $region17: #{ner_model_forward.1} parent=11 // pred_check
          %p420 = pneg %p69
        $region18: #{ner_model_forward.1} parent=11 // pred_check_branch
          %422 = sbr.rel (%p420) target = $region20
        $region19: #{ner_model_forward.1} parent=11 // pred_region
          _
        $region20: #{ner_model_forward.1} parent=11 // pred_fallthru
          _
      $region12: #{ner_model_forward.1} parent=5 // pred_fallthru
        _
      %p423 = scmp.lt.s32.totalorder %s27, 2
      // Predicated region
      $region21: #{ner_model_forward.1} parent=5 // pred_check
        %p424 = pneg %p423
      $region22: #{ner_model_forward.1} parent=5 // pred_check_branch
        %426 = sbr.rel (%p424) target = $region24
      $region23: #{ner_model_forward.1} parent=5 // pred_region
        // Predicated region
        $region25: #{ner_model_forward.1} parent=23 // pred_check
          %p427 = pneg %p89
        $region26: #{ner_model_forward.1} parent=23 // pred_check_branch
          %429 = sbr.rel (%p427) target = $region28
        $region27: #{ner_model_forward.1} parent=23 // pred_region
          %s430 = sand.u32 %s79, 1
          %s431 = scalar_lea.sflag [#allocation4], %s430
          %s432 = sand.u32 %s79, 1
          %s433 = smul.addr %s432, 192
          %s434 = scalar_lea.vmem [#allocation3], %s433
          %s436 = ssub.s32 3072, 3072
          %437 = vsyncadd %s431, %s436
          %s438 = smul.addr %s27, 48
          %s439 = smul.addr %s438, 64
          %s440 = scalar_lea.hbm %s2, %s439
          %s441 = sshll.u32 %s434, 4
          %s442 = int_to_ptr.vmem [resolvable:$true] %s441
          %447 = dma.hbm_to_vmem [thread:$0]  %s440, 3072, %s442, %s431, 192, 192, 12
        $region28: #{ner_model_forward.1} parent=23 // pred_fallthru
          _
        // Predicated region
        $region29: #{ner_model_forward.1} parent=23 // pred_check
          %p448 = pneg %p115
        $region30: #{ner_model_forward.1} parent=23 // pred_check_branch
          %450 = sbr.rel (%p448) target = $region32
        $region31: #{ner_model_forward.1} parent=23 // pred_region
          %p451 = scmp.lt.s32.totalorder %s27, 1
          %s452 = scalar_select %p451, %s27, 1
          %s453 = smul.addr %s452, 3
          %s454 = scalar_lea.vmem %s3, %s453
        $region32: #{ner_model_forward.1} parent=23 // pred_fallthru
          _
        // Predicated region
        $region33: #{ner_model_forward.1} parent=23 // pred_check
          %p455 = pneg %p141
        $region34: #{ner_model_forward.1} parent=23 // pred_check_branch
          %457 = sbr.rel (%p455) target = $region36
        $region35: #{ner_model_forward.1} parent=23 // pred_region
          %p458 = scmp.lt.s32.totalorder %s27, 1
          %s459 = scalar_select %p458, %s27, 1
          %s460 = smul.addr %s459, 16
          %s461 = smul.addr %s460, 4
          %s462 = scalar_lea.vmem %s4, %s461
        $region36: #{ner_model_forward.1} parent=23 // pred_fallthru
          _
        // Predicated region
        $region37: #{ner_model_forward.1} parent=23 // pred_check
          %p463 = pneg %p167
        $region38: #{ner_model_forward.1} parent=23 // pred_check_branch
          %465 = sbr.rel (%p463) target = $region40
        $region39: #{ner_model_forward.1} parent=23 // pred_region
          %p466 = scmp.lt.s32.totalorder %s27, 1
          %s467 = scalar_select %p466, %s27, 1
          %s468 = scalar_lea.vmem %s5, %s467
        $region40: #{ner_model_forward.1} parent=23 // pred_fallthru
          _
        // Predicated region
        $region41: #{ner_model_forward.1} parent=23 // pred_check
          %p469 = pneg %p193
        $region42: #{ner_model_forward.1} parent=23 // pred_check_branch
          %471 = sbr.rel (%p469) target = $region44
        $region43: #{ner_model_forward.1} parent=23 // pred_region
          %p472 = scmp.lt.s32.totalorder %s27, 1
          %s473 = scalar_select %p472, %s27, 1
          %s474 = scalar_lea.vmem %s6, %s473
        $region44: #{ner_model_forward.1} parent=23 // pred_fallthru
          _
        // Predicated region
        $region45: #{ner_model_forward.1} parent=23 // pred_check
          %p475 = pneg %p219
        $region46: #{ner_model_forward.1} parent=23 // pred_check_branch
          %477 = sbr.rel (%p475) target = $region48
        $region47: #{ner_model_forward.1} parent=23 // pred_region
          %p478 = scmp.lt.s32.totalorder %s27, 1
          %s479 = scalar_select %p478, %s27, 1
          %s480 = scalar_lea.vmem %s7, %s479
        $region48: #{ner_model_forward.1} parent=23 // pred_fallthru
          _
        // Predicated region
        $region49: #{ner_model_forward.1} parent=23 // pred_check
          %p481 = pneg %p245
        $region50: #{ner_model_forward.1} parent=23 // pred_check_branch
          %483 = sbr.rel (%p481) target = $region52
        $region51: #{ner_model_forward.1} parent=23 // pred_region
          %s484 = sand.u32 %s27, 1
          %s485 = scalar_lea.sflag [#allocation7], %s484
          %s486 = sand.u32 %s235, 1
          %s487 = smul.addr %s486, 256
          %s488 = scalar_lea.vmem [#allocation6], %s487
          %s490 = ssub.s32 4096, 4096
          %491 = vsyncadd %s485, %s490
          %s492 = smul.addr %s27, 64
          %s493 = smul.addr %s492, 64
          %s494 = scalar_lea.hbm %s8, %s493
          %s495 = sshll.u32 %s488, 4
          %s496 = int_to_ptr.vmem [resolvable:$true] %s495
          %501 = dma.hbm_to_vmem [thread:$0]  %s494, 4096, %s496, %s485, 256, 256, 16
        $region52: #{ner_model_forward.1} parent=23 // pred_fallthru
          _
        // Predicated region
        $region53: #{ner_model_forward.1} parent=23 // pred_check
          %p502 = pneg %p271
        $region54: #{ner_model_forward.1} parent=23 // pred_check_branch
          %504 = sbr.rel (%p502) target = $region56
        $region55: #{ner_model_forward.1} parent=23 // pred_region
          %p505 = scmp.lt.s32.totalorder %s27, 1
          %s506 = scalar_select %p505, %s27, 1
          %s507 = smul.addr %s506, 4
          %s508 = scalar_lea.vmem %s9, %s507
        $region56: #{ner_model_forward.1} parent=23 // pred_fallthru
          _
        // Predicated region
        $region57: #{ner_model_forward.1} parent=23 // pred_check
          %p509 = pneg %p297
        $region58: #{ner_model_forward.1} parent=23 // pred_check_branch
          %511 = sbr.rel (%p509) target = $region60
        $region59: #{ner_model_forward.1} parent=23 // pred_region
          %s512 = sand.u32 %s27, 1
          %s513 = scalar_lea.sflag [#allocation7], %s512
          %s514 = sand.u32 %s287, 1
          %s515 = smul.addr %s514, 256
          %s516 = scalar_lea.vmem [#allocation8], %s515
          %s518 = ssub.s32 4096, 4096
          %519 = vsyncadd %s513, %s518
          %s520 = smul.addr %s27, 64
          %s521 = smul.addr %s520, 64
          %s522 = scalar_lea.hbm %s10, %s521
          %s523 = sshll.u32 %s516, 4
          %s524 = int_to_ptr.vmem [resolvable:$true] %s523
          %529 = dma.hbm_to_vmem [thread:$0]  %s522, 4096, %s524, %s513, 64, 64, 4
        $region60: #{ner_model_forward.1} parent=23 // pred_fallthru
          _
        // Predicated region
        $region61: #{ner_model_forward.1} parent=23 // pred_check
          %p530 = pneg %p323
        $region62: #{ner_model_forward.1} parent=23 // pred_check_branch
          %532 = sbr.rel (%p530) target = $region64
        $region63: #{ner_model_forward.1} parent=23 // pred_region
          %p533 = scmp.lt.s32.totalorder %s27, 1
          %s534 = scalar_select %p533, %s27, 1
          %s535 = scalar_lea.vmem %s11, %s534
        $region64: #{ner_model_forward.1} parent=23 // pred_fallthru
          _
        // Predicated region
        $region65: #{ner_model_forward.1} parent=23 // pred_check
          %p536 = pneg %p349
        $region66: #{ner_model_forward.1} parent=23 // pred_check_branch
          %538 = sbr.rel (%p536) target = $region68
        $region67: #{ner_model_forward.1} parent=23 // pred_region
          %p539 = scmp.lt.s32.totalorder %s27, 1
          %s540 = scalar_select %p539, %s27, 1
          %s541 = scalar_lea.vmem %s12, %s540
        $region68: #{ner_model_forward.1} parent=23 // pred_fallthru
          _
        // Predicated region
        $region69: #{ner_model_forward.1} parent=23 // pred_check
          %p542 = pneg %p375
        $region70: #{ner_model_forward.1} parent=23 // pred_check_branch
          %544 = sbr.rel (%p542) target = $region72
        $region71: #{ner_model_forward.1} parent=23 // pred_region
          %p545 = scmp.lt.s32.totalorder %s27, 1
          %s546 = scalar_select %p545, %s27, 1
          %s547 = scalar_lea.vmem %s13, %s546
        $region72: #{ner_model_forward.1} parent=23 // pred_fallthru
          _
      $region24: #{ner_model_forward.1} parent=5 // pred_fallthru
        _
      %p548 = scmp.le.s32.totalorder 1, %s27
      %p549 = scmp.lt.s32.totalorder %s27, 3
      %p550 = pnand %p548, %p549
      %p551 = pneg %p550
      // Predicated region
      $region73: #{ner_model_forward.1} parent=5 // pred_check
        _
      $region74: #{ner_model_forward.1} parent=5 // pred_check_branch
        %553 = sbr.rel (%p550) target = $region76
      $region75: #{ner_model_forward.1} parent=5 // pred_region
        %s554 = ssub.s32 %s27, 1
        %s555 = sand.u32 %s82, 1
        %s556 = scalar_lea.sflag [#allocation4], %s555
        %s557 = sand.u32 %s82, 1
        %s558 = smul.addr %s557, 192
        %s559 = scalar_lea.vmem [#allocation3], %s558
        // Predicated region
        $region77: #{ner_model_forward.1} parent=75 // pred_check
          %p560 = pneg %p95
        $region78: #{ner_model_forward.1} parent=75 // pred_check_branch
          %562 = sbr.rel (%p560) target = $region80
        $region79: #{ner_model_forward.1} parent=75 // pred_region
          %563 = dma.done %s556, 3072
        $region80: #{ner_model_forward.1} parent=75 // pred_fallthru
          _
        %s564 = sand.u32 %s32, 1
        %s565 = scalar_lea.sflag [#allocation7], %s564
        %s566 = sand.u32 %s238, 1
        %s567 = smul.addr %s566, 256
        %s568 = scalar_lea.vmem [#allocation6], %s567
        // Predicated region
        $region81: #{ner_model_forward.1} parent=75 // pred_check
          %p569 = pneg %p251
        $region82: #{ner_model_forward.1} parent=75 // pred_check_branch
          %571 = sbr.rel (%p569) target = $region84
        $region83: #{ner_model_forward.1} parent=75 // pred_region
          %572 = dma.done %s565, 4096
        $region84: #{ner_model_forward.1} parent=75 // pred_fallthru
          _
        %s573 = sand.u32 %s32, 1
        %s574 = scalar_lea.sflag [#allocation7], %s573
        %s575 = sand.u32 %s290, 1
        %s576 = smul.addr %s575, 256
        %s577 = scalar_lea.vmem [#allocation8], %s576
        // Predicated region
        $region85: #{ner_model_forward.1} parent=75 // pred_check
          %p578 = pneg %p303
        $region86: #{ner_model_forward.1} parent=75 // pred_check_branch
          %580 = sbr.rel (%p578) target = $region88
        $region87: #{ner_model_forward.1} parent=75 // pred_region
          %581 = dma.done %s574, 4096
        $region88: #{ner_model_forward.1} parent=75 // pred_fallthru
          _
        %p582 = pneg %p48
        %p583 = pneg %p45
        %p584 = pneg %p69
        %p585 = pneg %p66
        %s586 = sand.u32 %s82, 1
        %s587 = scalar_lea.sflag [#allocation4], %s586
        %s588 = sand.u32 %s82, 1
        %s589 = smul.addr %s588, 192
        %s590 = scalar_lea.vmem [#allocation3], %s589
        %p591 = pneg %p95
        %p592 = pneg %p92
        %p593 = scmp.lt.s32.totalorder %s32, 1
        %s594 = scalar_select %p593, %s32, 1
        %s595 = smul.addr %s594, 3
        %s596 = scalar_lea.vmem %s3, %s595
        %p597 = pneg %p121
        %p598 = pneg %p118
        %p599 = scmp.lt.s32.totalorder %s32, 1
        %s600 = scalar_select %p599, %s32, 1
        %s601 = smul.addr %s600, 16
        %s602 = smul.addr %s601, 4
        %s603 = scalar_lea.vmem %s4, %s602
        %p604 = pneg %p147
        %p605 = pneg %p144
        %p606 = scmp.lt.s32.totalorder %s32, 1
        %s607 = scalar_select %p606, %s32, 1
        %s608 = scalar_lea.vmem %s5, %s607
        %p609 = pneg %p173
        %p610 = pneg %p170
        %p611 = scmp.lt.s32.totalorder %s32, 1
        %s612 = scalar_select %p611, %s32, 1
        %s613 = scalar_lea.vmem %s6, %s612
        %p614 = pneg %p199
        %p615 = pneg %p196
        %p616 = scmp.lt.s32.totalorder %s32, 1
        %s617 = scalar_select %p616, %s32, 1
        %s618 = scalar_lea.vmem %s7, %s617
        %p619 = pneg %p225
        %p620 = pneg %p222
        %s621 = sand.u32 %s32, 1
        %s622 = scalar_lea.sflag [#allocation7], %s621
        %s623 = sand.u32 %s238, 1
        %s624 = smul.addr %s623, 256
        %s625 = scalar_lea.vmem [#allocation6], %s624
        %p626 = pneg %p251
        %p627 = pneg %p248
        %p628 = scmp.lt.s32.totalorder %s32, 1
        %s629 = scalar_select %p628, %s32, 1
        %s630 = smul.addr %s629, 4
        %s631 = scalar_lea.vmem %s9, %s630
        %p632 = pneg %p277
        %p633 = pneg %p274
        %s634 = sand.u32 %s32, 1
        %s635 = scalar_lea.sflag [#allocation7], %s634
        %s636 = sand.u32 %s290, 1
        %s637 = smul.addr %s636, 256
        %s638 = scalar_lea.vmem [#allocation8], %s637
        %p639 = pneg %p303
        %p640 = pneg %p300
        %p641 = scmp.lt.s32.totalorder %s32, 1
        %s642 = scalar_select %p641, %s32, 1
        %s643 = scalar_lea.vmem %s11, %s642
        %p644 = pneg %p329
        %p645 = pneg %p326
        %p646 = scmp.lt.s32.totalorder %s32, 1
        %s647 = scalar_select %p646, %s32, 1
        %s648 = scalar_lea.vmem %s12, %s647
        %p649 = pneg %p355
        %p650 = pneg %p352
        %p651 = scmp.lt.s32.totalorder %s32, 1
        %s652 = scalar_select %p651, %s32, 1
        %s653 = scalar_lea.vmem %s13, %s652
        %p654 = pneg %p381
        %p655 = pneg %p378
        %p656 = pneg %p402
        %p657 = pneg %p399
        %p658 = scmp.lt.s32.totalorder %s32, 1
        %s659 = scalar_select %p658, %s32, 1
        %s660 = smul.addr %s659, 3
        %s661 = scalar_lea.vmem %s3, %s660
        %p662 = scmp.lt.s32.totalorder %s32, 1
        %s663 = scalar_select %p662, %s32, 1
        %s664 = smul.addr %s663, 16
        %s665 = smul.addr %s664, 4
        %s666 = scalar_lea.vmem %s4, %s665
        %p667 = scmp.lt.s32.totalorder %s32, 1
        %s668 = scalar_select %p667, %s32, 1
        %s669 = scalar_lea.vmem %s5, %s668
        %p670 = scmp.lt.s32.totalorder %s32, 1
        %s671 = scalar_select %p670, %s32, 1
        %s672 = scalar_lea.vmem %s6, %s671
        %p673 = scmp.lt.s32.totalorder %s32, 1
        %s674 = scalar_select %p673, %s32, 1
        %s675 = scalar_lea.vmem %s7, %s674
        %p676 = scmp.lt.s32.totalorder %s32, 1
        %s677 = scalar_select %p676, %s32, 1
        %s678 = smul.addr %s677, 4
        %s679 = scalar_lea.vmem %s9, %s678
        %p680 = scmp.lt.s32.totalorder %s32, 1
        %s681 = scalar_select %p680, %s32, 1
        %s682 = scalar_lea.vmem %s11, %s681
        %p683 = scmp.lt.s32.totalorder %s32, 1
        %s684 = scalar_select %p683, %s32, 1
        %s685 = scalar_lea.vmem %s12, %s684
        %p686 = scmp.lt.s32.totalorder %s32, 1
        %s687 = scalar_select %p686, %s32, 1
        %s688 = scalar_lea.vmem %s13, %s687
        %p690 = scmp.eq.s32.totalorder %s32, 0
        // Predicated region
        $region89: #{ner_model_forward.1} parent=75 // pred_check
          %p691 = pneg %p690
        $region90: #{ner_model_forward.1} parent=75 // pred_check_branch
          %693 = sbr.rel (%p691) target = $region92
        $region91: #{ner_model_forward.1} parent=75 // pred_region
          %v694 = vld [vmem:[%s0] sm:$0xff]
          %v695 = vld [vmem:[%s0 + $0x8] sm:$0xff]
          %696 = vst [vmem:[#allocation2] sm:$0xff] %v694
          %697 = vst [vmem:[#allocation2 + $0x8] sm:$0xff] %v695
        $region92: #{ner_model_forward.1} parent=75 // pred_fallthru
          _
        %v698 = vld [vmem:[#allocation2] sm:$0xff]
        %v699 = vld [vmem:[#allocation2 + $0x8] sm:$0xff]
        %v700 = vpack.c.bf16 %v699, %v698
        %v701 = vld [vmem:[%s559] sm:$0xff]
        %v702 = vld [vmem:[%s559 + $0x8] sm:$0xf]
        %v703 = vld [vmem:[%s559 + $0xc] sm:$0xff]
        %v704 = vld [vmem:[%s559 + $0x14] sm:$0xf]
        %v705 = vld [vmem:[%s559 + $0x18] sm:$0xff]
        %v706 = vld [vmem:[%s559 + $0x20] sm:$0xf]
        %v707 = vld [vmem:[%s559 + $0x24] sm:$0xff]
        %v708 = vld [vmem:[%s559 + $0x2c] sm:$0xf]
        %v709 = vld [vmem:[%s559 + $0x30] sm:$0xff]
        %v710 = vld [vmem:[%s559 + $0x38] sm:$0xf]
        %v711 = vld [vmem:[%s559 + $0x3c] sm:$0xff]
        %v712 = vld [vmem:[%s559 + $0x44] sm:$0xf]
        %v713 = vld [vmem:[%s559 + $0x48] sm:$0xff]
        %v714 = vld [vmem:[%s559 + $0x50] sm:$0xf]
        %v715 = vld [vmem:[%s559 + $0x54] sm:$0xff]
        %v716 = vld [vmem:[%s559 + $0x5c] sm:$0xf]
        %v717 = vld [vmem:[%s559 + $0x60] sm:$0xff]
        %v718 = vld [vmem:[%s559 + $0x68] sm:$0xf]
        %v719 = vld [vmem:[%s559 + $0x6c] sm:$0xff]
        %v720 = vld [vmem:[%s559 + $0x74] sm:$0xf]
        %v721 = vld [vmem:[%s559 + $0x78] sm:$0xff]
        %v722 = vld [vmem:[%s559 + $0x80] sm:$0xf]
        %v723 = vld [vmem:[%s559 + $0x84] sm:$0xff]
        %v724 = vld [vmem:[%s559 + $0x8c] sm:$0xf]
        %v725 = vld [vmem:[%s559 + $0x90] sm:$0xff]
        %v726 = vld [vmem:[%s559 + $0x98] sm:$0xf]
        %v727 = vld [vmem:[%s559 + $0x9c] sm:$0xff]
        %v728 = vld [vmem:[%s559 + $0xa4] sm:$0xf]
        %v729 = vld [vmem:[%s559 + $0xa8] sm:$0xff]
        %v730 = vld [vmem:[%s559 + $0xb0] sm:$0xf]
        %v731 = vld [vmem:[%s559 + $0xb4] sm:$0xff]
        %v732 = vld [vmem:[%s559 + $0xbc] sm:$0xf]
        %v733 = vld [vmem:[%s661] sm:$0x7]
        %v735 = vlaneseq
        %v736 = vshrl.u32 %v735, 7
        %v737 = vsub.s32 0, %v736
        %v738 = vrot.slane %v733, %v737
        %v739 = vlaneseq
        %v740 = vshrl.u32 %v739, 7
        %v741 = vsub.s32 1, %v740
        %v742 = vrot.slane %v733, %v741
        %v743 = vlaneseq
        %v744 = vshrl.u32 %v743, 7
        %v745 = vsub.s32 2, %v744
        %v746 = vrot.slane %v733, %v745
        %v782 = vunpack.c.l.b16 %v701
        %v783 = vunpack.c.h.b16 %v701
        %v784 = vunpack.c.l.b16 %v702
        %v785 = vunpack.c.l.b16 %v703
        %v786 = vunpack.c.h.b16 %v703
        %v787 = vunpack.c.l.b16 %v704
        %v788 = vunpack.c.l.b16 %v705
        %v789 = vunpack.c.h.b16 %v705
        %v790 = vunpack.c.l.b16 %v706
        %v791 = vunpack.c.l.b16 %v707
        %v792 = vunpack.c.h.b16 %v707
        %v793 = vunpack.c.l.b16 %v708
        %v794 = vunpack.c.l.b16 %v709
        %v795 = vunpack.c.h.b16 %v709
        %v796 = vunpack.c.l.b16 %v710
        %v797 = vunpack.c.l.b16 %v711
        %v798 = vunpack.c.h.b16 %v711
        %v799 = vunpack.c.l.b16 %v712
        %v800 = vunpack.c.l.b16 %v713
        %v801 = vunpack.c.h.b16 %v713
        %v802 = vunpack.c.l.b16 %v714
        %v803 = vunpack.c.l.b16 %v715
        %v804 = vunpack.c.h.b16 %v715
        %v805 = vunpack.c.l.b16 %v716
        %v806 = vunpack.c.l.b16 %v717
        %v807 = vunpack.c.h.b16 %v717
        %v808 = vunpack.c.l.b16 %v718
        %v809 = vunpack.c.l.b16 %v719
        %v810 = vunpack.c.h.b16 %v719
        %v811 = vunpack.c.l.b16 %v720
        %v812 = vunpack.c.l.b16 %v721
        %v813 = vunpack.c.h.b16 %v721
        %v814 = vunpack.c.l.b16 %v722
        %v815 = vunpack.c.l.b16 %v723
        %v816 = vunpack.c.h.b16 %v723
        %v817 = vunpack.c.l.b16 %v724
        %v818 = vunpack.c.l.b16 %v725
        %v819 = vunpack.c.h.b16 %v725
        %v820 = vunpack.c.l.b16 %v726
        %v821 = vunpack.c.l.b16 %v727
        %v822 = vunpack.c.h.b16 %v727
        %v823 = vunpack.c.l.b16 %v728
        %v824 = vunpack.c.l.b16 %v729
        %v825 = vunpack.c.h.b16 %v729
        %v826 = vunpack.c.l.b16 %v730
        %v827 = vunpack.c.l.b16 %v731
        %v828 = vunpack.c.h.b16 %v731
        %v829 = vunpack.c.l.b16 %v732
        %v830 = vpack.c.b16 %v785, %v782
        %v831 = vpack.c.b16 %v786, %v783
        %v832 = vpack.c.b16 %v787, %v784
        %v833 = vpack.c.b16 %v791, %v788
        %v834 = vpack.c.b16 %v792, %v789
        %v835 = vpack.c.b16 %v793, %v790
        %v836 = vpack.c.b16 %v797, %v794
        %v837 = vpack.c.b16 %v798, %v795
        %v838 = vpack.c.b16 %v799, %v796
        %v839 = vpack.c.b16 %v803, %v800
        %v840 = vpack.c.b16 %v804, %v801
        %v841 = vpack.c.b16 %v805, %v802
        %v842 = vpack.c.b16 %v809, %v806
        %v843 = vpack.c.b16 %v810, %v807
        %v844 = vpack.c.b16 %v811, %v808
        %v845 = vpack.c.b16 %v815, %v812
        %v846 = vpack.c.b16 %v816, %v813
        %v847 = vpack.c.b16 %v817, %v814
        %v848 = vpack.c.b16 %v821, %v818
        %v849 = vpack.c.b16 %v822, %v819
        %v850 = vpack.c.b16 %v823, %v820
        %v851 = vpack.c.b16 %v827, %v824
        %v852 = vpack.c.b16 %v828, %v825
        %v853 = vpack.c.b16 %v829, %v826
        %878 = vmatprep.subr.bf16.mxu0 %v831
        %879 = vmatpush1.bf16.msra.mxu0 %v830
        %880 = vmatprep.subr.bf16.mxu0 %v834
        %881 = vmatpush1.bf16.msra.mxu0 %v833
        %882 = vmatprep.subr.bf16.mxu0 %v837
        %883 = vmatpush1.bf16.msra.mxu0 %v836
        %884 = vmatprep.subr.bf16.mxu0 %v840
        %885 = vmatpush1.bf16.msra.mxu0 %v839
        %886 = vmatprep.subr.bf16.mxu0 %v843
        %887 = vmatpush1.bf16.msra.mxu0 %v842
        %888 = vmatprep.subr.bf16.mxu0 %v846
        %889 = vmatpush1.bf16.msra.mxu0 %v845
        %890 = vmatprep.subr.bf16.mxu0 %v849
        %891 = vmatpush1.bf16.msra.mxu0 %v848
        %892 = vmatprep.subr.bf16.mxu0 %v852
        %893 = vmatpush1.bf16.msra.mxu0 %v851
        %894 = vmatprep.subr.bf16.mxu0 0
        %895 = vmatpush1.bf16.msra.mxu0 0
        %896 = vmatprep.subr.bf16.mxu0 0
        %897 = vmatpush1.bf16.msra.mxu0 0
        %898 = vmatprep.subr.bf16.mxu0 0
        %899 = vmatpush1.bf16.msra.mxu0 0
        %900 = vmatprep.subr.bf16.mxu0 0
        %901 = vmatpush1.bf16.msra.mxu0 0
        %902 = vmatprep.subr.bf16.mxu0 0
        %903 = vmatpush1.bf16.msra.mxu0 0
        %904 = vmatprep.subr.bf16.mxu0 0
        %905 = vmatpush1.bf16.msra.mxu0 0
        %906 = vmatprep.subr.bf16.mxu0 0
        %907 = vmatpush1.bf16.msra.mxu0 0
        %908 = vmatprep.subr.bf16.mxu0 0
        %909 = vmatpush1.bf16.msra.mxu0 0
        %910 = vmatprep.mubr.bf16.mxu0 0
        %911 = vmatmul.mubr.bf16.gmra.mrb[0].mxu0 %v700
        %v912 = vpop.f32.mrb[0].mxu0
        %v913 = vadd.f32 %v738, %v912
        %v914 = vpop.f32.mrb[0].mxu0
        %v915 = vadd.f32 %v742, %v914
        %v916 = vpop.f32.mrb[0].mxu0
        %v917 = vadd.f32 %v738, %v916
        %v918 = vpop.f32.mrb[0].mxu0
        %v919 = vadd.f32 %v742, %v918
        %920 = vdwg.mxu0
        %921 = vmatprep.subr.bf16.mxu0 0
        %922 = vmatpush1.bf16.msra.mxu0 %v832
        %923 = vmatprep.subr.bf16.mxu0 0
        %924 = vmatpush1.bf16.msra.mxu0 %v835
        %925 = vmatprep.subr.bf16.mxu0 0
        %926 = vmatpush1.bf16.msra.mxu0 %v838
        %927 = vmatprep.subr.bf16.mxu0 0
        %928 = vmatpush1.bf16.msra.mxu0 %v841
        %929 = vmatprep.subr.bf16.mxu0 0
        %930 = vmatpush1.bf16.msra.mxu0 %v844
        %931 = vmatprep.subr.bf16.mxu0 0
        %932 = vmatpush1.bf16.msra.mxu0 %v847
        %933 = vmatprep.subr.bf16.mxu0 0
        %934 = vmatpush1.bf16.msra.mxu0 %v850
        %935 = vmatprep.subr.bf16.mxu0 0
        %936 = vmatpush1.bf16.msra.mxu0 %v853
        %937 = vmatprep.subr.bf16.mxu0 0
        %938 = vmatpush1.bf16.msra.mxu0 0
        %939 = vmatprep.subr.bf16.mxu0 0
        %940 = vmatpush1.bf16.msra.mxu0 0
        %941 = vmatprep.subr.bf16.mxu0 0
        %942 = vmatpush1.bf16.msra.mxu0 0
        %943 = vmatprep.subr.bf16.mxu0 0
        %944 = vmatpush1.bf16.msra.mxu0 0
        %945 = vmatprep.subr.bf16.mxu0 0
        %946 = vmatpush1.bf16.msra.mxu0 0
        %947 = vmatprep.subr.bf16.mxu0 0
        %948 = vmatpush1.bf16.msra.mxu0 0
        %949 = vmatprep.subr.bf16.mxu0 0
        %950 = vmatpush1.bf16.msra.mxu0 0
        %951 = vmatprep.subr.bf16.mxu0 0
        %952 = vmatpush1.bf16.msra.mxu0 0
        %953 = vmatprep.mubr.bf16.mxu0 0
        %954 = vmatmul.mubr.bf16.gmra.mrb[0].mxu0 %v700
        %v955 = vpop.f32.mrb[0].mxu0
        %v956 = vadd.f32 %v746, %v955
        %v957 = vpop.f32.mrb[0].mxu0
        %v958 = vpop.f32.mrb[0].mxu0
        %v959 = vadd.f32 %v746, %v958
        %v960 = vpop.f32.mrb[0].mxu0
        %961 = vdwg.mxu0
        %v962 = vpack.c.bf16 %v913, %v913
        %v963 = vpack.c.bf16 %v917, %v917
        %v964 = vpack.c.bf16 %v915, %v915
        %v965 = vpack.c.bf16 %v919, %v919
        %v966 = vpack.c.bf16 %v956, %v956
        %v967 = vpack.c.bf16 %v959, %v959
        %v968 = vld [vmem:[%s1] sm:$0x3]
        %v971 = vunpack.c.l.s4 1966171168
        %v972 = vunpack.c.0.s8 %v971
        %v973 = vlaneseq
        %v974 = vshrl.u32 %v973, 7
        %v975 = vsub.s32 %v972, %v974
        %v976 = vrot.slane %v968, %v975
        %v977 = vcombine.high %v976, %v976
        %v979 = vunpack.c.l.s4 1966171168
        %v980 = vunpack.c.0.s8 %v979
        %v981 = vlaneseq
        %v982 = vshrl.u32 %v981, 7
        %v983 = vsub.s32 %v980, %v982
        %v984 = vrot.slane %v976, %v983
        %v986 = vunpack.c.l.s4 1966171168
        %v987 = vunpack.c.0.s8 %v986
        %v988 = vlaneseq
        %v989 = vshrl.u32 %v988, 7
        %v990 = vsub.s32 %v987, %v989
        %v991 = vrot.slane %v977, %v990
        %v992 = vlaneseq
        %v993 = vshrl.u32 %v992, 7
        %v994 = vsub.s32 0, %v993
        %v995 = vrot.slane %v984, %v994
        %v996 = vlaneseq
        %v997 = vshrl.u32 %v996, 7
        %v998 = vsub.s32 0, %v997
        %v999 = vrot.slane %v991, %v998
        %vm1002 = vcmask 261120
        %v1004 = vsel %vm1002, %v962, 0
        %v1007 = vsel %vm1002, %v964, 0
        %1009 = vmatprep.subr.bf16.mxu0 0
        %1010 = vmatpush1.bf16.xpose.msra.mxu0 %v1007
        %1011 = vmatprep.subr.bf16.mxu0 0
        %1012 = vmatpush1.bf16.xpose.msra.mxu0 0
        %1013 = vmatprep.subr.bf16.mxu0 0
        %1014 = vmatpush1.bf16.xpose.msra.mxu0 0
        %1015 = vmatprep.subr.bf16.mxu0 0
        %1016 = vmatpush1.bf16.xpose.msra.mxu0 0
        %1017 = vmatprep.subr.bf16.mxu0 0
        %1018 = vmatpush1.bf16.xpose.msra.mxu0 0
        %1019 = vmatprep.subr.bf16.mxu0 0
        %1020 = vmatpush1.bf16.xpose.msra.mxu0 0
        %1021 = vmatprep.subr.bf16.mxu0 0
        %1022 = vmatpush1.bf16.xpose.msra.mxu0 0
        %1023 = vmatprep.subr.bf16.mxu0 0
        %1024 = vmatpush1.bf16.xpose.msra.mxu0 0
        %1025 = vmatprep.subr.bf16.mxu0 0
        %1026 = vmatpush1.bf16.xpose.msra.mxu0 0
        %1027 = vmatprep.subr.bf16.mxu0 0
        %1028 = vmatpush1.bf16.xpose.msra.mxu0 0
        %1029 = vmatprep.subr.bf16.mxu0 0
        %1030 = vmatpush1.bf16.xpose.msra.mxu0 0
        %1031 = vmatprep.subr.bf16.mxu0 0
        %1032 = vmatpush1.bf16.xpose.msra.mxu0 0
        %1033 = vmatprep.subr.bf16.mxu0 0
        %1034 = vmatpush1.bf16.xpose.msra.mxu0 0
        %1035 = vmatprep.subr.bf16.mxu0 0
        %1036 = vmatpush1.bf16.xpose.msra.mxu0 0
        %1037 = vmatprep.subr.bf16.mxu0 0
        %1038 = vmatpush1.bf16.xpose.msra.mxu0 0
        %1039 = vmatprep.subr.bf16.mxu0 0
        %1040 = vmatpush1.bf16.xpose.msra.mxu0 0
        %1041 = vmatprep.mubr.bf16.mxu0 0
        %1042 = vmatmul.mubr.bf16.gmra.mrb[0].mxu0 %v1004
        %v1043 = vpop.f32.mrb[0].mxu0
        %v1044 = vadd.f32 %v995, %v1043
        %v1045 = vpop.f32.mrb[0].mxu0
        %v1046 = vpop.f32.mrb[0].mxu0
        %v1047 = vpop.f32.mrb[0].mxu0
        %1048 = vdwg.mxu0
        %v1050 = vsel %vm1002, %v963, 0
        %v1053 = vsel %vm1002, %v965, 0
        %1055 = vmatprep.subr.bf16.mxu0 0
        %1056 = vmatpush1.bf16.xpose.msra.mxu0 %v1053
        %1057 = vmatprep.subr.bf16.mxu0 0
        %1058 = vmatpush1.bf16.xpose.msra.mxu0 0
        %1059 = vmatprep.subr.bf16.mxu0 0
        %1060 = vmatpush1.bf16.xpose.msra.mxu0 0
        %1061 = vmatprep.subr.bf16.mxu0 0
        %1062 = vmatpush1.bf16.xpose.msra.mxu0 0
        %1063 = vmatprep.subr.bf16.mxu0 0
        %1064 = vmatpush1.bf16.xpose.msra.mxu0 0
        %1065 = vmatprep.subr.bf16.mxu0 0
        %1066 = vmatpush1.bf16.xpose.msra.mxu0 0
        %1067 = vmatprep.subr.bf16.mxu0 0
        %1068 = vmatpush1.bf16.xpose.msra.mxu0 0
        %1069 = vmatprep.subr.bf16.mxu0 0
        %1070 = vmatpush1.bf16.xpose.msra.mxu0 0
        %1071 = vmatprep.subr.bf16.mxu0 0
        %1072 = vmatpush1.bf16.xpose.msra.mxu0 0
        %1073 = vmatprep.subr.bf16.mxu0 0
        %1074 = vmatpush1.bf16.xpose.msra.mxu0 0
        %1075 = vmatprep.subr.bf16.mxu0 0
        %1076 = vmatpush1.bf16.xpose.msra.mxu0 0
        %1077 = vmatprep.subr.bf16.mxu0 0
        %1078 = vmatpush1.bf16.xpose.msra.mxu0 0
        %1079 = vmatprep.subr.bf16.mxu0 0
        %1080 = vmatpush1.bf16.xpose.msra.mxu0 0
        %1081 = vmatprep.subr.bf16.mxu0 0
        %1082 = vmatpush1.bf16.xpose.msra.mxu0 0
        %1083 = vmatprep.subr.bf16.mxu0 0
        %1084 = vmatpush1.bf16.xpose.msra.mxu0 0
        %1085 = vmatprep.subr.bf16.mxu0 0
        %1086 = vmatpush1.bf16.xpose.msra.mxu0 0
        %1087 = vmatprep.mubr.bf16.mxu0 0
        %1088 = vmatmul.mubr.bf16.gmra.mrb[0].mxu0 %v1050
        %v1089 = vpop.f32.mrb[0].mxu0
        %v1090 = vadd.f32 %v999, %v1089
        %v1091 = vpop.f32.mrb[0].mxu0
        %v1092 = vpop.f32.mrb[0].mxu0
        %v1093 = vpop.f32.mrb[0].mxu0
        %1094 = vdwg.mxu0
        %vm1095 = vcmask 64512
        %v1096 = vsel %vm1095, %v1044, -inf
        %1097 = vmax.xlane.f32.xlu0 %v1096
        %v1098 = vpop.xlane.xlu0 %1097
        %v1099 = vsel %vm1095, %v1090, -inf
        %1100 = vmax.xlane.f32.xlu0 %v1099
        %v1101 = vpop.xlane.xlu0 %1100
        %v1102 = vsub.f32 %v1044, %v1098
        %v1103 = vsub.f32 %v1090, %v1101
        %v1104 = vmul.f32 %v1102, 1.442695
        %v1105 = vpow.pop %v1104
        %v1106 = vmul.f32 %v1103, 1.442695
        %v1107 = vpow.pop %v1106
        %v1108 = vsel %vm1095, %v1105, 0.0
        %1109 = vadd.xlane.f32.xlu0 %v1108
        %v1110 = vpop.xlane.xlu0 %1109
        %v1111 = vsel %vm1095, %v1107, 0.0
        %1112 = vadd.xlane.f32.xlu0 %v1111
        %v1113 = vpop.xlane.xlu0 %1112
        %v1114 = vrcp.pop %v1110
        %v1115 = vrcp.pop %v1113
        %v1116 = vmul.f32 %v1105, %v1114
        %v1117 = vmul.f32 %v1107, %v1115
        %v1118 = vpack.c.bf16 %v1116, %v1116
        %v1119 = vpack.c.bf16 %v1117, %v1117
        %v1121 = vsel %vm1095, %v1118, 0
        %vm1123 = vcmask 1043456
        %v1125 = vsel %vm1123, %v966, 0
        %1127 = vmatprep.subr.bf16.mxu0 0
        %1128 = vmatpush1.bf16.msra.mxu0 %v1125
        %1129 = vmatprep.subr.bf16.mxu0 0
        %1130 = vmatpush1.bf16.msra.mxu0 0
        %1131 = vmatprep.subr.bf16.mxu0 0
        %1132 = vmatpush1.bf16.msra.mxu0 0
        %1133 = vmatprep.subr.bf16.mxu0 0
        %1134 = vmatpush1.bf16.msra.mxu0 0
        %1135 = vmatprep.subr.bf16.mxu0 0
        %1136 = vmatpush1.bf16.msra.mxu0 0
        %1137 = vmatprep.subr.bf16.mxu0 0
        %1138 = vmatpush1.bf16.msra.mxu0 0
        %1139 = vmatprep.subr.bf16.mxu0 0
        %1140 = vmatpush1.bf16.msra.mxu0 0
        %1141 = vmatprep.subr.bf16.mxu0 0
        %1142 = vmatpush1.bf16.msra.mxu0 0
        %1143 = vmatprep.subr.bf16.mxu0 0
        %1144 = vmatpush1.bf16.msra.mxu0 0
        %1145 = vmatprep.subr.bf16.mxu0 0
        %1146 = vmatpush1.bf16.msra.mxu0 0
        %1147 = vmatprep.subr.bf16.mxu0 0
        %1148 = vmatpush1.bf16.msra.mxu0 0
        %1149 = vmatprep.subr.bf16.mxu0 0
        %1150 = vmatpush1.bf16.msra.mxu0 0
        %1151 = vmatprep.subr.bf16.mxu0 0
        %1152 = vmatpush1.bf16.msra.mxu0 0
        %1153 = vmatprep.subr.bf16.mxu0 0
        %1154 = vmatpush1.bf16.msra.mxu0 0
        %1155 = vmatprep.subr.bf16.mxu0 0
        %1156 = vmatpush1.bf16.msra.mxu0 0
        %1157 = vmatprep.subr.bf16.mxu0 0
        %1158 = vmatpush1.bf16.msra.mxu0 0
        %1159 = vmatprep.mubr.bf16.mxu0 0
        %1160 = vmatmul.mubr.bf16.gmra.mrb[0].mxu0 %v1121
        %v1161 = vpop.f32.mrb[0].mxu0
        %v1162 = vadd.f32 0.0, %v1161
        %v1163 = vpop.f32.mrb[0].mxu0
        %v1164 = vpop.f32.mrb[0].mxu0
        %v1165 = vpop.f32.mrb[0].mxu0
        %1166 = vdwg.mxu0
        %v1168 = vsel %vm1095, %v1119, 0
        %v1171 = vsel %vm1123, %v967, 0
        %1173 = vmatprep.subr.bf16.mxu0 0
        %1174 = vmatpush1.bf16.msra.mxu0 %v1171
        %1175 = vmatprep.subr.bf16.mxu0 0
        %1176 = vmatpush1.bf16.msra.mxu0 0
        %1177 = vmatprep.subr.bf16.mxu0 0
        %1178 = vmatpush1.bf16.msra.mxu0 0
        %1179 = vmatprep.subr.bf16.mxu0 0
        %1180 = vmatpush1.bf16.msra.mxu0 0
        %1181 = vmatprep.subr.bf16.mxu0 0
        %1182 = vmatpush1.bf16.msra.mxu0 0
        %1183 = vmatprep.subr.bf16.mxu0 0
        %1184 = vmatpush1.bf16.msra.mxu0 0
        %1185 = vmatprep.subr.bf16.mxu0 0
        %1186 = vmatpush1.bf16.msra.mxu0 0
        %1187 = vmatprep.subr.bf16.mxu0 0
        %1188 = vmatpush1.bf16.msra.mxu0 0
        %1189 = vmatprep.subr.bf16.mxu0 0
        %1190 = vmatpush1.bf16.msra.mxu0 0
        %1191 = vmatprep.subr.bf16.mxu0 0
        %1192 = vmatpush1.bf16.msra.mxu0 0
        %1193 = vmatprep.subr.bf16.mxu0 0
        %1194 = vmatpush1.bf16.msra.mxu0 0
        %1195 = vmatprep.subr.bf16.mxu0 0
        %1196 = vmatpush1.bf16.msra.mxu0 0
        %1197 = vmatprep.subr.bf16.mxu0 0
        %1198 = vmatpush1.bf16.msra.mxu0 0
        %1199 = vmatprep.subr.bf16.mxu0 0
        %1200 = vmatpush1.bf16.msra.mxu0 0
        %1201 = vmatprep.subr.bf16.mxu0 0
        %1202 = vmatpush1.bf16.msra.mxu0 0
        %1203 = vmatprep.subr.bf16.mxu0 0
        %1204 = vmatpush1.bf16.msra.mxu0 0
        %1205 = vmatprep.mubr.bf16.mxu0 0
        %1206 = vmatmul.mubr.bf16.gmra.mrb[0].mxu0 %v1168
        %v1207 = vpop.f32.mrb[0].mxu0
        %v1208 = vadd.f32 0.0, %v1207
        %v1209 = vpop.f32.mrb[0].mxu0
        %v1210 = vpop.f32.mrb[0].mxu0
        %v1211 = vpop.f32.mrb[0].mxu0
        %1212 = vdwg.mxu0
        %1214 = vrot.lane.b32.xlu0 %v962, 96
        %v1215 = vpop.permute.xlu0 %1214
        %1217 = vrot.lane.b32.xlu0 %v964, 96
        %v1218 = vpop.permute.xlu0 %1217
        %v1220 = vsel %vm1002, %v1215, 0
        %v1223 = vsel %vm1002, %v1218, 0
        %1225 = vmatprep.subr.bf16.mxu0 0
        %1226 = vmatpush1.bf16.xpose.msra.mxu0 %v1223
        %1227 = vmatprep.subr.bf16.mxu0 0
        %1228 = vmatpush1.bf16.xpose.msra.mxu0 0
        %1229 = vmatprep.subr.bf16.mxu0 0
        %1230 = vmatpush1.bf16.xpose.msra.mxu0 0
        %1231 = vmatprep.subr.bf16.mxu0 0
        %1232 = vmatpush1.bf16.xpose.msra.mxu0 0
        %1233 = vmatprep.subr.bf16.mxu0 0
        %1234 = vmatpush1.bf16.xpose.msra.mxu0 0
        %1235 = vmatprep.subr.bf16.mxu0 0
        %1236 = vmatpush1.bf16.xpose.msra.mxu0 0
        %1237 = vmatprep.subr.bf16.mxu0 0
        %1238 = vmatpush1.bf16.xpose.msra.mxu0 0
        %1239 = vmatprep.subr.bf16.mxu0 0
        %1240 = vmatpush1.bf16.xpose.msra.mxu0 0
        %1241 = vmatprep.subr.bf16.mxu0 0
        %1242 = vmatpush1.bf16.xpose.msra.mxu0 0
        %1243 = vmatprep.subr.bf16.mxu0 0
        %1244 = vmatpush1.bf16.xpose.msra.mxu0 0
        %1245 = vmatprep.subr.bf16.mxu0 0
        %1246 = vmatpush1.bf16.xpose.msra.mxu0 0
        %1247 = vmatprep.subr.bf16.mxu0 0
        %1248 = vmatpush1.bf16.xpose.msra.mxu0 0
        %1249 = vmatprep.subr.bf16.mxu0 0
        %1250 = vmatpush1.bf16.xpose.msra.mxu0 0
        %1251 = vmatprep.subr.bf16.mxu0 0
        %1252 = vmatpush1.bf16.xpose.msra.mxu0 0
        %1253 = vmatprep.subr.bf16.mxu0 0
        %1254 = vmatpush1.bf16.xpose.msra.mxu0 0
        %1255 = vmatprep.subr.bf16.mxu0 0
        %1256 = vmatpush1.bf16.xpose.msra.mxu0 0
        %1257 = vmatprep.mubr.bf16.mxu0 0
        %1258 = vmatmul.mubr.bf16.gmra.mrb[0].mxu0 %v1220
        %v1259 = vpop.f32.mrb[0].mxu0
        %v1260 = vadd.f32 %v995, %v1259
        %v1261 = vpop.f32.mrb[0].mxu0
        %v1262 = vpop.f32.mrb[0].mxu0
        %v1263 = vpop.f32.mrb[0].mxu0
        %1264 = vdwg.mxu0
        %1266 = vrot.lane.b32.xlu0 %v963, 96
        %v1267 = vpop.permute.xlu0 %1266
        %1269 = vrot.lane.b32.xlu0 %v965, 96
        %v1270 = vpop.permute.xlu0 %1269
        %v1272 = vsel %vm1002, %v1267, 0
        %v1275 = vsel %vm1002, %v1270, 0
        %1277 = vmatprep.subr.bf16.mxu0 0
        %1278 = vmatpush1.bf16.xpose.msra.mxu0 %v1275
        %1279 = vmatprep.subr.bf16.mxu0 0
        %1280 = vmatpush1.bf16.xpose.msra.mxu0 0
        %1281 = vmatprep.subr.bf16.mxu0 0
        %1282 = vmatpush1.bf16.xpose.msra.mxu0 0
        %1283 = vmatprep.subr.bf16.mxu0 0
        %1284 = vmatpush1.bf16.xpose.msra.mxu0 0
        %1285 = vmatprep.subr.bf16.mxu0 0
        %1286 = vmatpush1.bf16.xpose.msra.mxu0 0
        %1287 = vmatprep.subr.bf16.mxu0 0
        %1288 = vmatpush1.bf16.xpose.msra.mxu0 0
        %1289 = vmatprep.subr.bf16.mxu0 0
        %1290 = vmatpush1.bf16.xpose.msra.mxu0 0
        %1291 = vmatprep.subr.bf16.mxu0 0
        %1292 = vmatpush1.bf16.xpose.msra.mxu0 0
        %1293 = vmatprep.subr.bf16.mxu0 0
        %1294 = vmatpush1.bf16.xpose.msra.mxu0 0
        %1295 = vmatprep.subr.bf16.mxu0 0
        %1296 = vmatpush1.bf16.xpose.msra.mxu0 0
        %1297 = vmatprep.subr.bf16.mxu0 0
        %1298 = vmatpush1.bf16.xpose.msra.mxu0 0
        %1299 = vmatprep.subr.bf16.mxu0 0
        %1300 = vmatpush1.bf16.xpose.msra.mxu0 0
        %1301 = vmatprep.subr.bf16.mxu0 0
        %1302 = vmatpush1.bf16.xpose.msra.mxu0 0
        %1303 = vmatprep.subr.bf16.mxu0 0
        %1304 = vmatpush1.bf16.xpose.msra.mxu0 0
        %1305 = vmatprep.subr.bf16.mxu0 0
        %1306 = vmatpush1.bf16.xpose.msra.mxu0 0
        %1307 = vmatprep.subr.bf16.mxu0 0
        %1308 = vmatpush1.bf16.xpose.msra.mxu0 0
        %1309 = vmatprep.mubr.bf16.mxu0 0
        %1310 = vmatmul.mubr.bf16.gmra.mrb[0].mxu0 %v1272
        %v1311 = vpop.f32.mrb[0].mxu0
        %v1312 = vadd.f32 %v999, %v1311
        %v1313 = vpop.f32.mrb[0].mxu0
        %v1314 = vpop.f32.mrb[0].mxu0
        %v1315 = vpop.f32.mrb[0].mxu0
        %1316 = vdwg.mxu0
        %v1317 = vsel %vm1095, %v1260, -inf
        %1318 = vmax.xlane.f32.xlu0 %v1317
        %v1319 = vpop.xlane.xlu0 %1318
        %v1320 = vsel %vm1095, %v1312, -inf
        %1321 = vmax.xlane.f32.xlu0 %v1320
        %v1322 = vpop.xlane.xlu0 %1321
        %v1323 = vsub.f32 %v1260, %v1319
        %v1324 = vsub.f32 %v1312, %v1322
        %v1325 = vmul.f32 %v1323, 1.442695
        %v1326 = vpow.pop %v1325
        %v1327 = vmul.f32 %v1324, 1.442695
        %v1328 = vpow.pop %v1327
        %v1329 = vsel %vm1095, %v1326, 0.0
        %1330 = vadd.xlane.f32.xlu0 %v1329
        %v1331 = vpop.xlane.xlu0 %1330
        %v1332 = vsel %vm1095, %v1328, 0.0
        %1333 = vadd.xlane.f32.xlu0 %v1332
        %v1334 = vpop.xlane.xlu0 %1333
        %v1335 = vrcp.pop %v1331
        %v1336 = vrcp.pop %v1334
        %v1337 = vmul.f32 %v1326, %v1335
        %v1338 = vmul.f32 %v1328, %v1336
        %v1339 = vpack.c.bf16 %v1337, %v1337
        %v1340 = vpack.c.bf16 %v1338, %v1338
        %1342 = vrot.lane.b32.xlu0 %v966, 96
        %v1343 = vpop.permute.xlu0 %1342
        %v1345 = vsel %vm1095, %v1339, 0
        %v1348 = vsel %vm1123, %v1343, 0
        %1350 = vmatprep.subr.bf16.mxu0 0
        %1351 = vmatpush1.bf16.msra.mxu0 %v1348
        %1352 = vmatprep.subr.bf16.mxu0 0
        %1353 = vmatpush1.bf16.msra.mxu0 0
        %1354 = vmatprep.subr.bf16.mxu0 0
        %1355 = vmatpush1.bf16.msra.mxu0 0
        %1356 = vmatprep.subr.bf16.mxu0 0
        %1357 = vmatpush1.bf16.msra.mxu0 0
        %1358 = vmatprep.subr.bf16.mxu0 0
        %1359 = vmatpush1.bf16.msra.mxu0 0
        %1360 = vmatprep.subr.bf16.mxu0 0
        %1361 = vmatpush1.bf16.msra.mxu0 0
        %1362 = vmatprep.subr.bf16.mxu0 0
        %1363 = vmatpush1.bf16.msra.mxu0 0
        %1364 = vmatprep.subr.bf16.mxu0 0
        %1365 = vmatpush1.bf16.msra.mxu0 0
        %1366 = vmatprep.subr.bf16.mxu0 0
        %1367 = vmatpush1.bf16.msra.mxu0 0
        %1368 = vmatprep.subr.bf16.mxu0 0
        %1369 = vmatpush1.bf16.msra.mxu0 0
        %1370 = vmatprep.subr.bf16.mxu0 0
        %1371 = vmatpush1.bf16.msra.mxu0 0
        %1372 = vmatprep.subr.bf16.mxu0 0
        %1373 = vmatpush1.bf16.msra.mxu0 0
        %1374 = vmatprep.subr.bf16.mxu0 0
        %1375 = vmatpush1.bf16.msra.mxu0 0
        %1376 = vmatprep.subr.bf16.mxu0 0
        %1377 = vmatpush1.bf16.msra.mxu0 0
        %1378 = vmatprep.subr.bf16.mxu0 0
        %1379 = vmatpush1.bf16.msra.mxu0 0
        %1380 = vmatprep.subr.bf16.mxu0 0
        %1381 = vmatpush1.bf16.msra.mxu0 0
        %1382 = vmatprep.mubr.bf16.mxu0 0
        %1383 = vmatmul.mubr.bf16.gmra.mrb[0].mxu0 %v1345
        %v1384 = vpop.f32.mrb[0].mxu0
        %v1385 = vadd.f32 0.0, %v1384
        %v1386 = vpop.f32.mrb[0].mxu0
        %v1387 = vpop.f32.mrb[0].mxu0
        %v1388 = vpop.f32.mrb[0].mxu0
        %1389 = vdwg.mxu0
        %1391 = vrot.lane.b32.xlu0 %v967, 96
        %v1392 = vpop.permute.xlu0 %1391
        %v1394 = vsel %vm1095, %v1340, 0
        %v1397 = vsel %vm1123, %v1392, 0
        %1399 = vmatprep.subr.bf16.mxu0 0
        %1400 = vmatpush1.bf16.msra.mxu0 %v1397
        %1401 = vmatprep.subr.bf16.mxu0 0
        %1402 = vmatpush1.bf16.msra.mxu0 0
        %1403 = vmatprep.subr.bf16.mxu0 0
        %1404 = vmatpush1.bf16.msra.mxu0 0
        %1405 = vmatprep.subr.bf16.mxu0 0
        %1406 = vmatpush1.bf16.msra.mxu0 0
        %1407 = vmatprep.subr.bf16.mxu0 0
        %1408 = vmatpush1.bf16.msra.mxu0 0
        %1409 = vmatprep.subr.bf16.mxu0 0
        %1410 = vmatpush1.bf16.msra.mxu0 0
        %1411 = vmatprep.subr.bf16.mxu0 0
        %1412 = vmatpush1.bf16.msra.mxu0 0
        %1413 = vmatprep.subr.bf16.mxu0 0
        %1414 = vmatpush1.bf16.msra.mxu0 0
        %1415 = vmatprep.subr.bf16.mxu0 0
        %1416 = vmatpush1.bf16.msra.mxu0 0
        %1417 = vmatprep.subr.bf16.mxu0 0
        %1418 = vmatpush1.bf16.msra.mxu0 0
        %1419 = vmatprep.subr.bf16.mxu0 0
        %1420 = vmatpush1.bf16.msra.mxu0 0
        %1421 = vmatprep.subr.bf16.mxu0 0
        %1422 = vmatpush1.bf16.msra.mxu0 0
        %1423 = vmatprep.subr.bf16.mxu0 0
        %1424 = vmatpush1.bf16.msra.mxu0 0
        %1425 = vmatprep.subr.bf16.mxu0 0
        %1426 = vmatpush1.bf16.msra.mxu0 0
        %1427 = vmatprep.subr.bf16.mxu0 0
        %1428 = vmatpush1.bf16.msra.mxu0 0
        %1429 = vmatprep.subr.bf16.mxu0 0
        %1430 = vmatpush1.bf16.msra.mxu0 0
        %1431 = vmatprep.mubr.bf16.mxu0 0
        %1432 = vmatmul.mubr.bf16.gmra.mrb[0].mxu0 %v1394
        %v1433 = vpop.f32.mrb[0].mxu0
        %v1434 = vadd.f32 0.0, %v1433
        %v1435 = vpop.f32.mrb[0].mxu0
        %v1436 = vpop.f32.mrb[0].mxu0
        %v1437 = vpop.f32.mrb[0].mxu0
        %1438 = vdwg.mxu0
        %1439 = vrot.lane.b32.xlu0 %v962, 64
        %v1440 = vpop.permute.xlu0 %1439
        %1441 = vrot.lane.b32.xlu0 %v964, 64
        %v1442 = vpop.permute.xlu0 %1441
        %v1444 = vsel %vm1002, %v1440, 0
        %v1447 = vsel %vm1002, %v1442, 0
        %1449 = vmatprep.subr.bf16.mxu0 0
        %1450 = vmatpush1.bf16.xpose.msra.mxu0 %v1447
        %1451 = vmatprep.subr.bf16.mxu0 0
        %1452 = vmatpush1.bf16.xpose.msra.mxu0 0
        %1453 = vmatprep.subr.bf16.mxu0 0
        %1454 = vmatpush1.bf16.xpose.msra.mxu0 0
        %1455 = vmatprep.subr.bf16.mxu0 0
        %1456 = vmatpush1.bf16.xpose.msra.mxu0 0
        %1457 = vmatprep.subr.bf16.mxu0 0
        %1458 = vmatpush1.bf16.xpose.msra.mxu0 0
        %1459 = vmatprep.subr.bf16.mxu0 0
        %1460 = vmatpush1.bf16.xpose.msra.mxu0 0
        %1461 = vmatprep.subr.bf16.mxu0 0
        %1462 = vmatpush1.bf16.xpose.msra.mxu0 0
        %1463 = vmatprep.subr.bf16.mxu0 0
        %1464 = vmatpush1.bf16.xpose.msra.mxu0 0
        %1465 = vmatprep.subr.bf16.mxu0 0
        %1466 = vmatpush1.bf16.xpose.msra.mxu0 0
        %1467 = vmatprep.subr.bf16.mxu0 0
        %1468 = vmatpush1.bf16.xpose.msra.mxu0 0
        %1469 = vmatprep.subr.bf16.mxu0 0
        %1470 = vmatpush1.bf16.xpose.msra.mxu0 0
        %1471 = vmatprep.subr.bf16.mxu0 0
        %1472 = vmatpush1.bf16.xpose.msra.mxu0 0
        %1473 = vmatprep.subr.bf16.mxu0 0
        %1474 = vmatpush1.bf16.xpose.msra.mxu0 0
        %1475 = vmatprep.subr.bf16.mxu0 0
        %1476 = vmatpush1.bf16.xpose.msra.mxu0 0
        %1477 = vmatprep.subr.bf16.mxu0 0
        %1478 = vmatpush1.bf16.xpose.msra.mxu0 0
        %1479 = vmatprep.subr.bf16.mxu0 0
        %1480 = vmatpush1.bf16.xpose.msra.mxu0 0
        %1481 = vmatprep.mubr.bf16.mxu0 0
        %1482 = vmatmul.mubr.bf16.gmra.mrb[0].mxu0 %v1444
        %v1483 = vpop.f32.mrb[0].mxu0
        %v1484 = vadd.f32 %v995, %v1483
        %v1485 = vpop.f32.mrb[0].mxu0
        %v1486 = vpop.f32.mrb[0].mxu0
        %v1487 = vpop.f32.mrb[0].mxu0
        %1488 = vdwg.mxu0
        %1489 = vrot.lane.b32.xlu0 %v963, 64
        %v1490 = vpop.permute.xlu0 %1489
        %1491 = vrot.lane.b32.xlu0 %v965, 64
        %v1492 = vpop.permute.xlu0 %1491
        %v1494 = vsel %vm1002, %v1490, 0
        %v1497 = vsel %vm1002, %v1492, 0
        %1499 = vmatprep.subr.bf16.mxu0 0
        %1500 = vmatpush1.bf16.xpose.msra.mxu0 %v1497
        %1501 = vmatprep.subr.bf16.mxu0 0
        %1502 = vmatpush1.bf16.xpose.msra.mxu0 0
        %1503 = vmatprep.subr.bf16.mxu0 0
        %1504 = vmatpush1.bf16.xpose.msra.mxu0 0
        %1505 = vmatprep.subr.bf16.mxu0 0
        %1506 = vmatpush1.bf16.xpose.msra.mxu0 0
        %1507 = vmatprep.subr.bf16.mxu0 0
        %1508 = vmatpush1.bf16.xpose.msra.mxu0 0
        %1509 = vmatprep.subr.bf16.mxu0 0
        %1510 = vmatpush1.bf16.xpose.msra.mxu0 0
        %1511 = vmatprep.subr.bf16.mxu0 0
        %1512 = vmatpush1.bf16.xpose.msra.mxu0 0
        %1513 = vmatprep.subr.bf16.mxu0 0
        %1514 = vmatpush1.bf16.xpose.msra.mxu0 0
        %1515 = vmatprep.subr.bf16.mxu0 0
        %1516 = vmatpush1.bf16.xpose.msra.mxu0 0
        %1517 = vmatprep.subr.bf16.mxu0 0
        %1518 = vmatpush1.bf16.xpose.msra.mxu0 0
        %1519 = vmatprep.subr.bf16.mxu0 0
        %1520 = vmatpush1.bf16.xpose.msra.mxu0 0
        %1521 = vmatprep.subr.bf16.mxu0 0
        %1522 = vmatpush1.bf16.xpose.msra.mxu0 0
        %1523 = vmatprep.subr.bf16.mxu0 0
        %1524 = vmatpush1.bf16.xpose.msra.mxu0 0
        %1525 = vmatprep.subr.bf16.mxu0 0
        %1526 = vmatpush1.bf16.xpose.msra.mxu0 0
        %1527 = vmatprep.subr.bf16.mxu0 0
        %1528 = vmatpush1.bf16.xpose.msra.mxu0 0
        %1529 = vmatprep.subr.bf16.mxu0 0
        %1530 = vmatpush1.bf16.xpose.msra.mxu0 0
        %1531 = vmatprep.mubr.bf16.mxu0 0
        %1532 = vmatmul.mubr.bf16.gmra.mrb[0].mxu0 %v1494
        %v1533 = vpop.f32.mrb[0].mxu0
        %v1534 = vadd.f32 %v999, %v1533
        %v1535 = vpop.f32.mrb[0].mxu0
        %v1536 = vpop.f32.mrb[0].mxu0
        %v1537 = vpop.f32.mrb[0].mxu0
        %1538 = vdwg.mxu0
        %v1539 = vsel %vm1095, %v1484, -inf
        %1540 = vmax.xlane.f32.xlu0 %v1539
        %v1541 = vpop.xlane.xlu0 %1540
        %v1542 = vsel %vm1095, %v1534, -inf
        %1543 = vmax.xlane.f32.xlu0 %v1542
        %v1544 = vpop.xlane.xlu0 %1543
        %v1545 = vsub.f32 %v1484, %v1541
        %v1546 = vsub.f32 %v1534, %v1544
        %v1547 = vmul.f32 %v1545, 1.442695
        %v1548 = vpow.pop %v1547
        %v1549 = vmul.f32 %v1546, 1.442695
        %v1550 = vpow.pop %v1549
        %v1551 = vsel %vm1095, %v1548, 0.0
        %1552 = vadd.xlane.f32.xlu0 %v1551
        %v1553 = vpop.xlane.xlu0 %1552
        %v1554 = vsel %vm1095, %v1550, 0.0
        %1555 = vadd.xlane.f32.xlu0 %v1554
        %v1556 = vpop.xlane.xlu0 %1555
        %v1557 = vrcp.pop %v1553
        %v1558 = vrcp.pop %v1556
        %v1559 = vmul.f32 %v1548, %v1557
        %v1560 = vmul.f32 %v1550, %v1558
        %v1561 = vpack.c.bf16 %v1559, %v1559
        %v1562 = vpack.c.bf16 %v1560, %v1560
        %1563 = vrot.lane.b32.xlu0 %v966, 64
        %v1564 = vpop.permute.xlu0 %1563
        %v1566 = vsel %vm1095, %v1561, 0
        %v1569 = vsel %vm1123, %v1564, 0
        %1571 = vmatprep.subr.bf16.mxu0 0
        %1572 = vmatpush1.bf16.msra.mxu0 %v1569
        %1573 = vmatprep.subr.bf16.mxu0 0
        %1574 = vmatpush1.bf16.msra.mxu0 0
        %1575 = vmatprep.subr.bf16.mxu0 0
        %1576 = vmatpush1.bf16.msra.mxu0 0
        %1577 = vmatprep.subr.bf16.mxu0 0
        %1578 = vmatpush1.bf16.msra.mxu0 0
        %1579 = vmatprep.subr.bf16.mxu0 0
        %1580 = vmatpush1.bf16.msra.mxu0 0
        %1581 = vmatprep.subr.bf16.mxu0 0
        %1582 = vmatpush1.bf16.msra.mxu0 0
        %1583 = vmatprep.subr.bf16.mxu0 0
        %1584 = vmatpush1.bf16.msra.mxu0 0
        %1585 = vmatprep.subr.bf16.mxu0 0
        %1586 = vmatpush1.bf16.msra.mxu0 0
        %1587 = vmatprep.subr.bf16.mxu0 0
        %1588 = vmatpush1.bf16.msra.mxu0 0
        %1589 = vmatprep.subr.bf16.mxu0 0
        %1590 = vmatpush1.bf16.msra.mxu0 0
        %1591 = vmatprep.subr.bf16.mxu0 0
        %1592 = vmatpush1.bf16.msra.mxu0 0
        %1593 = vmatprep.subr.bf16.mxu0 0
        %1594 = vmatpush1.bf16.msra.mxu0 0
        %1595 = vmatprep.subr.bf16.mxu0 0
        %1596 = vmatpush1.bf16.msra.mxu0 0
        %1597 = vmatprep.subr.bf16.mxu0 0
        %1598 = vmatpush1.bf16.msra.mxu0 0
        %1599 = vmatprep.subr.bf16.mxu0 0
        %1600 = vmatpush1.bf16.msra.mxu0 0
        %1601 = vmatprep.subr.bf16.mxu0 0
        %1602 = vmatpush1.bf16.msra.mxu0 0
        %1603 = vmatprep.mubr.bf16.mxu0 0
        %1604 = vmatmul.mubr.bf16.gmra.mrb[0].mxu0 %v1566
        %v1605 = vpop.f32.mrb[0].mxu0
        %v1606 = vadd.f32 0.0, %v1605
        %v1607 = vpop.f32.mrb[0].mxu0
        %v1608 = vpop.f32.mrb[0].mxu0
        %v1609 = vpop.f32.mrb[0].mxu0
        %1610 = vdwg.mxu0
        %1611 = vrot.lane.b32.xlu0 %v967, 64
        %v1612 = vpop.permute.xlu0 %1611
        %v1614 = vsel %vm1095, %v1562, 0
        %v1617 = vsel %vm1123, %v1612, 0
        %1619 = vmatprep.subr.bf16.mxu0 0
        %1620 = vmatpush1.bf16.msra.mxu0 %v1617
        %1621 = vmatprep.subr.bf16.mxu0 0
        %1622 = vmatpush1.bf16.msra.mxu0 0
        %1623 = vmatprep.subr.bf16.mxu0 0
        %1624 = vmatpush1.bf16.msra.mxu0 0
        %1625 = vmatprep.subr.bf16.mxu0 0
        %1626 = vmatpush1.bf16.msra.mxu0 0
        %1627 = vmatprep.subr.bf16.mxu0 0
        %1628 = vmatpush1.bf16.msra.mxu0 0
        %1629 = vmatprep.subr.bf16.mxu0 0
        %1630 = vmatpush1.bf16.msra.mxu0 0
        %1631 = vmatprep.subr.bf16.mxu0 0
        %1632 = vmatpush1.bf16.msra.mxu0 0
        %1633 = vmatprep.subr.bf16.mxu0 0
        %1634 = vmatpush1.bf16.msra.mxu0 0
        %1635 = vmatprep.subr.bf16.mxu0 0
        %1636 = vmatpush1.bf16.msra.mxu0 0
        %1637 = vmatprep.subr.bf16.mxu0 0
        %1638 = vmatpush1.bf16.msra.mxu0 0
        %1639 = vmatprep.subr.bf16.mxu0 0
        %1640 = vmatpush1.bf16.msra.mxu0 0
        %1641 = vmatprep.subr.bf16.mxu0 0
        %1642 = vmatpush1.bf16.msra.mxu0 0
        %1643 = vmatprep.subr.bf16.mxu0 0
        %1644 = vmatpush1.bf16.msra.mxu0 0
        %1645 = vmatprep.subr.bf16.mxu0 0
        %1646 = vmatpush1.bf16.msra.mxu0 0
        %1647 = vmatprep.subr.bf16.mxu0 0
        %1648 = vmatpush1.bf16.msra.mxu0 0
        %1649 = vmatprep.subr.bf16.mxu0 0
        %1650 = vmatpush1.bf16.msra.mxu0 0
        %1651 = vmatprep.mubr.bf16.mxu0 0
        %1652 = vmatmul.mubr.bf16.gmra.mrb[0].mxu0 %v1614
        %v1653 = vpop.f32.mrb[0].mxu0
        %v1654 = vadd.f32 0.0, %v1653
        %v1655 = vpop.f32.mrb[0].mxu0
        %v1656 = vpop.f32.mrb[0].mxu0
        %v1657 = vpop.f32.mrb[0].mxu0
        %1658 = vdwg.mxu0
        %1659 = vrot.lane.b32.xlu0 %v962, 32
        %v1660 = vpop.permute.xlu0 %1659
        %1661 = vrot.lane.b32.xlu0 %v964, 32
        %v1662 = vpop.permute.xlu0 %1661
        %v1664 = vsel %vm1002, %v1660, 0
        %v1667 = vsel %vm1002, %v1662, 0
        %1669 = vmatprep.subr.bf16.mxu0 0
        %1670 = vmatpush1.bf16.xpose.msra.mxu0 %v1667
        %1671 = vmatprep.subr.bf16.mxu0 0
        %1672 = vmatpush1.bf16.xpose.msra.mxu0 0
        %1673 = vmatprep.subr.bf16.mxu0 0
        %1674 = vmatpush1.bf16.xpose.msra.mxu0 0
        %1675 = vmatprep.subr.bf16.mxu0 0
        %1676 = vmatpush1.bf16.xpose.msra.mxu0 0
        %1677 = vmatprep.subr.bf16.mxu0 0
        %1678 = vmatpush1.bf16.xpose.msra.mxu0 0
        %1679 = vmatprep.subr.bf16.mxu0 0
        %1680 = vmatpush1.bf16.xpose.msra.mxu0 0
        %1681 = vmatprep.subr.bf16.mxu0 0
        %1682 = vmatpush1.bf16.xpose.msra.mxu0 0
        %1683 = vmatprep.subr.bf16.mxu0 0
        %1684 = vmatpush1.bf16.xpose.msra.mxu0 0
        %1685 = vmatprep.subr.bf16.mxu0 0
        %1686 = vmatpush1.bf16.xpose.msra.mxu0 0
        %1687 = vmatprep.subr.bf16.mxu0 0
        %1688 = vmatpush1.bf16.xpose.msra.mxu0 0
        %1689 = vmatprep.subr.bf16.mxu0 0
        %1690 = vmatpush1.bf16.xpose.msra.mxu0 0
        %1691 = vmatprep.subr.bf16.mxu0 0
        %1692 = vmatpush1.bf16.xpose.msra.mxu0 0
        %1693 = vmatprep.subr.bf16.mxu0 0
        %1694 = vmatpush1.bf16.xpose.msra.mxu0 0
        %1695 = vmatprep.subr.bf16.mxu0 0
        %1696 = vmatpush1.bf16.xpose.msra.mxu0 0
        %1697 = vmatprep.subr.bf16.mxu0 0
        %1698 = vmatpush1.bf16.xpose.msra.mxu0 0
        %1699 = vmatprep.subr.bf16.mxu0 0
        %1700 = vmatpush1.bf16.xpose.msra.mxu0 0
        %1701 = vmatprep.mubr.bf16.mxu0 0
        %1702 = vmatmul.mubr.bf16.gmra.mrb[0].mxu0 %v1664
        %v1703 = vpop.f32.mrb[0].mxu0
        %v1704 = vadd.f32 %v995, %v1703
        %v1705 = vpop.f32.mrb[0].mxu0
        %v1706 = vpop.f32.mrb[0].mxu0
        %v1707 = vpop.f32.mrb[0].mxu0
        %1708 = vdwg.mxu0
        %1709 = vrot.lane.b32.xlu0 %v963, 32
        %v1710 = vpop.permute.xlu0 %1709
        %1711 = vrot.lane.b32.xlu0 %v965, 32
        %v1712 = vpop.permute.xlu0 %1711
        %v1714 = vsel %vm1002, %v1710, 0
        %v1717 = vsel %vm1002, %v1712, 0
        %1719 = vmatprep.subr.bf16.mxu0 0
        %1720 = vmatpush1.bf16.xpose.msra.mxu0 %v1717
        %1721 = vmatprep.subr.bf16.mxu0 0
        %1722 = vmatpush1.bf16.xpose.msra.mxu0 0
        %1723 = vmatprep.subr.bf16.mxu0 0
        %1724 = vmatpush1.bf16.xpose.msra.mxu0 0
        %1725 = vmatprep.subr.bf16.mxu0 0
        %1726 = vmatpush1.bf16.xpose.msra.mxu0 0
        %1727 = vmatprep.subr.bf16.mxu0 0
        %1728 = vmatpush1.bf16.xpose.msra.mxu0 0
        %1729 = vmatprep.subr.bf16.mxu0 0
        %1730 = vmatpush1.bf16.xpose.msra.mxu0 0
        %1731 = vmatprep.subr.bf16.mxu0 0
        %1732 = vmatpush1.bf16.xpose.msra.mxu0 0
        %1733 = vmatprep.subr.bf16.mxu0 0
        %1734 = vmatpush1.bf16.xpose.msra.mxu0 0
        %1735 = vmatprep.subr.bf16.mxu0 0
        %1736 = vmatpush1.bf16.xpose.msra.mxu0 0
        %1737 = vmatprep.subr.bf16.mxu0 0
        %1738 = vmatpush1.bf16.xpose.msra.mxu0 0
        %1739 = vmatprep.subr.bf16.mxu0 0
        %1740 = vmatpush1.bf16.xpose.msra.mxu0 0
        %1741 = vmatprep.subr.bf16.mxu0 0
        %1742 = vmatpush1.bf16.xpose.msra.mxu0 0
        %1743 = vmatprep.subr.bf16.mxu0 0
        %1744 = vmatpush1.bf16.xpose.msra.mxu0 0
        %1745 = vmatprep.subr.bf16.mxu0 0
        %1746 = vmatpush1.bf16.xpose.msra.mxu0 0
        %1747 = vmatprep.subr.bf16.mxu0 0
        %1748 = vmatpush1.bf16.xpose.msra.mxu0 0
        %1749 = vmatprep.subr.bf16.mxu0 0
        %1750 = vmatpush1.bf16.xpose.msra.mxu0 0
        %1751 = vmatprep.mubr.bf16.mxu0 0
        %1752 = vmatmul.mubr.bf16.gmra.mrb[0].mxu0 %v1714
        %v1753 = vpop.f32.mrb[0].mxu0
        %v1754 = vadd.f32 %v999, %v1753
        %v1755 = vpop.f32.mrb[0].mxu0
        %v1756 = vpop.f32.mrb[0].mxu0
        %v1757 = vpop.f32.mrb[0].mxu0
        %1758 = vdwg.mxu0
        %v1759 = vsel %vm1095, %v1704, -inf
        %1760 = vmax.xlane.f32.xlu0 %v1759
        %v1761 = vpop.xlane.xlu0 %1760
        %v1762 = vsel %vm1095, %v1754, -inf
        %1763 = vmax.xlane.f32.xlu0 %v1762
        %v1764 = vpop.xlane.xlu0 %1763
        %v1765 = vsub.f32 %v1704, %v1761
        %v1766 = vsub.f32 %v1754, %v1764
        %v1767 = vmul.f32 %v1765, 1.442695
        %v1768 = vpow.pop %v1767
        %v1769 = vmul.f32 %v1766, 1.442695
        %v1770 = vpow.pop %v1769
        %v1771 = vsel %vm1095, %v1768, 0.0
        %1772 = vadd.xlane.f32.xlu0 %v1771
        %v1773 = vpop.xlane.xlu0 %1772
        %v1774 = vsel %vm1095, %v1770, 0.0
        %1775 = vadd.xlane.f32.xlu0 %v1774
        %v1776 = vpop.xlane.xlu0 %1775
        %v1777 = vrcp.pop %v1773
        %v1778 = vrcp.pop %v1776
        %v1779 = vmul.f32 %v1768, %v1777
        %v1780 = vmul.f32 %v1770, %v1778
        %v1781 = vpack.c.bf16 %v1779, %v1779
        %v1782 = vpack.c.bf16 %v1780, %v1780
        %1783 = vrot.lane.b32.xlu0 %v966, 32
        %v1784 = vpop.permute.xlu0 %1783
        %v1786 = vsel %vm1095, %v1781, 0
        %v1789 = vsel %vm1123, %v1784, 0
        %1791 = vmatprep.subr.bf16.mxu0 0
        %1792 = vmatpush1.bf16.msra.mxu0 %v1789
        %1793 = vmatprep.subr.bf16.mxu0 0
        %1794 = vmatpush1.bf16.msra.mxu0 0
        %1795 = vmatprep.subr.bf16.mxu0 0
        %1796 = vmatpush1.bf16.msra.mxu0 0
        %1797 = vmatprep.subr.bf16.mxu0 0
        %1798 = vmatpush1.bf16.msra.mxu0 0
        %1799 = vmatprep.subr.bf16.mxu0 0
        %1800 = vmatpush1.bf16.msra.mxu0 0
        %1801 = vmatprep.subr.bf16.mxu0 0
        %1802 = vmatpush1.bf16.msra.mxu0 0
        %1803 = vmatprep.subr.bf16.mxu0 0
        %1804 = vmatpush1.bf16.msra.mxu0 0
        %1805 = vmatprep.subr.bf16.mxu0 0
        %1806 = vmatpush1.bf16.msra.mxu0 0
        %1807 = vmatprep.subr.bf16.mxu0 0
        %1808 = vmatpush1.bf16.msra.mxu0 0
        %1809 = vmatprep.subr.bf16.mxu0 0
        %1810 = vmatpush1.bf16.msra.mxu0 0
        %1811 = vmatprep.subr.bf16.mxu0 0
        %1812 = vmatpush1.bf16.msra.mxu0 0
        %1813 = vmatprep.subr.bf16.mxu0 0
        %1814 = vmatpush1.bf16.msra.mxu0 0
        %1815 = vmatprep.subr.bf16.mxu0 0
        %1816 = vmatpush1.bf16.msra.mxu0 0
        %1817 = vmatprep.subr.bf16.mxu0 0
        %1818 = vmatpush1.bf16.msra.mxu0 0
        %1819 = vmatprep.subr.bf16.mxu0 0
        %1820 = vmatpush1.bf16.msra.mxu0 0
        %1821 = vmatprep.subr.bf16.mxu0 0
        %1822 = vmatpush1.bf16.msra.mxu0 0
        %1823 = vmatprep.mubr.bf16.mxu0 0
        %1824 = vmatmul.mubr.bf16.gmra.mrb[0].mxu0 %v1786
        %v1825 = vpop.f32.mrb[0].mxu0
        %v1826 = vadd.f32 0.0, %v1825
        %v1827 = vpop.f32.mrb[0].mxu0
        %v1828 = vpop.f32.mrb[0].mxu0
        %v1829 = vpop.f32.mrb[0].mxu0
        %1830 = vdwg.mxu0
        %1831 = vrot.lane.b32.xlu0 %v967, 32
        %v1832 = vpop.permute.xlu0 %1831
        %v1834 = vsel %vm1095, %v1782, 0
        %v1837 = vsel %vm1123, %v1832, 0
        %1839 = vmatprep.subr.bf16.mxu0 0
        %1840 = vmatpush1.bf16.msra.mxu0 %v1837
        %1841 = vmatprep.subr.bf16.mxu0 0
        %1842 = vmatpush1.bf16.msra.mxu0 0
        %1843 = vmatprep.subr.bf16.mxu0 0
        %1844 = vmatpush1.bf16.msra.mxu0 0
        %1845 = vmatprep.subr.bf16.mxu0 0
        %1846 = vmatpush1.bf16.msra.mxu0 0
        %1847 = vmatprep.subr.bf16.mxu0 0
        %1848 = vmatpush1.bf16.msra.mxu0 0
        %1849 = vmatprep.subr.bf16.mxu0 0
        %1850 = vmatpush1.bf16.msra.mxu0 0
        %1851 = vmatprep.subr.bf16.mxu0 0
        %1852 = vmatpush1.bf16.msra.mxu0 0
        %1853 = vmatprep.subr.bf16.mxu0 0
        %1854 = vmatpush1.bf16.msra.mxu0 0
        %1855 = vmatprep.subr.bf16.mxu0 0
        %1856 = vmatpush1.bf16.msra.mxu0 0
        %1857 = vmatprep.subr.bf16.mxu0 0
        %1858 = vmatpush1.bf16.msra.mxu0 0
        %1859 = vmatprep.subr.bf16.mxu0 0
        %1860 = vmatpush1.bf16.msra.mxu0 0
        %1861 = vmatprep.subr.bf16.mxu0 0
        %1862 = vmatpush1.bf16.msra.mxu0 0
        %1863 = vmatprep.subr.bf16.mxu0 0
        %1864 = vmatpush1.bf16.msra.mxu0 0
        %1865 = vmatprep.subr.bf16.mxu0 0
        %1866 = vmatpush1.bf16.msra.mxu0 0
        %1867 = vmatprep.subr.bf16.mxu0 0
        %1868 = vmatpush1.bf16.msra.mxu0 0
        %1869 = vmatprep.subr.bf16.mxu0 0
        %1870 = vmatpush1.bf16.msra.mxu0 0
        %1871 = vmatprep.mubr.bf16.mxu0 0
        %1872 = vmatmul.mubr.bf16.gmra.mrb[0].mxu0 %v1834
        %v1873 = vpop.f32.mrb[0].mxu0
        %v1874 = vadd.f32 0.0, %v1873
        %v1875 = vpop.f32.mrb[0].mxu0
        %v1876 = vpop.f32.mrb[0].mxu0
        %v1877 = vpop.f32.mrb[0].mxu0
        %1878 = vdwg.mxu0
        %1881 = vrot.lane.b32.xlu0 %v1385, 32
        %v1882 = vpop.permute.xlu0 %1881
        %1883 = vrot.lane.b32.xlu0 %v1434, 32
        %v1884 = vpop.permute.xlu0 %1883
        %1889 = vrot.lane.b32.xlu0 %v1606, 64
        %v1890 = vpop.permute.xlu0 %1889
        %1891 = vrot.lane.b32.xlu0 %v1654, 64
        %v1892 = vpop.permute.xlu0 %1891
        %1897 = vrot.lane.b32.xlu0 %v1826, 96
        %v1898 = vpop.permute.xlu0 %1897
        %1899 = vrot.lane.b32.xlu0 %v1874, 96
        %v1900 = vpop.permute.xlu0 %1899
        %v1903 = vsel %vm1002, %v1162, %v1882
        %v1904 = vsel %vm1002, %v1208, %v1884
        %vm1905 = vcmask 523264
        %v1906 = vsel %vm1905, %v1903, %v1890
        %v1907 = vsel %vm1905, %v1904, %v1892
        %vm1908 = vcmask 785408
        %v1909 = vsel %vm1908, %v1906, %v1898
        %v1910 = vsel %vm1908, %v1907, %v1900
        %v1911 = vpack.c.bf16 %v1910, %v1909
        %v1912 = vld [vmem:[%s666] sm:$0xf]
        %v1913 = vld [vmem:[%s666 + $0x4] sm:$0xf]
        %v1914 = vld [vmem:[%s666 + $0x8] sm:$0xf]
        %v1915 = vld [vmem:[%s666 + $0xc] sm:$0xf]
        %v1916 = vld [vmem:[%s666 + $0x10] sm:$0xf]
        %v1917 = vld [vmem:[%s666 + $0x14] sm:$0xf]
        %v1918 = vld [vmem:[%s666 + $0x18] sm:$0xf]
        %v1919 = vld [vmem:[%s666 + $0x1c] sm:$0xf]
        %v1920 = vld [vmem:[%s666 + $0x20] sm:$0xf]
        %v1921 = vld [vmem:[%s666 + $0x24] sm:$0xf]
        %v1922 = vld [vmem:[%s666 + $0x28] sm:$0xf]
        %v1923 = vld [vmem:[%s666 + $0x2c] sm:$0xf]
        %v1924 = vld [vmem:[%s666 + $0x30] sm:$0xf]
        %v1925 = vld [vmem:[%s666 + $0x34] sm:$0xf]
        %v1926 = vld [vmem:[%s666 + $0x38] sm:$0xf]
        %v1927 = vld [vmem:[%s666 + $0x3c] sm:$0xf]
        %v1928 = vld [vmem:[%s669] sm:$0x1]
        %v1930 = vlaneseq
        %v1931 = vshrl.u32 %v1930, 7
        %v1932 = vsub.s32 0, %v1931
        %v1933 = vrot.slane %v1928, %v1932
        %v1951 = vunpack.c.l.b16 %v1912
        %v1952 = vunpack.c.l.b16 %v1913
        %v1953 = vunpack.c.l.b16 %v1914
        %v1954 = vunpack.c.l.b16 %v1915
        %v1955 = vunpack.c.l.b16 %v1916
        %v1956 = vunpack.c.l.b16 %v1917
        %v1957 = vunpack.c.l.b16 %v1918
        %v1958 = vunpack.c.l.b16 %v1919
        %v1959 = vunpack.c.l.b16 %v1920
        %v1960 = vunpack.c.l.b16 %v1921
        %v1961 = vunpack.c.l.b16 %v1922
        %v1962 = vunpack.c.l.b16 %v1923
        %v1963 = vunpack.c.l.b16 %v1924
        %v1964 = vunpack.c.l.b16 %v1925
        %v1965 = vunpack.c.l.b16 %v1926
        %v1966 = vunpack.c.l.b16 %v1927
        %v1967 = vpack.c.b16 %v1952, %v1951
        %v1968 = vpack.c.b16 %v1954, %v1953
        %v1969 = vpack.c.b16 %v1956, %v1955
        %v1970 = vpack.c.b16 %v1958, %v1957
        %v1971 = vpack.c.b16 %v1960, %v1959
        %v1972 = vpack.c.b16 %v1962, %v1961
        %v1973 = vpack.c.b16 %v1964, %v1963
        %v1974 = vpack.c.b16 %v1966, %v1965
        %1983 = vmatprep.subr.bf16.mxu0 0
        %1984 = vmatpush1.bf16.msra.mxu0 %v1967
        %1985 = vmatprep.subr.bf16.mxu0 0
        %1986 = vmatpush1.bf16.msra.mxu0 %v1968
        %1987 = vmatprep.subr.bf16.mxu0 0
        %1988 = vmatpush1.bf16.msra.mxu0 %v1969
        %1989 = vmatprep.subr.bf16.mxu0 0
        %1990 = vmatpush1.bf16.msra.mxu0 %v1970
        %1991 = vmatprep.subr.bf16.mxu0 0
        %1992 = vmatpush1.bf16.msra.mxu0 %v1971
        %1993 = vmatprep.subr.bf16.mxu0 0
        %1994 = vmatpush1.bf16.msra.mxu0 %v1972
        %1995 = vmatprep.subr.bf16.mxu0 0
        %1996 = vmatpush1.bf16.msra.mxu0 %v1973
        %1997 = vmatprep.subr.bf16.mxu0 0
        %1998 = vmatpush1.bf16.msra.mxu0 %v1974
        %1999 = vmatprep.subr.bf16.mxu0 0
        %2000 = vmatpush1.bf16.msra.mxu0 0
        %2001 = vmatprep.subr.bf16.mxu0 0
        %2002 = vmatpush1.bf16.msra.mxu0 0
        %2003 = vmatprep.subr.bf16.mxu0 0
        %2004 = vmatpush1.bf16.msra.mxu0 0
        %2005 = vmatprep.subr.bf16.mxu0 0
        %2006 = vmatpush1.bf16.msra.mxu0 0
        %2007 = vmatprep.subr.bf16.mxu0 0
        %2008 = vmatpush1.bf16.msra.mxu0 0
        %2009 = vmatprep.subr.bf16.mxu0 0
        %2010 = vmatpush1.bf16.msra.mxu0 0
        %2011 = vmatprep.subr.bf16.mxu0 0
        %2012 = vmatpush1.bf16.msra.mxu0 0
        %2013 = vmatprep.subr.bf16.mxu0 0
        %2014 = vmatpush1.bf16.msra.mxu0 0
        %2015 = vmatprep.mubr.bf16.mxu0 0
        %2016 = vmatmul.mubr.bf16.gmra.mrb[0].mxu0 %v1911
        %v2017 = vpop.f32.mrb[0].mxu0
        %v2018 = vadd.f32 %v1933, %v2017
        %v2019 = vpop.f32.mrb[0].mxu0
        %v2020 = vpop.f32.mrb[0].mxu0
        %v2021 = vadd.f32 %v1933, %v2020
        %v2022 = vpop.f32.mrb[0].mxu0
        %2023 = vdwg.mxu0
        %v2024 = vadd.f32 %v698, %v2018
        %v2025 = vadd.f32 %v699, %v2021
        %v2026 = vld [vmem:[%s672] sm:$0x1]
        %v2027 = vld [vmem:[%s675] sm:$0x1]
        %2028 = vadd.xlane.f32.xlu0 %v2024
        %v2029 = vpop.xlane.xlu0 %2028
        %2030 = vadd.xlane.f32.xlu0 %v2025
        %v2031 = vpop.xlane.xlu0 %2030
        %v2032 = vrcp.pop 128.0
        %v2033 = vmul.f32 %v2029, %v2032
        %v2034 = vmul.f32 %v2031, %v2032
        %v2035 = vsub.f32 %v2024, %v2033
        %v2036 = vsub.f32 %v2025, %v2034
        %v2037 = vmul.f32 %v2035, %v2035
        %v2038 = vmul.f32 %v2036, %v2036
        %2039 = vadd.xlane.f32.xlu0 %v2037
        %v2040 = vpop.xlane.xlu0 %2039
        %2041 = vadd.xlane.f32.xlu0 %v2038
        %v2042 = vpop.xlane.xlu0 %2041
        %v2043 = vmul.f32 %v2040, %v2032
        %v2044 = vmul.f32 %v2042, %v2032
        %v2045 = vadd.f32 %v2043, 1e-12
        %v2046 = vadd.f32 %v2044, 1e-12
        %v2047 = vrsqrt.pop %v2045
        %v2048 = vrsqrt.pop %v2046
        %v2049 = vmul.f32 %v2035, %v2047
        %v2050 = vmul.f32 %v2036, %v2048
        %v2052 = vlaneseq
        %v2053 = vshrl.u32 %v2052, 7
        %v2054 = vsub.s32 0, %v2053
        %v2055 = vrot.slane %v2026, %v2054
        %v2057 = vmul.f32 %v2049, %v2055
        %v2058 = vmul.f32 %v2050, %v2055
        %v2060 = vlaneseq
        %v2061 = vshrl.u32 %v2060, 7
        %v2062 = vsub.s32 0, %v2061
        %v2063 = vrot.slane %v2027, %v2062
        %v2065 = vadd.f32 %v2057, %v2063
        %v2066 = vadd.f32 %v2058, %v2063
        %v2067 = vpack.c.bf16 %v2066, %v2065
        %v2068 = vld [vmem:[%s568] sm:$0xff]
        %v2069 = vld [vmem:[%s568 + $0x8] sm:$0xff]
        %v2070 = vld [vmem:[%s568 + $0x10] sm:$0xff]
        %v2071 = vld [vmem:[%s568 + $0x18] sm:$0xff]
        %v2072 = vld [vmem:[%s568 + $0x20] sm:$0xff]
        %v2073 = vld [vmem:[%s568 + $0x28] sm:$0xff]
        %v2074 = vld [vmem:[%s568 + $0x30] sm:$0xff]
        %v2075 = vld [vmem:[%s568 + $0x38] sm:$0xff]
        %v2076 = vld [vmem:[%s568 + $0x40] sm:$0xff]
        %v2077 = vld [vmem:[%s568 + $0x48] sm:$0xff]
        %v2078 = vld [vmem:[%s568 + $0x50] sm:$0xff]
        %v2079 = vld [vmem:[%s568 + $0x58] sm:$0xff]
        %v2080 = vld [vmem:[%s568 + $0x60] sm:$0xff]
        %v2081 = vld [vmem:[%s568 + $0x68] sm:$0xff]
        %v2082 = vld [vmem:[%s568 + $0x70] sm:$0xff]
        %v2083 = vld [vmem:[%s568 + $0x78] sm:$0xff]
        %v2084 = vld [vmem:[%s568 + $0x80] sm:$0xff]
        %v2085 = vld [vmem:[%s568 + $0x88] sm:$0xff]
        %v2086 = vld [vmem:[%s568 + $0x90] sm:$0xff]
        %v2087 = vld [vmem:[%s568 + $0x98] sm:$0xff]
        %v2088 = vld [vmem:[%s568 + $0xa0] sm:$0xff]
        %v2089 = vld [vmem:[%s568 + $0xa8] sm:$0xff]
        %v2090 = vld [vmem:[%s568 + $0xb0] sm:$0xff]
        %v2091 = vld [vmem:[%s568 + $0xb8] sm:$0xff]
        %v2092 = vld [vmem:[%s568 + $0xc0] sm:$0xff]
        %v2093 = vld [vmem:[%s568 + $0xc8] sm:$0xff]
        %v2094 = vld [vmem:[%s568 + $0xd0] sm:$0xff]
        %v2095 = vld [vmem:[%s568 + $0xd8] sm:$0xff]
        %v2096 = vld [vmem:[%s568 + $0xe0] sm:$0xff]
        %v2097 = vld [vmem:[%s568 + $0xe8] sm:$0xff]
        %v2098 = vld [vmem:[%s568 + $0xf0] sm:$0xff]
        %v2099 = vld [vmem:[%s568 + $0xf8] sm:$0xff]
        %v2100 = vld [vmem:[%s679] sm:$0xf]
        %v2102 = vlaneseq
        %v2103 = vshrl.u32 %v2102, 7
        %v2104 = vsub.s32 0, %v2103
        %v2105 = vrot.slane %v2100, %v2104
        %v2106 = vlaneseq
        %v2107 = vshrl.u32 %v2106, 7
        %v2108 = vsub.s32 1, %v2107
        %v2109 = vrot.slane %v2100, %v2108
        %v2110 = vlaneseq
        %v2111 = vshrl.u32 %v2110, 7
        %v2112 = vsub.s32 2, %v2111
        %v2113 = vrot.slane %v2100, %v2112
        %v2114 = vlaneseq
        %v2115 = vshrl.u32 %v2114, 7
        %v2116 = vsub.s32 3, %v2115
        %v2117 = vrot.slane %v2100, %v2116
        %v2154 = vunpack.c.l.b16 %v2068
        %v2155 = vunpack.c.h.b16 %v2068
        %v2156 = vunpack.c.l.b16 %v2069
        %v2157 = vunpack.c.h.b16 %v2069
        %v2158 = vunpack.c.l.b16 %v2070
        %v2159 = vunpack.c.h.b16 %v2070
        %v2160 = vunpack.c.l.b16 %v2071
        %v2161 = vunpack.c.h.b16 %v2071
        %v2162 = vunpack.c.l.b16 %v2072
        %v2163 = vunpack.c.h.b16 %v2072
        %v2164 = vunpack.c.l.b16 %v2073
        %v2165 = vunpack.c.h.b16 %v2073
        %v2166 = vunpack.c.l.b16 %v2074
        %v2167 = vunpack.c.h.b16 %v2074
        %v2168 = vunpack.c.l.b16 %v2075
        %v2169 = vunpack.c.h.b16 %v2075
        %v2170 = vunpack.c.l.b16 %v2076
        %v2171 = vunpack.c.h.b16 %v2076
        %v2172 = vunpack.c.l.b16 %v2077
        %v2173 = vunpack.c.h.b16 %v2077
        %v2174 = vunpack.c.l.b16 %v2078
        %v2175 = vunpack.c.h.b16 %v2078
        %v2176 = vunpack.c.l.b16 %v2079
        %v2177 = vunpack.c.h.b16 %v2079
        %v2178 = vunpack.c.l.b16 %v2080
        %v2179 = vunpack.c.h.b16 %v2080
        %v2180 = vunpack.c.l.b16 %v2081
        %v2181 = vunpack.c.h.b16 %v2081
        %v2182 = vunpack.c.l.b16 %v2082
        %v2183 = vunpack.c.h.b16 %v2082
        %v2184 = vunpack.c.l.b16 %v2083
        %v2185 = vunpack.c.h.b16 %v2083
        %v2186 = vunpack.c.l.b16 %v2084
        %v2187 = vunpack.c.h.b16 %v2084
        %v2188 = vunpack.c.l.b16 %v2085
        %v2189 = vunpack.c.h.b16 %v2085
        %v2190 = vunpack.c.l.b16 %v2086
        %v2191 = vunpack.c.h.b16 %v2086
        %v2192 = vunpack.c.l.b16 %v2087
        %v2193 = vunpack.c.h.b16 %v2087
        %v2194 = vunpack.c.l.b16 %v2088
        %v2195 = vunpack.c.h.b16 %v2088
        %v2196 = vunpack.c.l.b16 %v2089
        %v2197 = vunpack.c.h.b16 %v2089
        %v2198 = vunpack.c.l.b16 %v2090
        %v2199 = vunpack.c.h.b16 %v2090
        %v2200 = vunpack.c.l.b16 %v2091
        %v2201 = vunpack.c.h.b16 %v2091
        %v2202 = vunpack.c.l.b16 %v2092
        %v2203 = vunpack.c.h.b16 %v2092
        %v2204 = vunpack.c.l.b16 %v2093
        %v2205 = vunpack.c.h.b16 %v2093
        %v2206 = vunpack.c.l.b16 %v2094
        %v2207 = vunpack.c.h.b16 %v2094
        %v2208 = vunpack.c.l.b16 %v2095
        %v2209 = vunpack.c.h.b16 %v2095
        %v2210 = vunpack.c.l.b16 %v2096
        %v2211 = vunpack.c.h.b16 %v2096
        %v2212 = vunpack.c.l.b16 %v2097
        %v2213 = vunpack.c.h.b16 %v2097
        %v2214 = vunpack.c.l.b16 %v2098
        %v2215 = vunpack.c.h.b16 %v2098
        %v2216 = vunpack.c.l.b16 %v2099
        %v2217 = vunpack.c.h.b16 %v2099
        %v2218 = vpack.c.b16 %v2158, %v2154
        %v2219 = vpack.c.b16 %v2159, %v2155
        %v2220 = vpack.c.b16 %v2160, %v2156
        %v2221 = vpack.c.b16 %v2161, %v2157
        %v2222 = vpack.c.b16 %v2166, %v2162
        %v2223 = vpack.c.b16 %v2167, %v2163
        %v2224 = vpack.c.b16 %v2168, %v2164
        %v2225 = vpack.c.b16 %v2169, %v2165
        %v2226 = vpack.c.b16 %v2174, %v2170
        %v2227 = vpack.c.b16 %v2175, %v2171
        %v2228 = vpack.c.b16 %v2176, %v2172
        %v2229 = vpack.c.b16 %v2177, %v2173
        %v2230 = vpack.c.b16 %v2182, %v2178
        %v2231 = vpack.c.b16 %v2183, %v2179
        %v2232 = vpack.c.b16 %v2184, %v2180
        %v2233 = vpack.c.b16 %v2185, %v2181
        %v2234 = vpack.c.b16 %v2190, %v2186
        %v2235 = vpack.c.b16 %v2191, %v2187
        %v2236 = vpack.c.b16 %v2192, %v2188
        %v2237 = vpack.c.b16 %v2193, %v2189
        %v2238 = vpack.c.b16 %v2198, %v2194
        %v2239 = vpack.c.b16 %v2199, %v2195
        %v2240 = vpack.c.b16 %v2200, %v2196
        %v2241 = vpack.c.b16 %v2201, %v2197
        %v2242 = vpack.c.b16 %v2206, %v2202
        %v2243 = vpack.c.b16 %v2207, %v2203
        %v2244 = vpack.c.b16 %v2208, %v2204
        %v2245 = vpack.c.b16 %v2209, %v2205
        %v2246 = vpack.c.b16 %v2214, %v2210
        %v2247 = vpack.c.b16 %v2215, %v2211
        %v2248 = vpack.c.b16 %v2216, %v2212
        %v2249 = vpack.c.b16 %v2217, %v2213
        %2282 = vmatprep.subr.bf16.mxu0 %v2219
        %2283 = vmatpush1.bf16.msra.mxu0 %v2218
        %2284 = vmatprep.subr.bf16.mxu0 %v2223
        %2285 = vmatpush1.bf16.msra.mxu0 %v2222
        %2286 = vmatprep.subr.bf16.mxu0 %v2227
        %2287 = vmatpush1.bf16.msra.mxu0 %v2226
        %2288 = vmatprep.subr.bf16.mxu0 %v2231
        %2289 = vmatpush1.bf16.msra.mxu0 %v2230
        %2290 = vmatprep.subr.bf16.mxu0 %v2235
        %2291 = vmatpush1.bf16.msra.mxu0 %v2234
        %2292 = vmatprep.subr.bf16.mxu0 %v2239
        %2293 = vmatpush1.bf16.msra.mxu0 %v2238
        %2294 = vmatprep.subr.bf16.mxu0 %v2243
        %2295 = vmatpush1.bf16.msra.mxu0 %v2242
        %2296 = vmatprep.subr.bf16.mxu0 %v2247
        %2297 = vmatpush1.bf16.msra.mxu0 %v2246
        %2298 = vmatprep.subr.bf16.mxu0 0
        %2299 = vmatpush1.bf16.msra.mxu0 0
        %2300 = vmatprep.subr.bf16.mxu0 0
        %2301 = vmatpush1.bf16.msra.mxu0 0
        %2302 = vmatprep.subr.bf16.mxu0 0
        %2303 = vmatpush1.bf16.msra.mxu0 0
        %2304 = vmatprep.subr.bf16.mxu0 0
        %2305 = vmatpush1.bf16.msra.mxu0 0
        %2306 = vmatprep.subr.bf16.mxu0 0
        %2307 = vmatpush1.bf16.msra.mxu0 0
        %2308 = vmatprep.subr.bf16.mxu0 0
        %2309 = vmatpush1.bf16.msra.mxu0 0
        %2310 = vmatprep.subr.bf16.mxu0 0
        %2311 = vmatpush1.bf16.msra.mxu0 0
        %2312 = vmatprep.subr.bf16.mxu0 0
        %2313 = vmatpush1.bf16.msra.mxu0 0
        %2314 = vmatprep.mubr.bf16.mxu0 0
        %2315 = vmatmul.mubr.bf16.gmra.mrb[0].mxu0 %v2067
        %v2316 = vpop.f32.mrb[0].mxu0
        %v2317 = vadd.f32 %v2105, %v2316
        %v2318 = vpop.f32.mrb[0].mxu0
        %v2319 = vadd.f32 %v2109, %v2318
        %v2320 = vpop.f32.mrb[0].mxu0
        %v2321 = vadd.f32 %v2105, %v2320
        %v2322 = vpop.f32.mrb[0].mxu0
        %v2323 = vadd.f32 %v2109, %v2322
        %2324 = vdwg.mxu0
        %2325 = vmatprep.subr.bf16.mxu0 %v2221
        %2326 = vmatpush1.bf16.msra.mxu0 %v2220
        %2327 = vmatprep.subr.bf16.mxu0 %v2225
        %2328 = vmatpush1.bf16.msra.mxu0 %v2224
        %2329 = vmatprep.subr.bf16.mxu0 %v2229
        %2330 = vmatpush1.bf16.msra.mxu0 %v2228
        %2331 = vmatprep.subr.bf16.mxu0 %v2233
        %2332 = vmatpush1.bf16.msra.mxu0 %v2232
        %2333 = vmatprep.subr.bf16.mxu0 %v2237
        %2334 = vmatpush1.bf16.msra.mxu0 %v2236
        %2335 = vmatprep.subr.bf16.mxu0 %v2241
        %2336 = vmatpush1.bf16.msra.mxu0 %v2240
        %2337 = vmatprep.subr.bf16.mxu0 %v2245
        %2338 = vmatpush1.bf16.msra.mxu0 %v2244
        %2339 = vmatprep.subr.bf16.mxu0 %v2249
        %2340 = vmatpush1.bf16.msra.mxu0 %v2248
        %2341 = vmatprep.subr.bf16.mxu0 0
        %2342 = vmatpush1.bf16.msra.mxu0 0
        %2343 = vmatprep.subr.bf16.mxu0 0
        %2344 = vmatpush1.bf16.msra.mxu0 0
        %2345 = vmatprep.subr.bf16.mxu0 0
        %2346 = vmatpush1.bf16.msra.mxu0 0
        %2347 = vmatprep.subr.bf16.mxu0 0
        %2348 = vmatpush1.bf16.msra.mxu0 0
        %2349 = vmatprep.subr.bf16.mxu0 0
        %2350 = vmatpush1.bf16.msra.mxu0 0
        %2351 = vmatprep.subr.bf16.mxu0 0
        %2352 = vmatpush1.bf16.msra.mxu0 0
        %2353 = vmatprep.subr.bf16.mxu0 0
        %2354 = vmatpush1.bf16.msra.mxu0 0
        %2355 = vmatprep.subr.bf16.mxu0 0
        %2356 = vmatpush1.bf16.msra.mxu0 0
        %2357 = vmatprep.mubr.bf16.mxu0 0
        %2358 = vmatmul.mubr.bf16.gmra.mrb[0].mxu0 %v2067
        %v2359 = vpop.f32.mrb[0].mxu0
        %v2360 = vadd.f32 %v2113, %v2359
        %v2361 = vpop.f32.mrb[0].mxu0
        %v2362 = vadd.f32 %v2117, %v2361
        %v2363 = vpop.f32.mrb[0].mxu0
        %v2364 = vadd.f32 %v2113, %v2363
        %v2365 = vpop.f32.mrb[0].mxu0
        %v2366 = vadd.f32 %v2117, %v2365
        %2367 = vdwg.mxu0
        %v2368 = vmul.f32 %v2317, %v2317
        %v2369 = vmul.f32 %v2319, %v2319
        %v2370 = vmul.f32 %v2360, %v2360
        %v2371 = vmul.f32 %v2362, %v2362
        %v2372 = vmul.f32 %v2321, %v2321
        %v2373 = vmul.f32 %v2323, %v2323
        %v2374 = vmul.f32 %v2364, %v2364
        %v2375 = vmul.f32 %v2366, %v2366
        %v2376 = vmul.f32 %v2317, %v2368
        %v2377 = vmul.f32 %v2319, %v2369
        %v2378 = vmul.f32 %v2360, %v2370
        %v2379 = vmul.f32 %v2362, %v2371
        %v2380 = vmul.f32 %v2321, %v2372
        %v2381 = vmul.f32 %v2323, %v2373
        %v2382 = vmul.f32 %v2364, %v2374
        %v2383 = vmul.f32 %v2366, %v2375
        %v2384 = vmul.f32 %v2376, 0.044715
        %v2385 = vmul.f32 %v2377, 0.044715
        %v2386 = vmul.f32 %v2378, 0.044715
        %v2387 = vmul.f32 %v2379, 0.044715
        %v2388 = vmul.f32 %v2380, 0.044715
        %v2389 = vmul.f32 %v2381, 0.044715
        %v2390 = vmul.f32 %v2382, 0.044715
        %v2391 = vmul.f32 %v2383, 0.044715
        %v2392 = vadd.f32 %v2317, %v2384
        %v2393 = vadd.f32 %v2319, %v2385
        %v2394 = vadd.f32 %v2360, %v2386
        %v2395 = vadd.f32 %v2362, %v2387
        %v2396 = vadd.f32 %v2321, %v2388
        %v2397 = vadd.f32 %v2323, %v2389
        %v2398 = vadd.f32 %v2364, %v2390
        %v2399 = vadd.f32 %v2366, %v2391
        %v2400 = vmul.f32 %v2392, 0.7978846
        %v2401 = vmul.f32 %v2393, 0.7978846
        %v2402 = vmul.f32 %v2394, 0.7978846
        %v2403 = vmul.f32 %v2395, 0.7978846
        %v2404 = vmul.f32 %v2396, 0.7978846
        %v2405 = vmul.f32 %v2397, 0.7978846
        %v2406 = vmul.f32 %v2398, 0.7978846
        %v2407 = vmul.f32 %v2399, 0.7978846
        %v2408 = vtanh.pop %v2400
        %v2409 = vtanh.pop %v2401
        %v2410 = vtanh.pop %v2402
        %v2411 = vtanh.pop %v2403
        %v2412 = vtanh.pop %v2404
        %v2413 = vtanh.pop %v2405
        %v2414 = vtanh.pop %v2406
        %v2415 = vtanh.pop %v2407
        %v2416 = vadd.f32 %v2408, 1.0
        %v2417 = vadd.f32 %v2409, 1.0
        %v2418 = vadd.f32 %v2410, 1.0
        %v2419 = vadd.f32 %v2411, 1.0
        %v2420 = vadd.f32 %v2412, 1.0
        %v2421 = vadd.f32 %v2413, 1.0
        %v2422 = vadd.f32 %v2414, 1.0
        %v2423 = vadd.f32 %v2415, 1.0
        %v2424 = vmul.f32 %v2416, 0.5
        %v2425 = vmul.f32 %v2417, 0.5
        %v2426 = vmul.f32 %v2418, 0.5
        %v2427 = vmul.f32 %v2419, 0.5
        %v2428 = vmul.f32 %v2420, 0.5
        %v2429 = vmul.f32 %v2421, 0.5
        %v2430 = vmul.f32 %v2422, 0.5
        %v2431 = vmul.f32 %v2423, 0.5
        %v2432 = vmul.f32 %v2317, %v2424
        %v2433 = vmul.f32 %v2319, %v2425
        %v2434 = vmul.f32 %v2360, %v2426
        %v2435 = vmul.f32 %v2362, %v2427
        %v2436 = vmul.f32 %v2321, %v2428
        %v2437 = vmul.f32 %v2323, %v2429
        %v2438 = vmul.f32 %v2364, %v2430
        %v2439 = vmul.f32 %v2366, %v2431
        %v2440 = vpack.c.bf16 %v2436, %v2432
        %v2441 = vpack.c.bf16 %v2437, %v2433
        %v2442 = vpack.c.bf16 %v2438, %v2434
        %v2443 = vpack.c.bf16 %v2439, %v2435
        %v2444 = vld [vmem:[%s577] sm:$0xf]
        %v2445 = vld [vmem:[%s577 + $0x4] sm:$0xf]
        %v2446 = vld [vmem:[%s577 + $0x8] sm:$0xf]
        %v2447 = vld [vmem:[%s577 + $0xc] sm:$0xf]
        %v2448 = vld [vmem:[%s577 + $0x10] sm:$0xf]
        %v2449 = vld [vmem:[%s577 + $0x14] sm:$0xf]
        %v2450 = vld [vmem:[%s577 + $0x18] sm:$0xf]
        %v2451 = vld [vmem:[%s577 + $0x1c] sm:$0xf]
        %v2452 = vld [vmem:[%s577 + $0x20] sm:$0xf]
        %v2453 = vld [vmem:[%s577 + $0x24] sm:$0xf]
        %v2454 = vld [vmem:[%s577 + $0x28] sm:$0xf]
        %v2455 = vld [vmem:[%s577 + $0x2c] sm:$0xf]
        %v2456 = vld [vmem:[%s577 + $0x30] sm:$0xf]
        %v2457 = vld [vmem:[%s577 + $0x34] sm:$0xf]
        %v2458 = vld [vmem:[%s577 + $0x38] sm:$0xf]
        %v2459 = vld [vmem:[%s577 + $0x3c] sm:$0xf]
        %v2460 = vld [vmem:[%s577 + $0x40] sm:$0xf]
        %v2461 = vld [vmem:[%s577 + $0x44] sm:$0xf]
        %v2462 = vld [vmem:[%s577 + $0x48] sm:$0xf]
        %v2463 = vld [vmem:[%s577 + $0x4c] sm:$0xf]
        %v2464 = vld [vmem:[%s577 + $0x50] sm:$0xf]
        %v2465 = vld [vmem:[%s577 + $0x54] sm:$0xf]
        %v2466 = vld [vmem:[%s577 + $0x58] sm:$0xf]
        %v2467 = vld [vmem:[%s577 + $0x5c] sm:$0xf]
        %v2468 = vld [vmem:[%s577 + $0x60] sm:$0xf]
        %v2469 = vld [vmem:[%s577 + $0x64] sm:$0xf]
        %v2470 = vld [vmem:[%s577 + $0x68] sm:$0xf]
        %v2471 = vld [vmem:[%s577 + $0x6c] sm:$0xf]
        %v2472 = vld [vmem:[%s577 + $0x70] sm:$0xf]
        %v2473 = vld [vmem:[%s577 + $0x74] sm:$0xf]
        %v2474 = vld [vmem:[%s577 + $0x78] sm:$0xf]
        %v2475 = vld [vmem:[%s577 + $0x7c] sm:$0xf]
        %v2476 = vld [vmem:[%s577 + $0x80] sm:$0xf]
        %v2477 = vld [vmem:[%s577 + $0x84] sm:$0xf]
        %v2478 = vld [vmem:[%s577 + $0x88] sm:$0xf]
        %v2479 = vld [vmem:[%s577 + $0x8c] sm:$0xf]
        %v2480 = vld [vmem:[%s577 + $0x90] sm:$0xf]
        %v2481 = vld [vmem:[%s577 + $0x94] sm:$0xf]
        %v2482 = vld [vmem:[%s577 + $0x98] sm:$0xf]
        %v2483 = vld [vmem:[%s577 + $0x9c] sm:$0xf]
        %v2484 = vld [vmem:[%s577 + $0xa0] sm:$0xf]
        %v2485 = vld [vmem:[%s577 + $0xa4] sm:$0xf]
        %v2486 = vld [vmem:[%s577 + $0xa8] sm:$0xf]
        %v2487 = vld [vmem:[%s577 + $0xac] sm:$0xf]
        %v2488 = vld [vmem:[%s577 + $0xb0] sm:$0xf]
        %v2489 = vld [vmem:[%s577 + $0xb4] sm:$0xf]
        %v2490 = vld [vmem:[%s577 + $0xb8] sm:$0xf]
        %v2491 = vld [vmem:[%s577 + $0xbc] sm:$0xf]
        %v2492 = vld [vmem:[%s577 + $0xc0] sm:$0xf]
        %v2493 = vld [vmem:[%s577 + $0xc4] sm:$0xf]
        %v2494 = vld [vmem:[%s577 + $0xc8] sm:$0xf]
        %v2495 = vld [vmem:[%s577 + $0xcc] sm:$0xf]
        %v2496 = vld [vmem:[%s577 + $0xd0] sm:$0xf]
        %v2497 = vld [vmem:[%s577 + $0xd4] sm:$0xf]
        %v2498 = vld [vmem:[%s577 + $0xd8] sm:$0xf]
        %v2499 = vld [vmem:[%s577 + $0xdc] sm:$0xf]
        %v2500 = vld [vmem:[%s577 + $0xe0] sm:$0xf]
        %v2501 = vld [vmem:[%s577 + $0xe4] sm:$0xf]
        %v2502 = vld [vmem:[%s577 + $0xe8] sm:$0xf]
        %v2503 = vld [vmem:[%s577 + $0xec] sm:$0xf]
        %v2504 = vld [vmem:[%s577 + $0xf0] sm:$0xf]
        %v2505 = vld [vmem:[%s577 + $0xf4] sm:$0xf]
        %v2506 = vld [vmem:[%s577 + $0xf8] sm:$0xf]
        %v2507 = vld [vmem:[%s577 + $0xfc] sm:$0xf]
        %v2508 = vld [vmem:[%s682] sm:$0x1]
        %v2510 = vlaneseq
        %v2511 = vshrl.u32 %v2510, 7
        %v2512 = vsub.s32 0, %v2511
        %v2513 = vrot.slane %v2508, %v2512
        %v2579 = vunpack.c.l.b16 %v2444
        %v2580 = vunpack.c.l.b16 %v2445
        %v2581 = vunpack.c.l.b16 %v2446
        %v2582 = vunpack.c.l.b16 %v2447
        %v2583 = vunpack.c.l.b16 %v2448
        %v2584 = vunpack.c.l.b16 %v2449
        %v2585 = vunpack.c.l.b16 %v2450
        %v2586 = vunpack.c.l.b16 %v2451
        %v2587 = vunpack.c.l.b16 %v2452
        %v2588 = vunpack.c.l.b16 %v2453
        %v2589 = vunpack.c.l.b16 %v2454
        %v2590 = vunpack.c.l.b16 %v2455
        %v2591 = vunpack.c.l.b16 %v2456
        %v2592 = vunpack.c.l.b16 %v2457
        %v2593 = vunpack.c.l.b16 %v2458
        %v2594 = vunpack.c.l.b16 %v2459
        %v2595 = vunpack.c.l.b16 %v2460
        %v2596 = vunpack.c.l.b16 %v2461
        %v2597 = vunpack.c.l.b16 %v2462
        %v2598 = vunpack.c.l.b16 %v2463
        %v2599 = vunpack.c.l.b16 %v2464
        %v2600 = vunpack.c.l.b16 %v2465
        %v2601 = vunpack.c.l.b16 %v2466
        %v2602 = vunpack.c.l.b16 %v2467
        %v2603 = vunpack.c.l.b16 %v2468
        %v2604 = vunpack.c.l.b16 %v2469
        %v2605 = vunpack.c.l.b16 %v2470
        %v2606 = vunpack.c.l.b16 %v2471
        %v2607 = vunpack.c.l.b16 %v2472
        %v2608 = vunpack.c.l.b16 %v2473
        %v2609 = vunpack.c.l.b16 %v2474
        %v2610 = vunpack.c.l.b16 %v2475
        %v2611 = vunpack.c.l.b16 %v2476
        %v2612 = vunpack.c.l.b16 %v2477
        %v2613 = vunpack.c.l.b16 %v2478
        %v2614 = vunpack.c.l.b16 %v2479
        %v2615 = vunpack.c.l.b16 %v2480
        %v2616 = vunpack.c.l.b16 %v2481
        %v2617 = vunpack.c.l.b16 %v2482
        %v2618 = vunpack.c.l.b16 %v2483
        %v2619 = vunpack.c.l.b16 %v2484
        %v2620 = vunpack.c.l.b16 %v2485
        %v2621 = vunpack.c.l.b16 %v2486
        %v2622 = vunpack.c.l.b16 %v2487
        %v2623 = vunpack.c.l.b16 %v2488
        %v2624 = vunpack.c.l.b16 %v2489
        %v2625 = vunpack.c.l.b16 %v2490
        %v2626 = vunpack.c.l.b16 %v2491
        %v2627 = vunpack.c.l.b16 %v2492
        %v2628 = vunpack.c.l.b16 %v2493
        %v2629 = vunpack.c.l.b16 %v2494
        %v2630 = vunpack.c.l.b16 %v2495
        %v2631 = vunpack.c.l.b16 %v2496
        %v2632 = vunpack.c.l.b16 %v2497
        %v2633 = vunpack.c.l.b16 %v2498
        %v2634 = vunpack.c.l.b16 %v2499
        %v2635 = vunpack.c.l.b16 %v2500
        %v2636 = vunpack.c.l.b16 %v2501
        %v2637 = vunpack.c.l.b16 %v2502
        %v2638 = vunpack.c.l.b16 %v2503
        %v2639 = vunpack.c.l.b16 %v2504
        %v2640 = vunpack.c.l.b16 %v2505
        %v2641 = vunpack.c.l.b16 %v2506
        %v2642 = vunpack.c.l.b16 %v2507
        %v2643 = vpack.c.b16 %v2580, %v2579
        %v2644 = vpack.c.b16 %v2582, %v2581
        %v2645 = vpack.c.b16 %v2584, %v2583
        %v2646 = vpack.c.b16 %v2586, %v2585
        %v2647 = vpack.c.b16 %v2588, %v2587
        %v2648 = vpack.c.b16 %v2590, %v2589
        %v2649 = vpack.c.b16 %v2592, %v2591
        %v2650 = vpack.c.b16 %v2594, %v2593
        %v2651 = vpack.c.b16 %v2596, %v2595
        %v2652 = vpack.c.b16 %v2598, %v2597
        %v2653 = vpack.c.b16 %v2600, %v2599
        %v2654 = vpack.c.b16 %v2602, %v2601
        %v2655 = vpack.c.b16 %v2604, %v2603
        %v2656 = vpack.c.b16 %v2606, %v2605
        %v2657 = vpack.c.b16 %v2608, %v2607
        %v2658 = vpack.c.b16 %v2610, %v2609
        %v2659 = vpack.c.b16 %v2612, %v2611
        %v2660 = vpack.c.b16 %v2614, %v2613
        %v2661 = vpack.c.b16 %v2616, %v2615
        %v2662 = vpack.c.b16 %v2618, %v2617
        %v2663 = vpack.c.b16 %v2620, %v2619
        %v2664 = vpack.c.b16 %v2622, %v2621
        %v2665 = vpack.c.b16 %v2624, %v2623
        %v2666 = vpack.c.b16 %v2626, %v2625
        %v2667 = vpack.c.b16 %v2628, %v2627
        %v2668 = vpack.c.b16 %v2630, %v2629
        %v2669 = vpack.c.b16 %v2632, %v2631
        %v2670 = vpack.c.b16 %v2634, %v2633
        %v2671 = vpack.c.b16 %v2636, %v2635
        %v2672 = vpack.c.b16 %v2638, %v2637
        %v2673 = vpack.c.b16 %v2640, %v2639
        %v2674 = vpack.c.b16 %v2642, %v2641
        %2707 = vmatprep.subr.bf16.mxu0 0
        %2708 = vmatpush1.bf16.msra.mxu0 %v2643
        %2709 = vmatprep.subr.bf16.mxu0 0
        %2710 = vmatpush1.bf16.msra.mxu0 %v2644
        %2711 = vmatprep.subr.bf16.mxu0 0
        %2712 = vmatpush1.bf16.msra.mxu0 %v2645
        %2713 = vmatprep.subr.bf16.mxu0 0
        %2714 = vmatpush1.bf16.msra.mxu0 %v2646
        %2715 = vmatprep.subr.bf16.mxu0 0
        %2716 = vmatpush1.bf16.msra.mxu0 %v2647
        %2717 = vmatprep.subr.bf16.mxu0 0
        %2718 = vmatpush1.bf16.msra.mxu0 %v2648
        %2719 = vmatprep.subr.bf16.mxu0 0
        %2720 = vmatpush1.bf16.msra.mxu0 %v2649
        %2721 = vmatprep.subr.bf16.mxu0 0
        %2722 = vmatpush1.bf16.msra.mxu0 %v2650
        %2723 = vmatprep.subr.bf16.mxu0 0
        %2724 = vmatpush1.bf16.msra.mxu0 %v2651
        %2725 = vmatprep.subr.bf16.mxu0 0
        %2726 = vmatpush1.bf16.msra.mxu0 %v2652
        %2727 = vmatprep.subr.bf16.mxu0 0
        %2728 = vmatpush1.bf16.msra.mxu0 %v2653
        %2729 = vmatprep.subr.bf16.mxu0 0
        %2730 = vmatpush1.bf16.msra.mxu0 %v2654
        %2731 = vmatprep.subr.bf16.mxu0 0
        %2732 = vmatpush1.bf16.msra.mxu0 %v2655
        %2733 = vmatprep.subr.bf16.mxu0 0
        %2734 = vmatpush1.bf16.msra.mxu0 %v2656
        %2735 = vmatprep.subr.bf16.mxu0 0
        %2736 = vmatpush1.bf16.msra.mxu0 %v2657
        %2737 = vmatprep.subr.bf16.mxu0 0
        %2738 = vmatpush1.bf16.msra.mxu0 %v2658
        %2739 = vmatprep.mubr.bf16.mxu0 %v2441
        %2740 = vmatmul.mubr.bf16.gmra.mrb[0].mxu0 %v2440
        %v2741 = vpop.f32.mrb[0].mxu0
        %v2742 = vadd.f32 %v2513, %v2741
        %v2743 = vpop.f32.mrb[0].mxu0
        %v2744 = vpop.f32.mrb[0].mxu0
        %v2745 = vadd.f32 %v2513, %v2744
        %v2746 = vpop.f32.mrb[0].mxu0
        %2747 = vdwg.mxu0
        %2748 = vmatprep.subr.bf16.mxu0 0
        %2749 = vmatpush1.bf16.msra.mxu0 %v2659
        %2750 = vmatprep.subr.bf16.mxu0 0
        %2751 = vmatpush1.bf16.msra.mxu0 %v2660
        %2752 = vmatprep.subr.bf16.mxu0 0
        %2753 = vmatpush1.bf16.msra.mxu0 %v2661
        %2754 = vmatprep.subr.bf16.mxu0 0
        %2755 = vmatpush1.bf16.msra.mxu0 %v2662
        %2756 = vmatprep.subr.bf16.mxu0 0
        %2757 = vmatpush1.bf16.msra.mxu0 %v2663
        %2758 = vmatprep.subr.bf16.mxu0 0
        %2759 = vmatpush1.bf16.msra.mxu0 %v2664
        %2760 = vmatprep.subr.bf16.mxu0 0
        %2761 = vmatpush1.bf16.msra.mxu0 %v2665
        %2762 = vmatprep.subr.bf16.mxu0 0
        %2763 = vmatpush1.bf16.msra.mxu0 %v2666
        %2764 = vmatprep.subr.bf16.mxu0 0
        %2765 = vmatpush1.bf16.msra.mxu0 %v2667
        %2766 = vmatprep.subr.bf16.mxu0 0
        %2767 = vmatpush1.bf16.msra.mxu0 %v2668
        %2768 = vmatprep.subr.bf16.mxu0 0
        %2769 = vmatpush1.bf16.msra.mxu0 %v2669
        %2770 = vmatprep.subr.bf16.mxu0 0
        %2771 = vmatpush1.bf16.msra.mxu0 %v2670
        %2772 = vmatprep.subr.bf16.mxu0 0
        %2773 = vmatpush1.bf16.msra.mxu0 %v2671
        %2774 = vmatprep.subr.bf16.mxu0 0
        %2775 = vmatpush1.bf16.msra.mxu0 %v2672
        %2776 = vmatprep.subr.bf16.mxu0 0
        %2777 = vmatpush1.bf16.msra.mxu0 %v2673
        %2778 = vmatprep.subr.bf16.mxu0 0
        %2779 = vmatpush1.bf16.msra.mxu0 %v2674
        %2780 = vmatprep.mubr.bf16.mxu0 %v2443
        %2781 = vmatmul.mubr.bf16.gmra.mrb[0].mxu0 %v2442
        %v2782 = vpop.f32.mrb[0].mxu0
        %v2783 = vadd.f32 %v2742, %v2782
        %v2784 = vpop.f32.mrb[0].mxu0
        %v2785 = vpop.f32.mrb[0].mxu0
        %v2786 = vadd.f32 %v2745, %v2785
        %v2787 = vpop.f32.mrb[0].mxu0
        %2788 = vdwg.mxu0
        %v2789 = vadd.f32 %v2065, %v2783
        %v2790 = vadd.f32 %v2066, %v2786
        %v2791 = vld [vmem:[%s685] sm:$0x1]
        %v2792 = vld [vmem:[%s688] sm:$0x1]
        %2793 = vadd.xlane.f32.xlu0 %v2789
        %v2794 = vpop.xlane.xlu0 %2793
        %2795 = vadd.xlane.f32.xlu0 %v2790
        %v2796 = vpop.xlane.xlu0 %2795
        %v2797 = vmul.f32 %v2794, %v2032
        %v2798 = vmul.f32 %v2796, %v2032
        %v2799 = vsub.f32 %v2789, %v2797
        %v2800 = vsub.f32 %v2790, %v2798
        %v2801 = vmul.f32 %v2799, %v2799
        %v2802 = vmul.f32 %v2800, %v2800
        %2803 = vadd.xlane.f32.xlu0 %v2801
        %v2804 = vpop.xlane.xlu0 %2803
        %2805 = vadd.xlane.f32.xlu0 %v2802
        %v2806 = vpop.xlane.xlu0 %2805
        %v2807 = vmul.f32 %v2804, %v2032
        %v2808 = vmul.f32 %v2806, %v2032
        %v2809 = vadd.f32 %v2807, 1e-12
        %v2810 = vadd.f32 %v2808, 1e-12
        %v2811 = vrsqrt.pop %v2809
        %v2812 = vrsqrt.pop %v2810
        %v2813 = vmul.f32 %v2799, %v2811
        %v2814 = vmul.f32 %v2800, %v2812
        %v2816 = vlaneseq
        %v2817 = vshrl.u32 %v2816, 7
        %v2818 = vsub.s32 0, %v2817
        %v2819 = vrot.slane %v2791, %v2818
        %v2821 = vmul.f32 %v2813, %v2819
        %v2822 = vmul.f32 %v2814, %v2819
        %v2824 = vlaneseq
        %v2825 = vshrl.u32 %v2824, 7
        %v2826 = vsub.s32 0, %v2825
        %v2827 = vrot.slane %v2792, %v2826
        %v2829 = vadd.f32 %v2821, %v2827
        %v2830 = vadd.f32 %v2822, %v2827
        %2831 = vst [vmem:[#allocation2] sm:$0xff] %v2829
        %2832 = vst [vmem:[#allocation2 + $0x8] sm:$0xff] %v2830
        %p2833 = scmp.eq.s32.totalorder %s32, 1
        // Predicated region
        $region93: #{ner_model_forward.1} parent=75 // pred_check
          %p2834 = pneg %p2833
        $region94: #{ner_model_forward.1} parent=75 // pred_check_branch
          %2836 = sbr.rel (%p2834) target = $region96
        $region95: #{ner_model_forward.1} parent=75 // pred_region
          %v2837 = vrot.slane %v2829, 4
          %v2838 = vmax.f32 %v2829, %v2837
          %v2839 = vrot.slane %v2838, 2
          %v2840 = vmax.f32 %v2838, %v2839
          %v2841 = vrot.slane %v2840, 1
          %v2842 = vmax.f32 %v2840, %v2841
          %v2843 = vrot.slane %v2830, 4
          %v2844 = vmax.f32 %v2830, %v2843
          %v2845 = vrot.slane %v2844, 2
          %v2846 = vmax.f32 %v2844, %v2845
          %v2847 = vrot.slane %v2846, 1
          %v2848 = vmax.f32 %v2846, %v2847
          %v2849 = vsub.f32 %v2829, %v2842
          %v2850 = vsub.f32 %v2830, %v2848
          %v2851 = vmul.f32 %v2849, 1.442695
          %v2852 = vpow.pop %v2851
          %v2853 = vmul.f32 %v2850, 1.442695
          %v2854 = vpow.pop %v2853
          %v2855 = vrot.slane %v2852, 4
          %v2856 = vadd.f32 %v2852, %v2855
          %v2857 = vrot.slane %v2856, 2
          %v2858 = vadd.f32 %v2856, %v2857
          %v2859 = vrot.slane %v2858, 1
          %v2860 = vadd.f32 %v2858, %v2859
          %v2861 = vrot.slane %v2854, 4
          %v2862 = vadd.f32 %v2854, %v2861
          %v2863 = vrot.slane %v2862, 2
          %v2864 = vadd.f32 %v2862, %v2863
          %v2865 = vrot.slane %v2864, 1
          %v2866 = vadd.f32 %v2864, %v2865
          %v2867 = vrcp.pop %v2860
          %v2868 = vmul.f32 %v2852, %v2867
          %v2869 = vrcp.pop %v2866
          %v2870 = vmul.f32 %v2854, %v2869
          %2871 = vst [vmem:[#allocation9] sm:$0xff] %v2868
          %2872 = vst [vmem:[#allocation9 + $0x8] sm:$0xff] %v2870
        $region96: #{ner_model_forward.1} parent=75 // pred_fallthru
          _
        // Predicated region
        $region97: #{ner_model_forward.1} parent=75 // pred_check
          %p2873 = pneg %p399
        $region98: #{ner_model_forward.1} parent=75 // pred_check_branch
          %2875 = sbr.rel (%p2873) target = $region100
        $region99: #{ner_model_forward.1} parent=75 // pred_region
          %s2877 = ssub.s32 256, 256
          %2878 = vsyncadd [#allocation5], %s2877
          %s2879 = sshll.u32 [#allocation9], 4
          %s2880 = int_to_ptr.vmem [resolvable:$true] %s2879
          %2885 = dma.vmem_to_hbm [thread:$0]  %s2880, 256, %s14, [#allocation5], 128, 128, 8
        $region100: #{ner_model_forward.1} parent=75 // pred_fallthru
          _
        // Predicated region
        $region101: #{ner_model_forward.1} parent=75 // pred_check
          %p2886 = pneg %p399
        $region102: #{ner_model_forward.1} parent=75 // pred_check_branch
          %2888 = sbr.rel (%p2886) target = $region104
        $region103: #{ner_model_forward.1} parent=75 // pred_region
          %2889 = dma.done [#allocation5], 256
        $region104: #{ner_model_forward.1} parent=75 // pred_fallthru
          _
      $region76: #{ner_model_forward.1} parent=5 // pred_fallthru
        _
      %p2890 = scmp.le.s32.totalorder 2, %s27
      // Predicated region
      $region105: #{ner_model_forward.1} parent=5 // pred_check
        %p2891 = pneg %p2890
      $region106: #{ner_model_forward.1} parent=5 // pred_check_branch
        %2893 = sbr.rel (%p2891) target = $region108
      $region107: #{ner_model_forward.1} parent=5 // pred_region
        %s2894 = ssub.s32 %s27, 2
      $region108: #{ner_model_forward.1} parent=5 // pred_fallthru
        _
    $region6: #{ner_model_forward.1} parent=1 // loop_footer
      %s31 = sadd.s32 1, %s27
    $region7: #{ner_model_forward.1} parent=1 // loop_footer_branch
      %26 = sbr.rel target = $region3
    $region8: #{ner_model_forward.1} parent=1 // loop_exit
      _
    %2895 = vsyncpa [#allocation4], 1
    %s2896 = scalar_lea.sflag [#allocation4], 1
    %2897 = vsyncpa %s2896, 1
    %2898 = vsyncpa [#allocation7], 1
    %s2899 = scalar_lea.sflag [#allocation7], 1
    %2900 = vsyncpa %s2899, 1
    %2901 = vsyncpa [#allocation5], 1
    %s2902 = scalar_lea.sflag [#allocation5], 1
    %2903 = vsyncpa %s2902, 1

</llo_original>
